<compile_context>
chip_gen: v7x
topology: tpu7x:2x2x1
jax: 0.10.0
libtpu: 0.0.40
codegen_flags: <defaults>
</compile_context>

<pallas_src>
import jax
import jax.numpy as jnp
from jax.experimental import pallas as pl
from jax.experimental.pallas import tpu as pltpu

TEMPERATURE = 0.1


def _sigmoid_linear_kernel(x_ref, w_ref, b_ref, o_ref, acc_ref):
    k = pl.program_id(2)

    @pl.when(k == 0)
    def _():
        # Fold the bias into the accumulator init (saves an epilogue add pass
        # and keeps the finalize a pure cast+store).
        acc_ref[...] = jnp.broadcast_to(
            b_ref[...].astype(jnp.float32), acc_ref.shape
        )

    # Elementwise hot path in f32 (v5e-safe): sigmoid(x / T) = 1 / (1 + e^{-x/T}).
    # exp and the approximate reciprocal both land on the EUP slot, which is
    # effectively free underneath the MXU work.
    x = x_ref[...].astype(jnp.float32)
    neg_arg = jnp.minimum(x * (-1.0 / TEMPERATURE), 60.0)  # avoid inf intermediate
    e = jnp.exp(neg_arg)
    x_sig = pl.reciprocal(1.0 + e, approx=True)

    # base_model stand-in: Linear layer on the MXU, bf16 operands, f32 accumulate.
    # TODO(synk): `base_model` is an arbitrary injected module in the original
    # code; a deterministic Linear(D_in, D_out) is used here as its body.
    acc_ref[...] += jnp.dot(
        x_sig.astype(jnp.bfloat16),
        w_ref[...],  # already bf16 (cast at the call boundary)
        preferred_element_type=jnp.float32,
    )

    @pl.when(k == pl.num_programs(2) - 1)
    def _():
        o_ref[...] = acc_ref[...].astype(o_ref.dtype)


def network_forward(x, w, b, *, tm=256, tn=256, tk=512):
    """y = sigmoid(x / 0.1) @ w + b, fused in one tiled Pallas kernel."""
    B, D_in = x.shape
    D_in_w, D_out = w.shape
    assert D_in == D_in_w
    assert b.shape == (D_out,)

    # Clamp tiles to the problem and require even tiling (keeps the kernel
    # free of masking logic; last-two-dim blocks stay (8,128)-aligned).
    tm = min(tm, B)
    tn = min(tn, D_out)
    tk = min(tk, D_in)
    assert B % tm == 0 and D_out % tn == 0 and D_in % tk == 0, (
        "shapes must be divisible by the tile sizes"
    )

    # Weights streamed as bf16 -> half the HBM bytes on the K-loop operand.
    w_bf16 = w.astype(jnp.bfloat16)
    b2d = b.reshape(1, D_out).astype(jnp.float32)

    grid = (B // tm, D_out // tn, D_in // tk)

    cost = pl.CostEstimate(
        flops=2 * B * D_in * D_out,
        transcendentals=B * D_in * (D_out // tn),  # sigmoid recomputed per N-tile
        bytes_accessed=(
            x.size * 4 * (D_out // tn)      # x re-streamed per N-tile
            + w.size * 2                    # bf16 weights
            + D_out * 4
            + B * D_out * 4
        ),
    )

    return pl.pallas_call(
        _sigmoid_linear_kernel,
        out_shape=jax.ShapeDtypeStruct((B, D_out), x.dtype),
        grid=grid,
        in_specs=[
            pl.BlockSpec((tm, tk), lambda i, j, k: (i, k)),   # x tile
            pl.BlockSpec((tk, tn), lambda i, j, k: (k, j)),   # w tile (bf16)
            pl.BlockSpec((1, tn), lambda i, j, k: (0, j)),    # bias tile
        ],
        out_specs=pl.BlockSpec((tm, tn), lambda i, j, k: (i, j)),
        scratch_shapes=[pltpu.VMEM((tm, tn), jnp.float32)],
        compiler_params=pltpu.CompilerParams(
            dimension_semantics=("parallel", "parallel", "arbitrary"),
            vmem_limit_bytes=32 * 1024 * 1024,
        ),
        cost_estimate=cost,
    )(x, w_bf16, b2d)


def reference_forward(x, w, b):
    x_sig = jax.nn.sigmoid(x / TEMPERATURE)
    return x_sig @ w + b


if __name__ == "__main__":
    # Shapes chosen so the larger default tiles still give grid = (2, 2, 2):
    # init / accumulate / finalize and both parallel axes all get exercised.
    B, D_in, D_out = 512, 1024, 512

    key = jax.random.PRNGKey(0)
    kx, kw, kb = jax.random.split(key, 3)
    x = jax.random.normal(kx, (B, D_in), dtype=jnp.float32)
    # Deterministic parameter init (synthetic weights, not a checkpoint).
    w = jax.random.normal(kw, (D_in, D_out), dtype=jnp.float32) * 0.02
    b = jax.random.normal(kb, (D_out,), dtype=jnp.float32) * 0.02

    fwd = jax.jit(network_forward)
    out = jax.block_until_ready(fwd(x, w, b))

    ref = reference_forward(x, w, b)
    assert out.shape == (B, D_out)
    # bf16 MXU operands (f32 accumulation) -> slightly looser tolerance.
    assert jnp.allclose(out, ref, atol=1e-2, rtol=1e-2), "mismatch vs reference"

    print("KERNEL_OK")
</pallas_src>

<mosaic_0001>
module attributes {stable_mosaic.version = 11 : i64} {
  func.func @_sigmoid_linear_kernel(%arg0: i32, %arg1: i32, %arg2: i32, %arg3: memref<256x512xf32, #tpu.memory_space<vmem>>, %arg4: memref<512x256xbf16, #tpu.memory_space<vmem>>, %arg5: memref<1x256xf32, #tpu.memory_space<vmem>>, %arg6: memref<256x256xf32, #tpu.memory_space<vmem>>, %arg7: memref<256x256xf32, #tpu.memory_space<vmem>>) attributes {dimension_semantics = [#tpu.dimension_semantics<parallel>, #tpu.dimension_semantics<parallel>, #tpu.dimension_semantics<arbitrary>], iteration_bounds = array<i64: 2, 2, 2>, scalar_prefetch = 0 : i64, scratch_operands = 1 : i64, tpu.core_type = #tpu.core_type<tc>, window_params = [{transform_indices = @transform_0, window_bounds = array<i64: 256, 512>}, {transform_indices = @transform_1, window_bounds = array<i64: 512, 256>}, {transform_indices = @transform_2, window_bounds = array<i64: 1, 256>}, {transform_indices = @transform_3, window_bounds = array<i64: 256, 256>}]} {
    %c0_i32 = arith.constant 0 : i32
    %0 = arith.cmpi eq, %arg2, %c0_i32 : i32
    %1 = arith.extui %0 : i1 to i32
    %c0_i32_0 = arith.constant 0 : i32
    %2 = arith.cmpi ne, %1, %c0_i32_0 : i32
    scf.if %2 {
      %c0_12 = arith.constant 0 : index
      %c0_13 = arith.constant 0 : index
      %21 = vector.load %arg5[%c0_12, %c0_13] : memref<1x256xf32, #tpu.memory_space<vmem>>, vector<1x256xf32>
      %22 = vector.shape_cast %21 : vector<1x256xf32> to vector<1x256xf32>
      %23 = vector.broadcast %22 : vector<1x256xf32> to vector<256x256xf32>
      %c0_14 = arith.constant 0 : index
      %c0_15 = arith.constant 0 : index
      %24 = vector.load %arg7[%c0_14, %c0_15] : memref<256x256xf32, #tpu.memory_space<vmem>>, vector<256x256xf32>
      tpu.vector_store %arg7[%c0_14, %c0_15], %23 {strides = array<i32>} : memref<256x256xf32, #tpu.memory_space<vmem>>, vector<256x256xf32>,
    } else {
    }
    %c0 = arith.constant 0 : index
    %c0_1 = arith.constant 0 : index
    %3 = vector.load %arg3[%c0, %c0_1] : memref<256x512xf32, #tpu.memory_space<vmem>>, vector<256x512xf32>
    %cst = arith.constant -1.000000e+01 : f32
    %4 = vector.broadcast %cst : f32 to vector<256x512xf32>
    %5 = arith.mulf %3, %4 : vector<256x512xf32>
    %cst_2 = arith.constant 6.000000e+01 : f32
    %6 = vector.broadcast %cst_2 : f32 to vector<256x512xf32>
    %7 = arith.minimumf %5, %6 : vector<256x512xf32>
    %8 = math.exp %7 : vector<256x512xf32>
    %cst_3 = arith.constant 1.000000e+00 : f32
    %9 = vector.broadcast %cst_3 : f32 to vector<256x512xf32>
    %10 = arith.addf %9, %8 : vector<256x512xf32>
    %11 = tpu.reciprocal %10 {approx = true} : vector<256x512xf32> -> vector<256x512xf32>
    %c0_4 = arith.constant 0 : index
    %c0_5 = arith.constant 0 : index
    %12 = vector.load %arg7[%c0_4, %c0_5] : memref<256x256xf32, #tpu.memory_space<vmem>>, vector<256x256xf32>
    %13 = arith.truncf %11 : vector<256x512xf32> to vector<256x512xbf16>
    %c0_6 = arith.constant 0 : index
    %c0_7 = arith.constant 0 : index
    %14 = vector.load %arg4[%c0_6, %c0_7] : memref<512x256xbf16, #tpu.memory_space<vmem>>, vector<512x256xbf16>
    %cst_8 = arith.constant dense<0.000000e+00> : vector<256x256xf32>
    %15 = tpu.matmul %13, %14, %cst_8 {dimension_numbers = #tpu.dot_dimension_numbers<[1], [0], [0], [1], [0, 0, 1, 1], [], []>} : vector<256x512xbf16>, vector<512x256xbf16>, vector<256x256xf32> -> vector<256x256xf32>
    %16 = arith.addf %12, %15 : vector<256x256xf32>
    %c0_9 = arith.constant 0 : index
    %c0_10 = arith.constant 0 : index
    %17 = vector.load %arg7[%c0_9, %c0_10] : memref<256x256xf32, #tpu.memory_space<vmem>>, vector<256x256xf32>
    tpu.vector_store %arg7[%c0_9, %c0_10], %16 {strides = array<i32>} : memref<256x256xf32, #tpu.memory_space<vmem>>, vector<256x256xf32>,
    %c1_i32 = arith.constant 1 : i32
    %18 = arith.cmpi eq, %arg2, %c1_i32 : i32
    %19 = arith.extui %18 : i1 to i32
    %c0_i32_11 = arith.constant 0 : i32
    %20 = arith.cmpi ne, %19, %c0_i32_11 : i32
    scf.if %20 {
      %c0_12 = arith.constant 0 : index
      %c0_13 = arith.constant 0 : index
      %21 = vector.load %arg7[%c0_12, %c0_13] : memref<256x256xf32, #tpu.memory_space<vmem>>, vector<256x256xf32>
      %c0_14 = arith.constant 0 : index
      %c0_15 = arith.constant 0 : index
      %22 = vector.load %arg6[%c0_14, %c0_15] : memref<256x256xf32, #tpu.memory_space<vmem>>, vector<256x256xf32>
      tpu.vector_store %arg6[%c0_14, %c0_15], %21 {strides = array<i32>} : memref<256x256xf32, #tpu.memory_space<vmem>>, vector<256x256xf32>,
    } else {
    }
    return
  }
  func.func @transform_0(%arg0: i32, %arg1: i32, %arg2: i32) -> (i32, i32) {
    %c0_i32 = arith.constant 0 : i32
    return %arg0, %arg2 : i32, i32
  }
  func.func @transform_1(%arg0: i32, %arg1: i32, %arg2: i32) -> (i32, i32) {
    %c0_i32 = arith.constant 0 : i32
    return %arg2, %arg1 : i32, i32
  }
  func.func @transform_2(%arg0: i32, %arg1: i32, %arg2: i32) -> (i32, i32) {
    %c0_i32 = arith.constant 0 : i32
    %c0_i32_0 = arith.constant 0 : i32
    return %c0_i32, %arg1 : i32, i32
  }
  func.func @transform_3(%arg0: i32, %arg1: i32, %arg2: i32) -> (i32, i32) {
    %c0_i32 = arith.constant 0 : i32
    return %arg0, %arg1 : i32, i32
  }
}

</mosaic_0001>

<llo_original>
// kernel: network_forward.1
$region0: #{network_forward.1}
  #allocation0 [shape = 'u32[]', space=smem, size = 0x4, offset = 0x4, fixed_abs, tag = 'smem constant byte address 0x4 - core index']
  #allocation1 [shape = 'u32[144,128]{1,0:T(1,128)}', space=vmem, size = 0x12000, scoped, tag = 'internal scratch']
  #allocation2 [shape = 'f32[256,256]{1,0:T(8,128)}', space=vmem, size = 0x40000, scoped, tag = 'scratch operand']
  %s0 = inlined_call_operand.vmem [shape: f32[512,1024], index: 0, kind: input, shape index: {}]
  %s1 = inlined_call_operand.vmem [shape: bf16[1024,512], index: 1, kind: input, shape index: {}]
  %s2 = inlined_call_operand.vmem [shape: f32[1,512], index: 2, kind: input, shape index: {}]
  %s3 = inlined_call_operand.hbm [shape: f32[512,512], index: 3, kind: output, shape index: {}]
  %s4 = sld [smem:[#allocation0]]
  $region114: #{network_forward.1} parent=0
    _
  %s6 = ssub.s32 1, %s4
  %s7 = scalar_select 0, %s6, %s4
  $region1: #{network_forward.1} parent=0
    #allocation3 [shape = 'u8[1048576]{0}', space=vmem, size = 0x100000, scoped, tag = 'input window, operand 0']
    #allocation4 [shape = 'u8[524288]{0}', space=vmem, size = 0x80000, scoped, tag = 'input window, operand 1']
    #allocation5 [shape = 'u8[524288]{0}', space=vmem, size = 0x80000, scoped, tag = 'output window, operand 0']
    #allocation6 [shape = 's32[2]{0}', space=sflag, size = 0x8, scoped, tag = 'scoped memory for network_forward.1']
    %8 = vsyncpa [#allocation6], 0
    %s9 = scalar_lea.sflag [#allocation6], 1
    %10 = vsyncpa %s9, 0
    loop: start=0, step=1, limit=10
    $region2: #{network_forward.1} parent=1 // loop_pre_header
      _
    $region3: #{network_forward.1} parent=1 // loop_header
      %s12 = sphi 0, %s16
      %p13 = scmp.ge.s32.totalorder %s12, 10
      %s19 = sphi 0, %s38
      %s20 = sphi 0, %s34
      %s21 = sphi 0, %s30
      %s22 = sphi 0, %s19
      %s23 = sphi 0, %s20
      %s24 = sphi 0, %s21
      %s25 = sphi 0, %s22
      %s26 = sphi 0, %s23
      %s27 = sphi 0, %s24
      %s43 = sphi 0, %s45
      %s46 = sphi 0, %s43
      %s47 = sphi 0, %s46
      %s63 = sphi 0, %s47
      %s71 = sphi 0, %s73
      %s74 = sphi 0, %s71
      %s75 = sphi 0, %s74
      %s91 = sphi 0, %s75
      %s97 = sphi 0, %s99
      %s100 = sphi 0, %s97
      %s101 = sphi 0, %s100
      %s117 = sphi 0, %s101
      %s125 = sphi 0, %s127
      %s128 = sphi 0, %s125
      %s129 = sphi 0, %s128
      %s145 = sphi 0, %s129
    $region4: #{network_forward.1} parent=1 // loop_header_branch
      %15 = sbr.rel (%p13) target = $region8
    $region5: #{network_forward.1} parent=1 // loop_body
      %s17 = ssub.s32 %s12, 1
      %s18 = ssub.s32 %s12, 2
      %s28 = sadd.s32 1, %s21
      %p29 = scmp.ge.s32.totalorder %s28, 2
      %s30 = scalar_select %p29, 0, %s28
      %s31 = sadd.s32 1, %s20
      %s32 = scalar_select %p29, %s31, %s20
      %p33 = scmp.ge.s32.totalorder %s32, 2
      %s34 = scalar_select %p33, 0, %s32
      %s35 = sadd.s32 1, %s19
      %s36 = scalar_select %p33, %s35, %s19
      %p37 = scmp.ge.s32.totalorder %s36, 2
      %s38 = scalar_select %p37, 0, %s36
      %s39 = ssub.s32 %s19, %s38
      %s40 = ssub.s32 %s21, %s30
      %s41 = sor.u32 %s39, %s40
      %p42 = scmp.eq.s32.totalorder %s41, 0
      %s44 = sadd.s32 %s43, 1
      %s45 = scalar_select %p42, %s43, %s44
      %p48 = pneg %p42
      %p49 = scmp.eq.s32.totalorder %s12, 7
      %p50 = por %p48, %p49
      %p51 = scmp.ne.s32.totalorder %s43, %s46
      %p52 = scmp.eq.s32.totalorder %s12, 0
      %p53 = por %p51, %p52
      %p54 = scmp.ne.s32.totalorder %s43, %s46
      %p55 = scmp.eq.s32.totalorder %s17, 7
      %p56 = por %p54, %p55
      %p57 = scmp.ne.s32.totalorder %s46, %s47
      %p58 = scmp.eq.s32.totalorder %s17, 0
      %p59 = por %p57, %p58
      %p60 = scmp.ne.s32.totalorder %s46, %s47
      %p61 = scmp.eq.s32.totalorder %s18, 7
      %p62 = por %p60, %p61
      %p64 = scmp.ne.s32.totalorder %s47, %s63
      %p65 = scmp.eq.s32.totalorder %s18, 0
      %p66 = por %p64, %p65
      %s67 = ssub.s32 %s21, %s30
      %s68 = ssub.s32 %s20, %s34
      %s69 = sor.u32 %s67, %s68
      %p70 = scmp.eq.s32.totalorder %s69, 0
      %s72 = sadd.s32 %s71, 1
      %s73 = scalar_select %p70, %s71, %s72
      %p76 = pneg %p70
      %p77 = scmp.eq.s32.totalorder %s12, 7
      %p78 = por %p76, %p77
      %p79 = scmp.ne.s32.totalorder %s71, %s74
      %p80 = scmp.eq.s32.totalorder %s12, 0
      %p81 = por %p79, %p80
      %p82 = scmp.ne.s32.totalorder %s71, %s74
      %p83 = scmp.eq.s32.totalorder %s17, 7
      %p84 = por %p82, %p83
      %p85 = scmp.ne.s32.totalorder %s74, %s75
      %p86 = scmp.eq.s32.totalorder %s17, 0
      %p87 = por %p85, %p86
      %p88 = scmp.ne.s32.totalorder %s74, %s75
      %p89 = scmp.eq.s32.totalorder %s18, 7
      %p90 = por %p88, %p89
      %p92 = scmp.ne.s32.totalorder %s75, %s91
      %p93 = scmp.eq.s32.totalorder %s18, 0
      %p94 = por %p92, %p93
      %s95 = ssub.s32 %s20, %s34
      %p96 = scmp.eq.s32.totalorder %s95, 0
      %s98 = sadd.s32 %s97, 1
      %s99 = scalar_select %p96, %s97, %s98
      %p102 = pneg %p96
      %p103 = scmp.eq.s32.totalorder %s12, 7
      %p104 = por %p102, %p103
      %p105 = scmp.ne.s32.totalorder %s97, %s100
      %p106 = scmp.eq.s32.totalorder %s12, 0
      %p107 = por %p105, %p106
      %p108 = scmp.ne.s32.totalorder %s97, %s100
      %p109 = scmp.eq.s32.totalorder %s17, 7
      %p110 = por %p108, %p109
      %p111 = scmp.ne.s32.totalorder %s100, %s101
      %p112 = scmp.eq.s32.totalorder %s17, 0
      %p113 = por %p111, %p112
      %p114 = scmp.ne.s32.totalorder %s100, %s101
      %p115 = scmp.eq.s32.totalorder %s18, 7
      %p116 = por %p114, %p115
      %p118 = scmp.ne.s32.totalorder %s101, %s117
      %p119 = scmp.eq.s32.totalorder %s18, 0
      %p120 = por %p118, %p119
      %s121 = ssub.s32 %s19, %s38
      %s122 = ssub.s32 %s20, %s34
      %s123 = sor.u32 %s121, %s122
      %p124 = scmp.eq.s32.totalorder %s123, 0
      %s126 = sadd.s32 %s125, 1
      %s127 = scalar_select %p124, %s125, %s126
      %p130 = pneg %p124
      %p131 = scmp.eq.s32.totalorder %s12, 7
      %p132 = por %p130, %p131
      %p133 = scmp.ne.s32.totalorder %s125, %s128
      %p134 = scmp.eq.s32.totalorder %s12, 0
      %p135 = por %p133, %p134
      %p136 = scmp.ne.s32.totalorder %s125, %s128
      %p137 = scmp.eq.s32.totalorder %s17, 7
      %p138 = por %p136, %p137
      %p139 = scmp.ne.s32.totalorder %s128, %s129
      %p140 = scmp.eq.s32.totalorder %s17, 0
      %p141 = por %p139, %p140
      %p142 = scmp.ne.s32.totalorder %s128, %s129
      %p143 = scmp.eq.s32.totalorder %s18, 7
      %p144 = por %p142, %p143
      %p146 = scmp.ne.s32.totalorder %s129, %s145
      %p147 = scmp.eq.s32.totalorder %s18, 0
      %p148 = por %p146, %p147
      %p149 = scmp.le.s32.totalorder 1, %s12
      %p150 = scmp.lt.s32.totalorder %s12, 9
      %p151 = pnand %p149, %p150
      %p152 = pneg %p151
      // Predicated region
      $region9: #{network_forward.1} parent=5 // pred_check
        _
      $region10: #{network_forward.1} parent=5 // pred_check_branch
        %154 = sbr.rel (%p151) target = $region12
      $region11: #{network_forward.1} parent=5 // pred_region
        %s155 = ssub.s32 %s12, 1
      $region12: #{network_forward.1} parent=5 // pred_fallthru
        _
      %p156 = scmp.lt.s32.totalorder %s12, 8
      // Predicated region
      $region13: #{network_forward.1} parent=5 // pred_check
        %p157 = pneg %p156
      $region14: #{network_forward.1} parent=5 // pred_check_branch
        %159 = sbr.rel (%p157) target = $region16
      $region15: #{network_forward.1} parent=5 // pred_region
        // Predicated region
        $region17: #{network_forward.1} parent=15 // pred_check
          %p160 = pneg %p53
        $region18: #{network_forward.1} parent=15 // pred_check_branch
          %162 = sbr.rel (%p160) target = $region20
        $region19: #{network_forward.1} parent=15 // pred_region
          %s163 = sand.u32 %s43, 1
          %s164 = sand.u32 %s43, 1
          %s165 = smul.addr %s164, 1024
          %s166 = scalar_lea.vmem [#allocation3], %s165
          %s167 = smul.u32 32, %s19
          %s168 = smul.u32 4, %s21
          %s169 = smul.addr %s167, 8
          %s170 = sadd.s32 %s168, %s169
          %s171 = smul.addr %s170, 8
          %s172 = scalar_lea.vmem %s0, %s171
          // Predicated region
          $region21: #{network_forward.1} parent=19 // pred_check
            _
          $region22: #{network_forward.1} parent=19 // pred_check_branch
            %174 = sbr.rel (0) target = $region24
          $region23: #{network_forward.1} parent=19 // pred_region
            // Predicated region
            $region25: #{network_forward.1} parent=23 // pred_check
              _
            $region26: #{network_forward.1} parent=23 // pred_check_branch
              %176 = sbr.rel (0) target = $region28
            $region27: #{network_forward.1} parent=23 // pred_region
              loop: start=0, step=1, limit=1
              $region29: #{network_forward.1} parent=27 // loop_pre_header
                _
              $region30: #{network_forward.1} parent=27 // loop_header
                %s178 = sphi 0, %s182
                %p179 = scmp.ge.s32.totalorder %s178, 1
                %s183 = sphi %s172, %s172
                %s184 = sphi %s166, %s166
              $region31: #{network_forward.1} parent=27 // loop_header_branch
                %181 = sbr.rel (%p179) target = $region35
              $region32: #{network_forward.1} parent=27 // loop_body
                %v185 = vld [vmem:[%s183] sm:$0xff]
                %186 = vst [vmem:[%s184] sm:$0xff] %v185
                %v187 = vld [vmem:[%s183 + $0x8] sm:$0xff]
                %188 = vst [vmem:[%s184 + $0x8] sm:$0xff] %v187
                %v189 = vld [vmem:[%s183 + $0x10] sm:$0xff]
                %190 = vst [vmem:[%s184 + $0x10] sm:$0xff] %v189
                %v191 = vld [vmem:[%s183 + $0x18] sm:$0xff]
                %192 = vst [vmem:[%s184 + $0x18] sm:$0xff] %v191
                %v193 = vld [vmem:[%s183 + $0x40] sm:$0xff]
                %194 = vst [vmem:[%s184 + $0x20] sm:$0xff] %v193
                %v195 = vld [vmem:[%s183 + $0x48] sm:$0xff]
                %196 = vst [vmem:[%s184 + $0x28] sm:$0xff] %v195
                %v197 = vld [vmem:[%s183 + $0x50] sm:$0xff]
                %198 = vst [vmem:[%s184 + $0x30] sm:$0xff] %v197
                %v199 = vld [vmem:[%s183 + $0x58] sm:$0xff]
                %200 = vst [vmem:[%s184 + $0x38] sm:$0xff] %v199
                %v201 = vld [vmem:[%s183 + $0x80] sm:$0xff]
                %202 = vst [vmem:[%s184 + $0x40] sm:$0xff] %v201
                %v203 = vld [vmem:[%s183 + $0x88] sm:$0xff]
                %204 = vst [vmem:[%s184 + $0x48] sm:$0xff] %v203
                %v205 = vld [vmem:[%s183 + $0x90] sm:$0xff]
                %206 = vst [vmem:[%s184 + $0x50] sm:$0xff] %v205
                %v207 = vld [vmem:[%s183 + $0x98] sm:$0xff]
                %208 = vst [vmem:[%s184 + $0x58] sm:$0xff] %v207
                %v209 = vld [vmem:[%s183 + $0xc0] sm:$0xff]
                %210 = vst [vmem:[%s184 + $0x60] sm:$0xff] %v209
                %v211 = vld [vmem:[%s183 + $0xc8] sm:$0xff]
                %212 = vst [vmem:[%s184 + $0x68] sm:$0xff] %v211
                %v213 = vld [vmem:[%s183 + $0xd0] sm:$0xff]
                %214 = vst [vmem:[%s184 + $0x70] sm:$0xff] %v213
                %v215 = vld [vmem:[%s183 + $0xd8] sm:$0xff]
                %216 = vst [vmem:[%s184 + $0x78] sm:$0xff] %v215
                %v217 = vld [vmem:[%s183 + $0x100] sm:$0xff]
                %218 = vst [vmem:[%s184 + $0x80] sm:$0xff] %v217
                %v219 = vld [vmem:[%s183 + $0x108] sm:$0xff]
                %220 = vst [vmem:[%s184 + $0x88] sm:$0xff] %v219
                %v221 = vld [vmem:[%s183 + $0x110] sm:$0xff]
                %222 = vst [vmem:[%s184 + $0x90] sm:$0xff] %v221
                %v223 = vld [vmem:[%s183 + $0x118] sm:$0xff]
                %224 = vst [vmem:[%s184 + $0x98] sm:$0xff] %v223
                %v225 = vld [vmem:[%s183 + $0x140] sm:$0xff]
                %226 = vst [vmem:[%s184 + $0xa0] sm:$0xff] %v225
                %v227 = vld [vmem:[%s183 + $0x148] sm:$0xff]
                %228 = vst [vmem:[%s184 + $0xa8] sm:$0xff] %v227
                %v229 = vld [vmem:[%s183 + $0x150] sm:$0xff]
                %230 = vst [vmem:[%s184 + $0xb0] sm:$0xff] %v229
                %v231 = vld [vmem:[%s183 + $0x158] sm:$0xff]
                %232 = vst [vmem:[%s184 + $0xb8] sm:$0xff] %v231
                %v233 = vld [vmem:[%s183 + $0x180] sm:$0xff]
                %234 = vst [vmem:[%s184 + $0xc0] sm:$0xff] %v233
                %v235 = vld [vmem:[%s183 + $0x188] sm:$0xff]
                %236 = vst [vmem:[%s184 + $0xc8] sm:$0xff] %v235
                %v237 = vld [vmem:[%s183 + $0x190] sm:$0xff]
                %238 = vst [vmem:[%s184 + $0xd0] sm:$0xff] %v237
                %v239 = vld [vmem:[%s183 + $0x198] sm:$0xff]
                %240 = vst [vmem:[%s184 + $0xd8] sm:$0xff] %v239
                %v241 = vld [vmem:[%s183 + $0x1c0] sm:$0xff]
                %242 = vst [vmem:[%s184 + $0xe0] sm:$0xff] %v241
                %v243 = vld [vmem:[%s183 + $0x1c8] sm:$0xff]
                %244 = vst [vmem:[%s184 + $0xe8] sm:$0xff] %v243
                %v245 = vld [vmem:[%s183 + $0x1d0] sm:$0xff]
                %246 = vst [vmem:[%s184 + $0xf0] sm:$0xff] %v245
                %v247 = vld [vmem:[%s183 + $0x1d8] sm:$0xff]
                %248 = vst [vmem:[%s184 + $0xf8] sm:$0xff] %v247
                %v249 = vld [vmem:[%s183 + $0x200] sm:$0xff]
                %250 = vst [vmem:[%s184 + $0x100] sm:$0xff] %v249
                %v251 = vld [vmem:[%s183 + $0x208] sm:$0xff]
                %252 = vst [vmem:[%s184 + $0x108] sm:$0xff] %v251
                %v253 = vld [vmem:[%s183 + $0x210] sm:$0xff]
                %254 = vst [vmem:[%s184 + $0x110] sm:$0xff] %v253
                %v255 = vld [vmem:[%s183 + $0x218] sm:$0xff]
                %256 = vst [vmem:[%s184 + $0x118] sm:$0xff] %v255
                %v257 = vld [vmem:[%s183 + $0x240] sm:$0xff]
                %258 = vst [vmem:[%s184 + $0x120] sm:$0xff] %v257
                %v259 = vld [vmem:[%s183 + $0x248] sm:$0xff]
                %260 = vst [vmem:[%s184 + $0x128] sm:$0xff] %v259
                %v261 = vld [vmem:[%s183 + $0x250] sm:$0xff]
                %262 = vst [vmem:[%s184 + $0x130] sm:$0xff] %v261
                %v263 = vld [vmem:[%s183 + $0x258] sm:$0xff]
                %264 = vst [vmem:[%s184 + $0x138] sm:$0xff] %v263
                %v265 = vld [vmem:[%s183 + $0x280] sm:$0xff]
                %266 = vst [vmem:[%s184 + $0x140] sm:$0xff] %v265
                %v267 = vld [vmem:[%s183 + $0x288] sm:$0xff]
                %268 = vst [vmem:[%s184 + $0x148] sm:$0xff] %v267
                %v269 = vld [vmem:[%s183 + $0x290] sm:$0xff]
                %270 = vst [vmem:[%s184 + $0x150] sm:$0xff] %v269
                %v271 = vld [vmem:[%s183 + $0x298] sm:$0xff]
                %272 = vst [vmem:[%s184 + $0x158] sm:$0xff] %v271
                %v273 = vld [vmem:[%s183 + $0x2c0] sm:$0xff]
                %274 = vst [vmem:[%s184 + $0x160] sm:$0xff] %v273
                %v275 = vld [vmem:[%s183 + $0x2c8] sm:$0xff]
                %276 = vst [vmem:[%s184 + $0x168] sm:$0xff] %v275
                %v277 = vld [vmem:[%s183 + $0x2d0] sm:$0xff]
                %278 = vst [vmem:[%s184 + $0x170] sm:$0xff] %v277
                %v279 = vld [vmem:[%s183 + $0x2d8] sm:$0xff]
                %280 = vst [vmem:[%s184 + $0x178] sm:$0xff] %v279
                %v281 = vld [vmem:[%s183 + $0x300] sm:$0xff]
                %282 = vst [vmem:[%s184 + $0x180] sm:$0xff] %v281
                %v283 = vld [vmem:[%s183 + $0x308] sm:$0xff]
                %284 = vst [vmem:[%s184 + $0x188] sm:$0xff] %v283
                %v285 = vld [vmem:[%s183 + $0x310] sm:$0xff]
                %286 = vst [vmem:[%s184 + $0x190] sm:$0xff] %v285
                %v287 = vld [vmem:[%s183 + $0x318] sm:$0xff]
                %288 = vst [vmem:[%s184 + $0x198] sm:$0xff] %v287
                %v289 = vld [vmem:[%s183 + $0x340] sm:$0xff]
                %290 = vst [vmem:[%s184 + $0x1a0] sm:$0xff] %v289
                %v291 = vld [vmem:[%s183 + $0x348] sm:$0xff]
                %292 = vst [vmem:[%s184 + $0x1a8] sm:$0xff] %v291
                %v293 = vld [vmem:[%s183 + $0x350] sm:$0xff]
                %294 = vst [vmem:[%s184 + $0x1b0] sm:$0xff] %v293
                %v295 = vld [vmem:[%s183 + $0x358] sm:$0xff]
                %296 = vst [vmem:[%s184 + $0x1b8] sm:$0xff] %v295
                %v297 = vld [vmem:[%s183 + $0x380] sm:$0xff]
                %298 = vst [vmem:[%s184 + $0x1c0] sm:$0xff] %v297
                %v299 = vld [vmem:[%s183 + $0x388] sm:$0xff]
                %300 = vst [vmem:[%s184 + $0x1c8] sm:$0xff] %v299
                %v301 = vld [vmem:[%s183 + $0x390] sm:$0xff]
                %302 = vst [vmem:[%s184 + $0x1d0] sm:$0xff] %v301
                %v303 = vld [vmem:[%s183 + $0x398] sm:$0xff]
                %304 = vst [vmem:[%s184 + $0x1d8] sm:$0xff] %v303
                %v305 = vld [vmem:[%s183 + $0x3c0] sm:$0xff]
                %306 = vst [vmem:[%s184 + $0x1e0] sm:$0xff] %v305
                %v307 = vld [vmem:[%s183 + $0x3c8] sm:$0xff]
                %308 = vst [vmem:[%s184 + $0x1e8] sm:$0xff] %v307
                %v309 = vld [vmem:[%s183 + $0x3d0] sm:$0xff]
                %310 = vst [vmem:[%s184 + $0x1f0] sm:$0xff] %v309
                %v311 = vld [vmem:[%s183 + $0x3d8] sm:$0xff]
                %312 = vst [vmem:[%s184 + $0x1f8] sm:$0xff] %v311
                %v313 = vld [vmem:[%s183 + $0x400] sm:$0xff]
                %314 = vst [vmem:[%s184 + $0x200] sm:$0xff] %v313
                %v315 = vld [vmem:[%s183 + $0x408] sm:$0xff]
                %316 = vst [vmem:[%s184 + $0x208] sm:$0xff] %v315
                %v317 = vld [vmem:[%s183 + $0x410] sm:$0xff]
                %318 = vst [vmem:[%s184 + $0x210] sm:$0xff] %v317
                %v319 = vld [vmem:[%s183 + $0x418] sm:$0xff]
                %320 = vst [vmem:[%s184 + $0x218] sm:$0xff] %v319
                %v321 = vld [vmem:[%s183 + $0x440] sm:$0xff]
                %322 = vst [vmem:[%s184 + $0x220] sm:$0xff] %v321
                %v323 = vld [vmem:[%s183 + $0x448] sm:$0xff]
                %324 = vst [vmem:[%s184 + $0x228] sm:$0xff] %v323
                %v325 = vld [vmem:[%s183 + $0x450] sm:$0xff]
                %326 = vst [vmem:[%s184 + $0x230] sm:$0xff] %v325
                %v327 = vld [vmem:[%s183 + $0x458] sm:$0xff]
                %328 = vst [vmem:[%s184 + $0x238] sm:$0xff] %v327
                %v329 = vld [vmem:[%s183 + $0x480] sm:$0xff]
                %330 = vst [vmem:[%s184 + $0x240] sm:$0xff] %v329
                %v331 = vld [vmem:[%s183 + $0x488] sm:$0xff]
                %332 = vst [vmem:[%s184 + $0x248] sm:$0xff] %v331
                %v333 = vld [vmem:[%s183 + $0x490] sm:$0xff]
                %334 = vst [vmem:[%s184 + $0x250] sm:$0xff] %v333
                %v335 = vld [vmem:[%s183 + $0x498] sm:$0xff]
                %336 = vst [vmem:[%s184 + $0x258] sm:$0xff] %v335
                %v337 = vld [vmem:[%s183 + $0x4c0] sm:$0xff]
                %338 = vst [vmem:[%s184 + $0x260] sm:$0xff] %v337
                %v339 = vld [vmem:[%s183 + $0x4c8] sm:$0xff]
                %340 = vst [vmem:[%s184 + $0x268] sm:$0xff] %v339
                %v341 = vld [vmem:[%s183 + $0x4d0] sm:$0xff]
                %342 = vst [vmem:[%s184 + $0x270] sm:$0xff] %v341
                %v343 = vld [vmem:[%s183 + $0x4d8] sm:$0xff]
                %344 = vst [vmem:[%s184 + $0x278] sm:$0xff] %v343
                %v345 = vld [vmem:[%s183 + $0x500] sm:$0xff]
                %346 = vst [vmem:[%s184 + $0x280] sm:$0xff] %v345
                %v347 = vld [vmem:[%s183 + $0x508] sm:$0xff]
                %348 = vst [vmem:[%s184 + $0x288] sm:$0xff] %v347
                %v349 = vld [vmem:[%s183 + $0x510] sm:$0xff]
                %350 = vst [vmem:[%s184 + $0x290] sm:$0xff] %v349
                %v351 = vld [vmem:[%s183 + $0x518] sm:$0xff]
                %352 = vst [vmem:[%s184 + $0x298] sm:$0xff] %v351
                %v353 = vld [vmem:[%s183 + $0x540] sm:$0xff]
                %354 = vst [vmem:[%s184 + $0x2a0] sm:$0xff] %v353
                %v355 = vld [vmem:[%s183 + $0x548] sm:$0xff]
                %356 = vst [vmem:[%s184 + $0x2a8] sm:$0xff] %v355
                %v357 = vld [vmem:[%s183 + $0x550] sm:$0xff]
                %358 = vst [vmem:[%s184 + $0x2b0] sm:$0xff] %v357
                %v359 = vld [vmem:[%s183 + $0x558] sm:$0xff]
                %360 = vst [vmem:[%s184 + $0x2b8] sm:$0xff] %v359
                %v361 = vld [vmem:[%s183 + $0x580] sm:$0xff]
                %362 = vst [vmem:[%s184 + $0x2c0] sm:$0xff] %v361
                %v363 = vld [vmem:[%s183 + $0x588] sm:$0xff]
                %364 = vst [vmem:[%s184 + $0x2c8] sm:$0xff] %v363
                %v365 = vld [vmem:[%s183 + $0x590] sm:$0xff]
                %366 = vst [vmem:[%s184 + $0x2d0] sm:$0xff] %v365
                %v367 = vld [vmem:[%s183 + $0x598] sm:$0xff]
                %368 = vst [vmem:[%s184 + $0x2d8] sm:$0xff] %v367
                %v369 = vld [vmem:[%s183 + $0x5c0] sm:$0xff]
                %370 = vst [vmem:[%s184 + $0x2e0] sm:$0xff] %v369
                %v371 = vld [vmem:[%s183 + $0x5c8] sm:$0xff]
                %372 = vst [vmem:[%s184 + $0x2e8] sm:$0xff] %v371
                %v373 = vld [vmem:[%s183 + $0x5d0] sm:$0xff]
                %374 = vst [vmem:[%s184 + $0x2f0] sm:$0xff] %v373
                %v375 = vld [vmem:[%s183 + $0x5d8] sm:$0xff]
                %376 = vst [vmem:[%s184 + $0x2f8] sm:$0xff] %v375
                %v377 = vld [vmem:[%s183 + $0x600] sm:$0xff]
                %378 = vst [vmem:[%s184 + $0x300] sm:$0xff] %v377
                %v379 = vld [vmem:[%s183 + $0x608] sm:$0xff]
                %380 = vst [vmem:[%s184 + $0x308] sm:$0xff] %v379
                %v381 = vld [vmem:[%s183 + $0x610] sm:$0xff]
                %382 = vst [vmem:[%s184 + $0x310] sm:$0xff] %v381
                %v383 = vld [vmem:[%s183 + $0x618] sm:$0xff]
                %384 = vst [vmem:[%s184 + $0x318] sm:$0xff] %v383
                %v385 = vld [vmem:[%s183 + $0x640] sm:$0xff]
                %386 = vst [vmem:[%s184 + $0x320] sm:$0xff] %v385
                %v387 = vld [vmem:[%s183 + $0x648] sm:$0xff]
                %388 = vst [vmem:[%s184 + $0x328] sm:$0xff] %v387
                %v389 = vld [vmem:[%s183 + $0x650] sm:$0xff]
                %390 = vst [vmem:[%s184 + $0x330] sm:$0xff] %v389
                %v391 = vld [vmem:[%s183 + $0x658] sm:$0xff]
                %392 = vst [vmem:[%s184 + $0x338] sm:$0xff] %v391
                %v393 = vld [vmem:[%s183 + $0x680] sm:$0xff]
                %394 = vst [vmem:[%s184 + $0x340] sm:$0xff] %v393
                %v395 = vld [vmem:[%s183 + $0x688] sm:$0xff]
                %396 = vst [vmem:[%s184 + $0x348] sm:$0xff] %v395
                %v397 = vld [vmem:[%s183 + $0x690] sm:$0xff]
                %398 = vst [vmem:[%s184 + $0x350] sm:$0xff] %v397
                %v399 = vld [vmem:[%s183 + $0x698] sm:$0xff]
                %400 = vst [vmem:[%s184 + $0x358] sm:$0xff] %v399
                %v401 = vld [vmem:[%s183 + $0x6c0] sm:$0xff]
                %402 = vst [vmem:[%s184 + $0x360] sm:$0xff] %v401
                %v403 = vld [vmem:[%s183 + $0x6c8] sm:$0xff]
                %404 = vst [vmem:[%s184 + $0x368] sm:$0xff] %v403
                %v405 = vld [vmem:[%s183 + $0x6d0] sm:$0xff]
                %406 = vst [vmem:[%s184 + $0x370] sm:$0xff] %v405
                %v407 = vld [vmem:[%s183 + $0x6d8] sm:$0xff]
                %408 = vst [vmem:[%s184 + $0x378] sm:$0xff] %v407
                %v409 = vld [vmem:[%s183 + $0x700] sm:$0xff]
                %410 = vst [vmem:[%s184 + $0x380] sm:$0xff] %v409
                %v411 = vld [vmem:[%s183 + $0x708] sm:$0xff]
                %412 = vst [vmem:[%s184 + $0x388] sm:$0xff] %v411
                %v413 = vld [vmem:[%s183 + $0x710] sm:$0xff]
                %414 = vst [vmem:[%s184 + $0x390] sm:$0xff] %v413
                %v415 = vld [vmem:[%s183 + $0x718] sm:$0xff]
                %416 = vst [vmem:[%s184 + $0x398] sm:$0xff] %v415
                %v417 = vld [vmem:[%s183 + $0x740] sm:$0xff]
                %418 = vst [vmem:[%s184 + $0x3a0] sm:$0xff] %v417
                %v419 = vld [vmem:[%s183 + $0x748] sm:$0xff]
                %420 = vst [vmem:[%s184 + $0x3a8] sm:$0xff] %v419
                %v421 = vld [vmem:[%s183 + $0x750] sm:$0xff]
                %422 = vst [vmem:[%s184 + $0x3b0] sm:$0xff] %v421
                %v423 = vld [vmem:[%s183 + $0x758] sm:$0xff]
                %424 = vst [vmem:[%s184 + $0x3b8] sm:$0xff] %v423
                %v425 = vld [vmem:[%s183 + $0x780] sm:$0xff]
                %426 = vst [vmem:[%s184 + $0x3c0] sm:$0xff] %v425
                %v427 = vld [vmem:[%s183 + $0x788] sm:$0xff]
                %428 = vst [vmem:[%s184 + $0x3c8] sm:$0xff] %v427
                %v429 = vld [vmem:[%s183 + $0x790] sm:$0xff]
                %430 = vst [vmem:[%s184 + $0x3d0] sm:$0xff] %v429
                %v431 = vld [vmem:[%s183 + $0x798] sm:$0xff]
                %432 = vst [vmem:[%s184 + $0x3d8] sm:$0xff] %v431
                %v433 = vld [vmem:[%s183 + $0x7c0] sm:$0xff]
                %434 = vst [vmem:[%s184 + $0x3e0] sm:$0xff] %v433
                %v435 = vld [vmem:[%s183 + $0x7c8] sm:$0xff]
                %436 = vst [vmem:[%s184 + $0x3e8] sm:$0xff] %v435
                %v437 = vld [vmem:[%s183 + $0x7d0] sm:$0xff]
                %438 = vst [vmem:[%s184 + $0x3f0] sm:$0xff] %v437
                %v439 = vld [vmem:[%s183 + $0x7d8] sm:$0xff]
                %440 = vst [vmem:[%s184 + $0x3f8] sm:$0xff] %v439
              $region33: #{network_forward.1} parent=27 // loop_footer
                %s182 = sadd.s32 1, %s178
              $region34: #{network_forward.1} parent=27 // loop_footer_branch
                %177 = sbr.rel target = $region30
              $region35: #{network_forward.1} parent=27 // loop_exit
                _
            $region28: #{network_forward.1} parent=23 // pred_fallthru
              _
            // Predicated region
            $region36: #{network_forward.1} parent=23 // pred_check
              _
            $region37: #{network_forward.1} parent=23 // pred_check_branch
              %442 = sbr.rel target = $region39
            $region38: #{network_forward.1} parent=23 // pred_region
              _
            $region39: #{network_forward.1} parent=23 // pred_fallthru
              _
          $region24: #{network_forward.1} parent=19 // pred_fallthru
            _
          %443 = vnop
        $region20: #{network_forward.1} parent=15 // pred_fallthru
          _
        // Predicated region
        $region40: #{network_forward.1} parent=15 // pred_check
          %p444 = pneg %p81
        $region41: #{network_forward.1} parent=15 // pred_check_branch
          %446 = sbr.rel (%p444) target = $region43
        $region42: #{network_forward.1} parent=15 // pred_region
          %s447 = sand.u32 %s71, 1
          %s448 = sand.u32 %s71, 1
          %s449 = smul.addr %s448, 512
          %s450 = scalar_lea.vmem [#allocation4], %s449
          %s451 = smul.u32 64, %s21
          %s452 = smul.u32 2, %s20
          %s453 = smul.addr %s451, 4
          %s454 = sadd.s32 %s452, %s453
          %s455 = smul.addr %s454, 4
          %s456 = scalar_lea.vmem %s1, %s455
          // Predicated region
          $region44: #{network_forward.1} parent=42 // pred_check
            _
          $region45: #{network_forward.1} parent=42 // pred_check_branch
            %458 = sbr.rel (0) target = $region47
          $region46: #{network_forward.1} parent=42 // pred_region
            // Predicated region
            $region48: #{network_forward.1} parent=46 // pred_check
              _
            $region49: #{network_forward.1} parent=46 // pred_check_branch
              %460 = sbr.rel (0) target = $region51
            $region50: #{network_forward.1} parent=46 // pred_region
              // Predicated region
              $region63: #{network_forward.1} parent=50 // pred_check
                _
              $region64: #{network_forward.1} parent=50 // pred_check_branch
                %601 = sbr.rel (0) target = $region66
              $region65: #{network_forward.1} parent=50 // pred_region
                loop: start=0, step=1, limit=1
                $region67: #{network_forward.1} parent=65 // loop_pre_header
                  _
                $region68: #{network_forward.1} parent=65 // loop_header
                  %s603 = sphi 0, %s607
                  %p604 = scmp.ge.s32.totalorder %s603, 1
                  %s608 = sphi %s456, %s456
                  %s609 = sphi %s450, %s450
                $region69: #{network_forward.1} parent=65 // loop_header_branch
                  %606 = sbr.rel (%p604) target = $region73
                $region70: #{network_forward.1} parent=65 // loop_body
                  %v610 = vld [vmem:[%s608] sm:$0xff]
                  %611 = vst [vmem:[%s609] sm:$0xff] %v610
                  %v612 = vld [vmem:[%s608 + $0x10] sm:$0xff]
                  %613 = vst [vmem:[%s609 + $0x8] sm:$0xff] %v612
                  %v614 = vld [vmem:[%s608 + $0x20] sm:$0xff]
                  %615 = vst [vmem:[%s609 + $0x10] sm:$0xff] %v614
                  %v616 = vld [vmem:[%s608 + $0x30] sm:$0xff]
                  %617 = vst [vmem:[%s609 + $0x18] sm:$0xff] %v616
                  %v618 = vld [vmem:[%s608 + $0x40] sm:$0xff]
                  %619 = vst [vmem:[%s609 + $0x20] sm:$0xff] %v618
                  %v620 = vld [vmem:[%s608 + $0x50] sm:$0xff]
                  %621 = vst [vmem:[%s609 + $0x28] sm:$0xff] %v620
                  %v622 = vld [vmem:[%s608 + $0x60] sm:$0xff]
                  %623 = vst [vmem:[%s609 + $0x30] sm:$0xff] %v622
                  %v624 = vld [vmem:[%s608 + $0x70] sm:$0xff]
                  %625 = vst [vmem:[%s609 + $0x38] sm:$0xff] %v624
                  %v626 = vld [vmem:[%s608 + $0x80] sm:$0xff]
                  %627 = vst [vmem:[%s609 + $0x40] sm:$0xff] %v626
                  %v628 = vld [vmem:[%s608 + $0x90] sm:$0xff]
                  %629 = vst [vmem:[%s609 + $0x48] sm:$0xff] %v628
                  %v630 = vld [vmem:[%s608 + $0xa0] sm:$0xff]
                  %631 = vst [vmem:[%s609 + $0x50] sm:$0xff] %v630
                  %v632 = vld [vmem:[%s608 + $0xb0] sm:$0xff]
                  %633 = vst [vmem:[%s609 + $0x58] sm:$0xff] %v632
                  %v634 = vld [vmem:[%s608 + $0xc0] sm:$0xff]
                  %635 = vst [vmem:[%s609 + $0x60] sm:$0xff] %v634
                  %v636 = vld [vmem:[%s608 + $0xd0] sm:$0xff]
                  %637 = vst [vmem:[%s609 + $0x68] sm:$0xff] %v636
                  %v638 = vld [vmem:[%s608 + $0xe0] sm:$0xff]
                  %639 = vst [vmem:[%s609 + $0x70] sm:$0xff] %v638
                  %v640 = vld [vmem:[%s608 + $0xf0] sm:$0xff]
                  %641 = vst [vmem:[%s609 + $0x78] sm:$0xff] %v640
                  %v642 = vld [vmem:[%s608 + $0x100] sm:$0xff]
                  %643 = vst [vmem:[%s609 + $0x80] sm:$0xff] %v642
                  %v644 = vld [vmem:[%s608 + $0x110] sm:$0xff]
                  %645 = vst [vmem:[%s609 + $0x88] sm:$0xff] %v644
                  %v646 = vld [vmem:[%s608 + $0x120] sm:$0xff]
                  %647 = vst [vmem:[%s609 + $0x90] sm:$0xff] %v646
                  %v648 = vld [vmem:[%s608 + $0x130] sm:$0xff]
                  %649 = vst [vmem:[%s609 + $0x98] sm:$0xff] %v648
                  %v650 = vld [vmem:[%s608 + $0x140] sm:$0xff]
                  %651 = vst [vmem:[%s609 + $0xa0] sm:$0xff] %v650
                  %v652 = vld [vmem:[%s608 + $0x150] sm:$0xff]
                  %653 = vst [vmem:[%s609 + $0xa8] sm:$0xff] %v652
                  %v654 = vld [vmem:[%s608 + $0x160] sm:$0xff]
                  %655 = vst [vmem:[%s609 + $0xb0] sm:$0xff] %v654
                  %v656 = vld [vmem:[%s608 + $0x170] sm:$0xff]
                  %657 = vst [vmem:[%s609 + $0xb8] sm:$0xff] %v656
                  %v658 = vld [vmem:[%s608 + $0x180] sm:$0xff]
                  %659 = vst [vmem:[%s609 + $0xc0] sm:$0xff] %v658
                  %v660 = vld [vmem:[%s608 + $0x190] sm:$0xff]
                  %661 = vst [vmem:[%s609 + $0xc8] sm:$0xff] %v660
                  %v662 = vld [vmem:[%s608 + $0x1a0] sm:$0xff]
                  %663 = vst [vmem:[%s609 + $0xd0] sm:$0xff] %v662
                  %v664 = vld [vmem:[%s608 + $0x1b0] sm:$0xff]
                  %665 = vst [vmem:[%s609 + $0xd8] sm:$0xff] %v664
                  %v666 = vld [vmem:[%s608 + $0x1c0] sm:$0xff]
                  %667 = vst [vmem:[%s609 + $0xe0] sm:$0xff] %v666
                  %v668 = vld [vmem:[%s608 + $0x1d0] sm:$0xff]
                  %669 = vst [vmem:[%s609 + $0xe8] sm:$0xff] %v668
                  %v670 = vld [vmem:[%s608 + $0x1e0] sm:$0xff]
                  %671 = vst [vmem:[%s609 + $0xf0] sm:$0xff] %v670
                  %v672 = vld [vmem:[%s608 + $0x1f0] sm:$0xff]
                  %673 = vst [vmem:[%s609 + $0xf8] sm:$0xff] %v672
                  %v674 = vld [vmem:[%s608 + $0x200] sm:$0xff]
                  %675 = vst [vmem:[%s609 + $0x100] sm:$0xff] %v674
                  %v676 = vld [vmem:[%s608 + $0x210] sm:$0xff]
                  %677 = vst [vmem:[%s609 + $0x108] sm:$0xff] %v676
                  %v678 = vld [vmem:[%s608 + $0x220] sm:$0xff]
                  %679 = vst [vmem:[%s609 + $0x110] sm:$0xff] %v678
                  %v680 = vld [vmem:[%s608 + $0x230] sm:$0xff]
                  %681 = vst [vmem:[%s609 + $0x118] sm:$0xff] %v680
                  %v682 = vld [vmem:[%s608 + $0x240] sm:$0xff]
                  %683 = vst [vmem:[%s609 + $0x120] sm:$0xff] %v682
                  %v684 = vld [vmem:[%s608 + $0x250] sm:$0xff]
                  %685 = vst [vmem:[%s609 + $0x128] sm:$0xff] %v684
                  %v686 = vld [vmem:[%s608 + $0x260] sm:$0xff]
                  %687 = vst [vmem:[%s609 + $0x130] sm:$0xff] %v686
                  %v688 = vld [vmem:[%s608 + $0x270] sm:$0xff]
                  %689 = vst [vmem:[%s609 + $0x138] sm:$0xff] %v688
                  %v690 = vld [vmem:[%s608 + $0x280] sm:$0xff]
                  %691 = vst [vmem:[%s609 + $0x140] sm:$0xff] %v690
                  %v692 = vld [vmem:[%s608 + $0x290] sm:$0xff]
                  %693 = vst [vmem:[%s609 + $0x148] sm:$0xff] %v692
                  %v694 = vld [vmem:[%s608 + $0x2a0] sm:$0xff]
                  %695 = vst [vmem:[%s609 + $0x150] sm:$0xff] %v694
                  %v696 = vld [vmem:[%s608 + $0x2b0] sm:$0xff]
                  %697 = vst [vmem:[%s609 + $0x158] sm:$0xff] %v696
                  %v698 = vld [vmem:[%s608 + $0x2c0] sm:$0xff]
                  %699 = vst [vmem:[%s609 + $0x160] sm:$0xff] %v698
                  %v700 = vld [vmem:[%s608 + $0x2d0] sm:$0xff]
                  %701 = vst [vmem:[%s609 + $0x168] sm:$0xff] %v700
                  %v702 = vld [vmem:[%s608 + $0x2e0] sm:$0xff]
                  %703 = vst [vmem:[%s609 + $0x170] sm:$0xff] %v702
                  %v704 = vld [vmem:[%s608 + $0x2f0] sm:$0xff]
                  %705 = vst [vmem:[%s609 + $0x178] sm:$0xff] %v704
                  %v706 = vld [vmem:[%s608 + $0x300] sm:$0xff]
                  %707 = vst [vmem:[%s609 + $0x180] sm:$0xff] %v706
                  %v708 = vld [vmem:[%s608 + $0x310] sm:$0xff]
                  %709 = vst [vmem:[%s609 + $0x188] sm:$0xff] %v708
                  %v710 = vld [vmem:[%s608 + $0x320] sm:$0xff]
                  %711 = vst [vmem:[%s609 + $0x190] sm:$0xff] %v710
                  %v712 = vld [vmem:[%s608 + $0x330] sm:$0xff]
                  %713 = vst [vmem:[%s609 + $0x198] sm:$0xff] %v712
                  %v714 = vld [vmem:[%s608 + $0x340] sm:$0xff]
                  %715 = vst [vmem:[%s609 + $0x1a0] sm:$0xff] %v714
                  %v716 = vld [vmem:[%s608 + $0x350] sm:$0xff]
                  %717 = vst [vmem:[%s609 + $0x1a8] sm:$0xff] %v716
                  %v718 = vld [vmem:[%s608 + $0x360] sm:$0xff]
                  %719 = vst [vmem:[%s609 + $0x1b0] sm:$0xff] %v718
                  %v720 = vld [vmem:[%s608 + $0x370] sm:$0xff]
                  %721 = vst [vmem:[%s609 + $0x1b8] sm:$0xff] %v720
                  %v722 = vld [vmem:[%s608 + $0x380] sm:$0xff]
                  %723 = vst [vmem:[%s609 + $0x1c0] sm:$0xff] %v722
                  %v724 = vld [vmem:[%s608 + $0x390] sm:$0xff]
                  %725 = vst [vmem:[%s609 + $0x1c8] sm:$0xff] %v724
                  %v726 = vld [vmem:[%s608 + $0x3a0] sm:$0xff]
                  %727 = vst [vmem:[%s609 + $0x1d0] sm:$0xff] %v726
                  %v728 = vld [vmem:[%s608 + $0x3b0] sm:$0xff]
                  %729 = vst [vmem:[%s609 + $0x1d8] sm:$0xff] %v728
                  %v730 = vld [vmem:[%s608 + $0x3c0] sm:$0xff]
                  %731 = vst [vmem:[%s609 + $0x1e0] sm:$0xff] %v730
                  %v732 = vld [vmem:[%s608 + $0x3d0] sm:$0xff]
                  %733 = vst [vmem:[%s609 + $0x1e8] sm:$0xff] %v732
                  %v734 = vld [vmem:[%s608 + $0x3e0] sm:$0xff]
                  %735 = vst [vmem:[%s609 + $0x1f0] sm:$0xff] %v734
                  %v736 = vld [vmem:[%s608 + $0x3f0] sm:$0xff]
                  %737 = vst [vmem:[%s609 + $0x1f8] sm:$0xff] %v736
                $region71: #{network_forward.1} parent=65 // loop_footer
                  %s607 = sadd.s32 1, %s603
                $region72: #{network_forward.1} parent=65 // loop_footer_branch
                  %602 = sbr.rel target = $region68
                $region73: #{network_forward.1} parent=65 // loop_exit
                  _
              $region66: #{network_forward.1} parent=50 // pred_fallthru
                _
              // Predicated region
              $region74: #{network_forward.1} parent=50 // pred_check
                _
              $region75: #{network_forward.1} parent=50 // pred_check_branch
                %739 = sbr.rel target = $region77
              $region76: #{network_forward.1} parent=50 // pred_region
                _
              $region77: #{network_forward.1} parent=50 // pred_fallthru
                _
            $region51: #{network_forward.1} parent=46 // pred_fallthru
              _
            // Predicated region
            $region52: #{network_forward.1} parent=46 // pred_check
              _
            $region53: #{network_forward.1} parent=46 // pred_check_branch
              %462 = sbr.rel target = $region55
            $region54: #{network_forward.1} parent=46 // pred_region
              loop: start=0, step=1, limit=1
              $region56: #{network_forward.1} parent=54 // loop_pre_header
                _
              $region57: #{network_forward.1} parent=54 // loop_header
                %s465 = sphi 0, %s469
                %p466 = scmp.ge.s32.totalorder %s465, 1
                %s470 = sphi %s456, %s456
                %s471 = sphi %s450, %s450
              $region58: #{network_forward.1} parent=54 // loop_header_branch
                %468 = sbr.rel (%p466) target = $region62
              $region59: #{network_forward.1} parent=54 // loop_body
                %v472 = vld [vmem:[%s470] sm:$0xff]
                %473 = vst [vmem:[%s471] sm:$0xff] %v472
                %v474 = vld [vmem:[%s470 + $0x10] sm:$0xff]
                %475 = vst [vmem:[%s471 + $0x8] sm:$0xff] %v474
                %v476 = vld [vmem:[%s470 + $0x20] sm:$0xff]
                %477 = vst [vmem:[%s471 + $0x10] sm:$0xff] %v476
                %v478 = vld [vmem:[%s470 + $0x30] sm:$0xff]
                %479 = vst [vmem:[%s471 + $0x18] sm:$0xff] %v478
                %v480 = vld [vmem:[%s470 + $0x40] sm:$0xff]
                %481 = vst [vmem:[%s471 + $0x20] sm:$0xff] %v480
                %v482 = vld [vmem:[%s470 + $0x50] sm:$0xff]
                %483 = vst [vmem:[%s471 + $0x28] sm:$0xff] %v482
                %v484 = vld [vmem:[%s470 + $0x60] sm:$0xff]
                %485 = vst [vmem:[%s471 + $0x30] sm:$0xff] %v484
                %v486 = vld [vmem:[%s470 + $0x70] sm:$0xff]
                %487 = vst [vmem:[%s471 + $0x38] sm:$0xff] %v486
                %v488 = vld [vmem:[%s470 + $0x80] sm:$0xff]
                %489 = vst [vmem:[%s471 + $0x40] sm:$0xff] %v488
                %v490 = vld [vmem:[%s470 + $0x90] sm:$0xff]
                %491 = vst [vmem:[%s471 + $0x48] sm:$0xff] %v490
                %v492 = vld [vmem:[%s470 + $0xa0] sm:$0xff]
                %493 = vst [vmem:[%s471 + $0x50] sm:$0xff] %v492
                %v494 = vld [vmem:[%s470 + $0xb0] sm:$0xff]
                %495 = vst [vmem:[%s471 + $0x58] sm:$0xff] %v494
                %v496 = vld [vmem:[%s470 + $0xc0] sm:$0xff]
                %497 = vst [vmem:[%s471 + $0x60] sm:$0xff] %v496
                %v498 = vld [vmem:[%s470 + $0xd0] sm:$0xff]
                %499 = vst [vmem:[%s471 + $0x68] sm:$0xff] %v498
                %v500 = vld [vmem:[%s470 + $0xe0] sm:$0xff]
                %501 = vst [vmem:[%s471 + $0x70] sm:$0xff] %v500
                %v502 = vld [vmem:[%s470 + $0xf0] sm:$0xff]
                %503 = vst [vmem:[%s471 + $0x78] sm:$0xff] %v502
                %v504 = vld [vmem:[%s470 + $0x100] sm:$0xff]
                %505 = vst [vmem:[%s471 + $0x80] sm:$0xff] %v504
                %v506 = vld [vmem:[%s470 + $0x110] sm:$0xff]
                %507 = vst [vmem:[%s471 + $0x88] sm:$0xff] %v506
                %v508 = vld [vmem:[%s470 + $0x120] sm:$0xff]
                %509 = vst [vmem:[%s471 + $0x90] sm:$0xff] %v508
                %v510 = vld [vmem:[%s470 + $0x130] sm:$0xff]
                %511 = vst [vmem:[%s471 + $0x98] sm:$0xff] %v510
                %v512 = vld [vmem:[%s470 + $0x140] sm:$0xff]
                %513 = vst [vmem:[%s471 + $0xa0] sm:$0xff] %v512
                %v514 = vld [vmem:[%s470 + $0x150] sm:$0xff]
                %515 = vst [vmem:[%s471 + $0xa8] sm:$0xff] %v514
                %v516 = vld [vmem:[%s470 + $0x160] sm:$0xff]
                %517 = vst [vmem:[%s471 + $0xb0] sm:$0xff] %v516
                %v518 = vld [vmem:[%s470 + $0x170] sm:$0xff]
                %519 = vst [vmem:[%s471 + $0xb8] sm:$0xff] %v518
                %v520 = vld [vmem:[%s470 + $0x180] sm:$0xff]
                %521 = vst [vmem:[%s471 + $0xc0] sm:$0xff] %v520
                %v522 = vld [vmem:[%s470 + $0x190] sm:$0xff]
                %523 = vst [vmem:[%s471 + $0xc8] sm:$0xff] %v522
                %v524 = vld [vmem:[%s470 + $0x1a0] sm:$0xff]
                %525 = vst [vmem:[%s471 + $0xd0] sm:$0xff] %v524
                %v526 = vld [vmem:[%s470 + $0x1b0] sm:$0xff]
                %527 = vst [vmem:[%s471 + $0xd8] sm:$0xff] %v526
                %v528 = vld [vmem:[%s470 + $0x1c0] sm:$0xff]
                %529 = vst [vmem:[%s471 + $0xe0] sm:$0xff] %v528
                %v530 = vld [vmem:[%s470 + $0x1d0] sm:$0xff]
                %531 = vst [vmem:[%s471 + $0xe8] sm:$0xff] %v530
                %v532 = vld [vmem:[%s470 + $0x1e0] sm:$0xff]
                %533 = vst [vmem:[%s471 + $0xf0] sm:$0xff] %v532
                %v534 = vld [vmem:[%s470 + $0x1f0] sm:$0xff]
                %535 = vst [vmem:[%s471 + $0xf8] sm:$0xff] %v534
                %v536 = vld [vmem:[%s470 + $0x200] sm:$0xff]
                %537 = vst [vmem:[%s471 + $0x100] sm:$0xff] %v536
                %v538 = vld [vmem:[%s470 + $0x210] sm:$0xff]
                %539 = vst [vmem:[%s471 + $0x108] sm:$0xff] %v538
                %v540 = vld [vmem:[%s470 + $0x220] sm:$0xff]
                %541 = vst [vmem:[%s471 + $0x110] sm:$0xff] %v540
                %v542 = vld [vmem:[%s470 + $0x230] sm:$0xff]
                %543 = vst [vmem:[%s471 + $0x118] sm:$0xff] %v542
                %v544 = vld [vmem:[%s470 + $0x240] sm:$0xff]
                %545 = vst [vmem:[%s471 + $0x120] sm:$0xff] %v544
                %v546 = vld [vmem:[%s470 + $0x250] sm:$0xff]
                %547 = vst [vmem:[%s471 + $0x128] sm:$0xff] %v546
                %v548 = vld [vmem:[%s470 + $0x260] sm:$0xff]
                %549 = vst [vmem:[%s471 + $0x130] sm:$0xff] %v548
                %v550 = vld [vmem:[%s470 + $0x270] sm:$0xff]
                %551 = vst [vmem:[%s471 + $0x138] sm:$0xff] %v550
                %v552 = vld [vmem:[%s470 + $0x280] sm:$0xff]
                %553 = vst [vmem:[%s471 + $0x140] sm:$0xff] %v552
                %v554 = vld [vmem:[%s470 + $0x290] sm:$0xff]
                %555 = vst [vmem:[%s471 + $0x148] sm:$0xff] %v554
                %v556 = vld [vmem:[%s470 + $0x2a0] sm:$0xff]
                %557 = vst [vmem:[%s471 + $0x150] sm:$0xff] %v556
                %v558 = vld [vmem:[%s470 + $0x2b0] sm:$0xff]
                %559 = vst [vmem:[%s471 + $0x158] sm:$0xff] %v558
                %v560 = vld [vmem:[%s470 + $0x2c0] sm:$0xff]
                %561 = vst [vmem:[%s471 + $0x160] sm:$0xff] %v560
                %v562 = vld [vmem:[%s470 + $0x2d0] sm:$0xff]
                %563 = vst [vmem:[%s471 + $0x168] sm:$0xff] %v562
                %v564 = vld [vmem:[%s470 + $0x2e0] sm:$0xff]
                %565 = vst [vmem:[%s471 + $0x170] sm:$0xff] %v564
                %v566 = vld [vmem:[%s470 + $0x2f0] sm:$0xff]
                %567 = vst [vmem:[%s471 + $0x178] sm:$0xff] %v566
                %v568 = vld [vmem:[%s470 + $0x300] sm:$0xff]
                %569 = vst [vmem:[%s471 + $0x180] sm:$0xff] %v568
                %v570 = vld [vmem:[%s470 + $0x310] sm:$0xff]
                %571 = vst [vmem:[%s471 + $0x188] sm:$0xff] %v570
                %v572 = vld [vmem:[%s470 + $0x320] sm:$0xff]
                %573 = vst [vmem:[%s471 + $0x190] sm:$0xff] %v572
                %v574 = vld [vmem:[%s470 + $0x330] sm:$0xff]
                %575 = vst [vmem:[%s471 + $0x198] sm:$0xff] %v574
                %v576 = vld [vmem:[%s470 + $0x340] sm:$0xff]
                %577 = vst [vmem:[%s471 + $0x1a0] sm:$0xff] %v576
                %v578 = vld [vmem:[%s470 + $0x350] sm:$0xff]
                %579 = vst [vmem:[%s471 + $0x1a8] sm:$0xff] %v578
                %v580 = vld [vmem:[%s470 + $0x360] sm:$0xff]
                %581 = vst [vmem:[%s471 + $0x1b0] sm:$0xff] %v580
                %v582 = vld [vmem:[%s470 + $0x370] sm:$0xff]
                %583 = vst [vmem:[%s471 + $0x1b8] sm:$0xff] %v582
                %v584 = vld [vmem:[%s470 + $0x380] sm:$0xff]
                %585 = vst [vmem:[%s471 + $0x1c0] sm:$0xff] %v584
                %v586 = vld [vmem:[%s470 + $0x390] sm:$0xff]
                %587 = vst [vmem:[%s471 + $0x1c8] sm:$0xff] %v586
                %v588 = vld [vmem:[%s470 + $0x3a0] sm:$0xff]
                %589 = vst [vmem:[%s471 + $0x1d0] sm:$0xff] %v588
                %v590 = vld [vmem:[%s470 + $0x3b0] sm:$0xff]
                %591 = vst [vmem:[%s471 + $0x1d8] sm:$0xff] %v590
                %v592 = vld [vmem:[%s470 + $0x3c0] sm:$0xff]
                %593 = vst [vmem:[%s471 + $0x1e0] sm:$0xff] %v592
                %v594 = vld [vmem:[%s470 + $0x3d0] sm:$0xff]
                %595 = vst [vmem:[%s471 + $0x1e8] sm:$0xff] %v594
                %v596 = vld [vmem:[%s470 + $0x3e0] sm:$0xff]
                %597 = vst [vmem:[%s471 + $0x1f0] sm:$0xff] %v596
                %v598 = vld [vmem:[%s470 + $0x3f0] sm:$0xff]
                %599 = vst [vmem:[%s471 + $0x1f8] sm:$0xff] %v598
              $region60: #{network_forward.1} parent=54 // loop_footer
                %s469 = sadd.s32 1, %s465
              $region61: #{network_forward.1} parent=54 // loop_footer_branch
                %464 = sbr.rel target = $region57
              $region62: #{network_forward.1} parent=54 // loop_exit
                _
            $region55: #{network_forward.1} parent=46 // pred_fallthru
              _
          $region47: #{network_forward.1} parent=42 // pred_fallthru
            _
          %740 = vnop
        $region43: #{network_forward.1} parent=15 // pred_fallthru
          _
        // Predicated region
        $region78: #{network_forward.1} parent=15 // pred_check
          %p741 = pneg %p107
        $region79: #{network_forward.1} parent=15 // pred_check_branch
          %743 = sbr.rel (%p741) target = $region81
        $region80: #{network_forward.1} parent=15 // pred_region
          %s744 = smul.u32 2, %s20
          %p745 = scmp.lt.s32.totalorder %s744, 3
          %s746 = scalar_select %p745, %s744, 3
          %s747 = scalar_lea.vmem %s2, %s746
          %s748 = smul.u32 2, %s20
        $region81: #{network_forward.1} parent=15 // pred_fallthru
          _
      $region16: #{network_forward.1} parent=5 // pred_fallthru
        _
      %p749 = scmp.le.s32.totalorder 1, %s12
      %p750 = scmp.lt.s32.totalorder %s12, 9
      %p751 = pnand %p749, %p750
      %p752 = pneg %p751
      // Predicated region
      $region82: #{network_forward.1} parent=5 // pred_check
        _
      $region83: #{network_forward.1} parent=5 // pred_check_branch
        %754 = sbr.rel (%p751) target = $region85
      $region84: #{network_forward.1} parent=5 // pred_region
        %s755 = ssub.s32 %s12, 1
        %s756 = sand.u32 %s46, 1
        %s757 = sand.u32 %s46, 1
        %s758 = smul.addr %s757, 1024
        %s759 = scalar_lea.vmem [#allocation3], %s758
        // Predicated region
        $region86: #{network_forward.1} parent=84 // pred_check
          %p760 = pneg %p59
        $region87: #{network_forward.1} parent=84 // pred_check_branch
          %762 = sbr.rel (%p760) target = $region89
        $region88: #{network_forward.1} parent=84 // pred_region
          _
        $region89: #{network_forward.1} parent=84 // pred_fallthru
          _
        %s763 = sand.u32 %s74, 1
        %s764 = sand.u32 %s74, 1
        %s765 = smul.addr %s764, 512
        %s766 = scalar_lea.vmem [#allocation4], %s765
        // Predicated region
        $region90: #{network_forward.1} parent=84 // pred_check
          %p767 = pneg %p87
        $region91: #{network_forward.1} parent=84 // pred_check_branch
          %769 = sbr.rel (%p767) target = $region93
        $region92: #{network_forward.1} parent=84 // pred_region
          _
        $region93: #{network_forward.1} parent=84 // pred_fallthru
          _
        %s770 = sand.u32 %s46, 1
        %s771 = sand.u32 %s46, 1
        %s772 = smul.addr %s771, 1024
        %s773 = scalar_lea.vmem [#allocation3], %s772
        %p774 = pneg %p59
        %p775 = pneg %p56
        %s776 = sand.u32 %s74, 1
        %s777 = sand.u32 %s74, 1
        %s778 = smul.addr %s777, 512
        %s779 = scalar_lea.vmem [#allocation4], %s778
        %p780 = pneg %p87
        %p781 = pneg %p84
        %s782 = smul.u32 2, %s23
        %p783 = scmp.lt.s32.totalorder %s782, 3
        %s784 = scalar_select %p783, %s782, 3
        %s785 = scalar_lea.vmem %s2, %s784
        %p786 = pneg %p113
        %p787 = pneg %p110
        %p788 = pneg %p141
        %p789 = pneg %p138
        %s790 = sand.u32 %s128, 1
        %s791 = scalar_lea.sflag [#allocation6], %s790
        %s792 = sand.u32 %s128, 1
        %s793 = smul.addr %s792, 512
        %s794 = scalar_lea.vmem [#allocation5], %s793
        %s795 = smul.u32 32, %s22
        %s796 = smul.u32 4, %s24
        %s797 = smul.u32 64, %s24
        %s798 = smul.u32 2, %s23
        %s799 = smul.u32 2, %s23
        %p800 = scmp.lt.s32.totalorder %s799, 3
        %s801 = scalar_select %p800, %s799, 3
        %s802 = scalar_lea.vmem %s2, %s801
        %s803 = smul.u32 2, %s23
        %s804 = smul.u32 32, %s22
        %s805 = smul.u32 2, %s23
        %p806 = scmp.eq.s32.totalorder %s24, 0
        // Predicated region
        $region94: #{network_forward.1} parent=84 // pred_check
          %p807 = pneg %p806
        $region95: #{network_forward.1} parent=84 // pred_check_branch
          %809 = sbr.rel (%p807) target = $region97
        $region96: #{network_forward.1} parent=84 // pred_region
          %v810 = vld [vmem:[%s802] sm:$0x3]
          %v812 = vlaneseq
          %v813 = vshrl.u32 %v812, 7
          %v814 = vsub.s32 0, %v813
          %v815 = vrot.slane %v810, %v814
          %v816 = vlaneseq
          %v817 = vshrl.u32 %v816, 7
          %v818 = vsub.s32 1, %v817
          %v819 = vrot.slane %v810, %v818
          %822 = vst [vmem:[#allocation2] sm:$0xff] %v815
          %823 = vst [vmem:[#allocation2 + $0x8] sm:$0xff] %v819
          %824 = vst [vmem:[#allocation2 + $0x10] sm:$0xff] %v815
          %825 = vst [vmem:[#allocation2 + $0x18] sm:$0xff] %v819
          %826 = vst [vmem:[#allocation2 + $0x20] sm:$0xff] %v815
          %827 = vst [vmem:[#allocation2 + $0x28] sm:$0xff] %v819
          %828 = vst [vmem:[#allocation2 + $0x30] sm:$0xff] %v815
          %829 = vst [vmem:[#allocation2 + $0x38] sm:$0xff] %v819
          %830 = vst [vmem:[#allocation2 + $0x40] sm:$0xff] %v815
          %831 = vst [vmem:[#allocation2 + $0x48] sm:$0xff] %v819
          %832 = vst [vmem:[#allocation2 + $0x50] sm:$0xff] %v815
          %833 = vst [vmem:[#allocation2 + $0x58] sm:$0xff] %v819
          %834 = vst [vmem:[#allocation2 + $0x60] sm:$0xff] %v815
          %835 = vst [vmem:[#allocation2 + $0x68] sm:$0xff] %v819
          %836 = vst [vmem:[#allocation2 + $0x70] sm:$0xff] %v815
          %837 = vst [vmem:[#allocation2 + $0x78] sm:$0xff] %v819
          %838 = vst [vmem:[#allocation2 + $0x80] sm:$0xff] %v815
          %839 = vst [vmem:[#allocation2 + $0x88] sm:$0xff] %v819
          %840 = vst [vmem:[#allocation2 + $0x90] sm:$0xff] %v815
          %841 = vst [vmem:[#allocation2 + $0x98] sm:$0xff] %v819
          %842 = vst [vmem:[#allocation2 + $0xa0] sm:$0xff] %v815
          %843 = vst [vmem:[#allocation2 + $0xa8] sm:$0xff] %v819
          %844 = vst [vmem:[#allocation2 + $0xb0] sm:$0xff] %v815
          %845 = vst [vmem:[#allocation2 + $0xb8] sm:$0xff] %v819
          %846 = vst [vmem:[#allocation2 + $0xc0] sm:$0xff] %v815
          %847 = vst [vmem:[#allocation2 + $0xc8] sm:$0xff] %v819
          %848 = vst [vmem:[#allocation2 + $0xd0] sm:$0xff] %v815
          %849 = vst [vmem:[#allocation2 + $0xd8] sm:$0xff] %v819
          %850 = vst [vmem:[#allocation2 + $0xe0] sm:$0xff] %v815
          %851 = vst [vmem:[#allocation2 + $0xe8] sm:$0xff] %v819
          %852 = vst [vmem:[#allocation2 + $0xf0] sm:$0xff] %v815
          %853 = vst [vmem:[#allocation2 + $0xf8] sm:$0xff] %v819
          %854 = vst [vmem:[#allocation2 + $0x100] sm:$0xff] %v815
          %855 = vst [vmem:[#allocation2 + $0x108] sm:$0xff] %v819
          %856 = vst [vmem:[#allocation2 + $0x110] sm:$0xff] %v815
          %857 = vst [vmem:[#allocation2 + $0x118] sm:$0xff] %v819
          %858 = vst [vmem:[#allocation2 + $0x120] sm:$0xff] %v815
          %859 = vst [vmem:[#allocation2 + $0x128] sm:$0xff] %v819
          %860 = vst [vmem:[#allocation2 + $0x130] sm:$0xff] %v815
          %861 = vst [vmem:[#allocation2 + $0x138] sm:$0xff] %v819
          %862 = vst [vmem:[#allocation2 + $0x140] sm:$0xff] %v815
          %863 = vst [vmem:[#allocation2 + $0x148] sm:$0xff] %v819
          %864 = vst [vmem:[#allocation2 + $0x150] sm:$0xff] %v815
          %865 = vst [vmem:[#allocation2 + $0x158] sm:$0xff] %v819
          %866 = vst [vmem:[#allocation2 + $0x160] sm:$0xff] %v815
          %867 = vst [vmem:[#allocation2 + $0x168] sm:$0xff] %v819
          %868 = vst [vmem:[#allocation2 + $0x170] sm:$0xff] %v815
          %869 = vst [vmem:[#allocation2 + $0x178] sm:$0xff] %v819
          %870 = vst [vmem:[#allocation2 + $0x180] sm:$0xff] %v815
          %871 = vst [vmem:[#allocation2 + $0x188] sm:$0xff] %v819
          %872 = vst [vmem:[#allocation2 + $0x190] sm:$0xff] %v815
          %873 = vst [vmem:[#allocation2 + $0x198] sm:$0xff] %v819
          %874 = vst [vmem:[#allocation2 + $0x1a0] sm:$0xff] %v815
          %875 = vst [vmem:[#allocation2 + $0x1a8] sm:$0xff] %v819
          %876 = vst [vmem:[#allocation2 + $0x1b0] sm:$0xff] %v815
          %877 = vst [vmem:[#allocation2 + $0x1b8] sm:$0xff] %v819
          %878 = vst [vmem:[#allocation2 + $0x1c0] sm:$0xff] %v815
          %879 = vst [vmem:[#allocation2 + $0x1c8] sm:$0xff] %v819
          %880 = vst [vmem:[#allocation2 + $0x1d0] sm:$0xff] %v815
          %881 = vst [vmem:[#allocation2 + $0x1d8] sm:$0xff] %v819
          %882 = vst [vmem:[#allocation2 + $0x1e0] sm:$0xff] %v815
          %883 = vst [vmem:[#allocation2 + $0x1e8] sm:$0xff] %v819
          %884 = vst [vmem:[#allocation2 + $0x1f0] sm:$0xff] %v815
          %885 = vst [vmem:[#allocation2 + $0x1f8] sm:$0xff] %v819
        $region97: #{network_forward.1} parent=84 // pred_fallthru
          _
        %v886 = vld [vmem:[%s759] sm:$0xff]
        %v887 = vld [vmem:[%s759 + $0x8] sm:$0xff]
        %v888 = vld [vmem:[%s759 + $0x10] sm:$0xff]
        %v889 = vld [vmem:[%s759 + $0x18] sm:$0xff]
        %v890 = vld [vmem:[%s759 + $0x20] sm:$0xff]
        %v891 = vld [vmem:[%s759 + $0x28] sm:$0xff]
        %v892 = vld [vmem:[%s759 + $0x30] sm:$0xff]
        %v893 = vld [vmem:[%s759 + $0x38] sm:$0xff]
        %v894 = vld [vmem:[%s759 + $0x40] sm:$0xff]
        %v895 = vld [vmem:[%s759 + $0x48] sm:$0xff]
        %v896 = vld [vmem:[%s759 + $0x50] sm:$0xff]
        %v897 = vld [vmem:[%s759 + $0x58] sm:$0xff]
        %v898 = vld [vmem:[%s759 + $0x60] sm:$0xff]
        %v899 = vld [vmem:[%s759 + $0x68] sm:$0xff]
        %v900 = vld [vmem:[%s759 + $0x70] sm:$0xff]
        %v901 = vld [vmem:[%s759 + $0x78] sm:$0xff]
        %v902 = vld [vmem:[%s759 + $0x80] sm:$0xff]
        %v903 = vld [vmem:[%s759 + $0x88] sm:$0xff]
        %v904 = vld [vmem:[%s759 + $0x90] sm:$0xff]
        %v905 = vld [vmem:[%s759 + $0x98] sm:$0xff]
        %v906 = vld [vmem:[%s759 + $0xa0] sm:$0xff]
        %v907 = vld [vmem:[%s759 + $0xa8] sm:$0xff]
        %v908 = vld [vmem:[%s759 + $0xb0] sm:$0xff]
        %v909 = vld [vmem:[%s759 + $0xb8] sm:$0xff]
        %v910 = vld [vmem:[%s759 + $0xc0] sm:$0xff]
        %v911 = vld [vmem:[%s759 + $0xc8] sm:$0xff]
        %v912 = vld [vmem:[%s759 + $0xd0] sm:$0xff]
        %v913 = vld [vmem:[%s759 + $0xd8] sm:$0xff]
        %v914 = vld [vmem:[%s759 + $0xe0] sm:$0xff]
        %v915 = vld [vmem:[%s759 + $0xe8] sm:$0xff]
        %v916 = vld [vmem:[%s759 + $0xf0] sm:$0xff]
        %v917 = vld [vmem:[%s759 + $0xf8] sm:$0xff]
        %v918 = vld [vmem:[%s759 + $0x100] sm:$0xff]
        %v919 = vld [vmem:[%s759 + $0x108] sm:$0xff]
        %v920 = vld [vmem:[%s759 + $0x110] sm:$0xff]
        %v921 = vld [vmem:[%s759 + $0x118] sm:$0xff]
        %v922 = vld [vmem:[%s759 + $0x120] sm:$0xff]
        %v923 = vld [vmem:[%s759 + $0x128] sm:$0xff]
        %v924 = vld [vmem:[%s759 + $0x130] sm:$0xff]
        %v925 = vld [vmem:[%s759 + $0x138] sm:$0xff]
        %v926 = vld [vmem:[%s759 + $0x140] sm:$0xff]
        %v927 = vld [vmem:[%s759 + $0x148] sm:$0xff]
        %v928 = vld [vmem:[%s759 + $0x150] sm:$0xff]
        %v929 = vld [vmem:[%s759 + $0x158] sm:$0xff]
        %v930 = vld [vmem:[%s759 + $0x160] sm:$0xff]
        %v931 = vld [vmem:[%s759 + $0x168] sm:$0xff]
        %v932 = vld [vmem:[%s759 + $0x170] sm:$0xff]
        %v933 = vld [vmem:[%s759 + $0x178] sm:$0xff]
        %v934 = vld [vmem:[%s759 + $0x180] sm:$0xff]
        %v935 = vld [vmem:[%s759 + $0x188] sm:$0xff]
        %v936 = vld [vmem:[%s759 + $0x190] sm:$0xff]
        %v937 = vld [vmem:[%s759 + $0x198] sm:$0xff]
        %v938 = vld [vmem:[%s759 + $0x1a0] sm:$0xff]
        %v939 = vld [vmem:[%s759 + $0x1a8] sm:$0xff]
        %v940 = vld [vmem:[%s759 + $0x1b0] sm:$0xff]
        %v941 = vld [vmem:[%s759 + $0x1b8] sm:$0xff]
        %v942 = vld [vmem:[%s759 + $0x1c0] sm:$0xff]
        %v943 = vld [vmem:[%s759 + $0x1c8] sm:$0xff]
        %v944 = vld [vmem:[%s759 + $0x1d0] sm:$0xff]
        %v945 = vld [vmem:[%s759 + $0x1d8] sm:$0xff]
        %v946 = vld [vmem:[%s759 + $0x1e0] sm:$0xff]
        %v947 = vld [vmem:[%s759 + $0x1e8] sm:$0xff]
        %v948 = vld [vmem:[%s759 + $0x1f0] sm:$0xff]
        %v949 = vld [vmem:[%s759 + $0x1f8] sm:$0xff]
        %v950 = vld [vmem:[%s759 + $0x200] sm:$0xff]
        %v951 = vld [vmem:[%s759 + $0x208] sm:$0xff]
        %v952 = vld [vmem:[%s759 + $0x210] sm:$0xff]
        %v953 = vld [vmem:[%s759 + $0x218] sm:$0xff]
        %v954 = vld [vmem:[%s759 + $0x220] sm:$0xff]
        %v955 = vld [vmem:[%s759 + $0x228] sm:$0xff]
        %v956 = vld [vmem:[%s759 + $0x230] sm:$0xff]
        %v957 = vld [vmem:[%s759 + $0x238] sm:$0xff]
        %v958 = vld [vmem:[%s759 + $0x240] sm:$0xff]
        %v959 = vld [vmem:[%s759 + $0x248] sm:$0xff]
        %v960 = vld [vmem:[%s759 + $0x250] sm:$0xff]
        %v961 = vld [vmem:[%s759 + $0x258] sm:$0xff]
        %v962 = vld [vmem:[%s759 + $0x260] sm:$0xff]
        %v963 = vld [vmem:[%s759 + $0x268] sm:$0xff]
        %v964 = vld [vmem:[%s759 + $0x270] sm:$0xff]
        %v965 = vld [vmem:[%s759 + $0x278] sm:$0xff]
        %v966 = vld [vmem:[%s759 + $0x280] sm:$0xff]
        %v967 = vld [vmem:[%s759 + $0x288] sm:$0xff]
        %v968 = vld [vmem:[%s759 + $0x290] sm:$0xff]
        %v969 = vld [vmem:[%s759 + $0x298] sm:$0xff]
        %v970 = vld [vmem:[%s759 + $0x2a0] sm:$0xff]
        %v971 = vld [vmem:[%s759 + $0x2a8] sm:$0xff]
        %v972 = vld [vmem:[%s759 + $0x2b0] sm:$0xff]
        %v973 = vld [vmem:[%s759 + $0x2b8] sm:$0xff]
        %v974 = vld [vmem:[%s759 + $0x2c0] sm:$0xff]
        %v975 = vld [vmem:[%s759 + $0x2c8] sm:$0xff]
        %v976 = vld [vmem:[%s759 + $0x2d0] sm:$0xff]
        %v977 = vld [vmem:[%s759 + $0x2d8] sm:$0xff]
        %v978 = vld [vmem:[%s759 + $0x2e0] sm:$0xff]
        %v979 = vld [vmem:[%s759 + $0x2e8] sm:$0xff]
        %v980 = vld [vmem:[%s759 + $0x2f0] sm:$0xff]
        %v981 = vld [vmem:[%s759 + $0x2f8] sm:$0xff]
        %v982 = vld [vmem:[%s759 + $0x300] sm:$0xff]
        %v983 = vld [vmem:[%s759 + $0x308] sm:$0xff]
        %v984 = vld [vmem:[%s759 + $0x310] sm:$0xff]
        %v985 = vld [vmem:[%s759 + $0x318] sm:$0xff]
        %v986 = vld [vmem:[%s759 + $0x320] sm:$0xff]
        %v987 = vld [vmem:[%s759 + $0x328] sm:$0xff]
        %v988 = vld [vmem:[%s759 + $0x330] sm:$0xff]
        %v989 = vld [vmem:[%s759 + $0x338] sm:$0xff]
        %v990 = vld [vmem:[%s759 + $0x340] sm:$0xff]
        %v991 = vld [vmem:[%s759 + $0x348] sm:$0xff]
        %v992 = vld [vmem:[%s759 + $0x350] sm:$0xff]
        %v993 = vld [vmem:[%s759 + $0x358] sm:$0xff]
        %v994 = vld [vmem:[%s759 + $0x360] sm:$0xff]
        %v995 = vld [vmem:[%s759 + $0x368] sm:$0xff]
        %v996 = vld [vmem:[%s759 + $0x370] sm:$0xff]
        %v997 = vld [vmem:[%s759 + $0x378] sm:$0xff]
        %v998 = vld [vmem:[%s759 + $0x380] sm:$0xff]
        %v999 = vld [vmem:[%s759 + $0x388] sm:$0xff]
        %v1000 = vld [vmem:[%s759 + $0x390] sm:$0xff]
        %v1001 = vld [vmem:[%s759 + $0x398] sm:$0xff]
        %v1002 = vld [vmem:[%s759 + $0x3a0] sm:$0xff]
        %v1003 = vld [vmem:[%s759 + $0x3a8] sm:$0xff]
        %v1004 = vld [vmem:[%s759 + $0x3b0] sm:$0xff]
        %v1005 = vld [vmem:[%s759 + $0x3b8] sm:$0xff]
        %v1006 = vld [vmem:[%s759 + $0x3c0] sm:$0xff]
        %v1007 = vld [vmem:[%s759 + $0x3c8] sm:$0xff]
        %v1008 = vld [vmem:[%s759 + $0x3d0] sm:$0xff]
        %v1009 = vld [vmem:[%s759 + $0x3d8] sm:$0xff]
        %v1010 = vld [vmem:[%s759 + $0x3e0] sm:$0xff]
        %v1011 = vld [vmem:[%s759 + $0x3e8] sm:$0xff]
        %v1012 = vld [vmem:[%s759 + $0x3f0] sm:$0xff]
        %v1013 = vld [vmem:[%s759 + $0x3f8] sm:$0xff]
        %v1014 = vmul.f32 %v886, -10.0
        %v1015 = vmul.f32 %v887, -10.0
        %v1016 = vmul.f32 %v888, -10.0
        %v1017 = vmul.f32 %v889, -10.0
        %v1018 = vmul.f32 %v890, -10.0
        %v1019 = vmul.f32 %v891, -10.0
        %v1020 = vmul.f32 %v892, -10.0
        %v1021 = vmul.f32 %v893, -10.0
        %v1022 = vmul.f32 %v894, -10.0
        %v1023 = vmul.f32 %v895, -10.0
        %v1024 = vmul.f32 %v896, -10.0
        %v1025 = vmul.f32 %v897, -10.0
        %v1026 = vmul.f32 %v898, -10.0
        %v1027 = vmul.f32 %v899, -10.0
        %v1028 = vmul.f32 %v900, -10.0
        %v1029 = vmul.f32 %v901, -10.0
        %v1030 = vmul.f32 %v902, -10.0
        %v1031 = vmul.f32 %v903, -10.0
        %v1032 = vmul.f32 %v904, -10.0
        %v1033 = vmul.f32 %v905, -10.0
        %v1034 = vmul.f32 %v906, -10.0
        %v1035 = vmul.f32 %v907, -10.0
        %v1036 = vmul.f32 %v908, -10.0
        %v1037 = vmul.f32 %v909, -10.0
        %v1038 = vmul.f32 %v910, -10.0
        %v1039 = vmul.f32 %v911, -10.0
        %v1040 = vmul.f32 %v912, -10.0
        %v1041 = vmul.f32 %v913, -10.0
        %v1042 = vmul.f32 %v914, -10.0
        %v1043 = vmul.f32 %v915, -10.0
        %v1044 = vmul.f32 %v916, -10.0
        %v1045 = vmul.f32 %v917, -10.0
        %v1046 = vmul.f32 %v918, -10.0
        %v1047 = vmul.f32 %v919, -10.0
        %v1048 = vmul.f32 %v920, -10.0
        %v1049 = vmul.f32 %v921, -10.0
        %v1050 = vmul.f32 %v922, -10.0
        %v1051 = vmul.f32 %v923, -10.0
        %v1052 = vmul.f32 %v924, -10.0
        %v1053 = vmul.f32 %v925, -10.0
        %v1054 = vmul.f32 %v926, -10.0
        %v1055 = vmul.f32 %v927, -10.0
        %v1056 = vmul.f32 %v928, -10.0
        %v1057 = vmul.f32 %v929, -10.0
        %v1058 = vmul.f32 %v930, -10.0
        %v1059 = vmul.f32 %v931, -10.0
        %v1060 = vmul.f32 %v932, -10.0
        %v1061 = vmul.f32 %v933, -10.0
        %v1062 = vmul.f32 %v934, -10.0
        %v1063 = vmul.f32 %v935, -10.0
        %v1064 = vmul.f32 %v936, -10.0
        %v1065 = vmul.f32 %v937, -10.0
        %v1066 = vmul.f32 %v938, -10.0
        %v1067 = vmul.f32 %v939, -10.0
        %v1068 = vmul.f32 %v940, -10.0
        %v1069 = vmul.f32 %v941, -10.0
        %v1070 = vmul.f32 %v942, -10.0
        %v1071 = vmul.f32 %v943, -10.0
        %v1072 = vmul.f32 %v944, -10.0
        %v1073 = vmul.f32 %v945, -10.0
        %v1074 = vmul.f32 %v946, -10.0
        %v1075 = vmul.f32 %v947, -10.0
        %v1076 = vmul.f32 %v948, -10.0
        %v1077 = vmul.f32 %v949, -10.0
        %v1078 = vmul.f32 %v950, -10.0
        %v1079 = vmul.f32 %v951, -10.0
        %v1080 = vmul.f32 %v952, -10.0
        %v1081 = vmul.f32 %v953, -10.0
        %v1082 = vmul.f32 %v954, -10.0
        %v1083 = vmul.f32 %v955, -10.0
        %v1084 = vmul.f32 %v956, -10.0
        %v1085 = vmul.f32 %v957, -10.0
        %v1086 = vmul.f32 %v958, -10.0
        %v1087 = vmul.f32 %v959, -10.0
        %v1088 = vmul.f32 %v960, -10.0
        %v1089 = vmul.f32 %v961, -10.0
        %v1090 = vmul.f32 %v962, -10.0
        %v1091 = vmul.f32 %v963, -10.0
        %v1092 = vmul.f32 %v964, -10.0
        %v1093 = vmul.f32 %v965, -10.0
        %v1094 = vmul.f32 %v966, -10.0
        %v1095 = vmul.f32 %v967, -10.0
        %v1096 = vmul.f32 %v968, -10.0
        %v1097 = vmul.f32 %v969, -10.0
        %v1098 = vmul.f32 %v970, -10.0
        %v1099 = vmul.f32 %v971, -10.0
        %v1100 = vmul.f32 %v972, -10.0
        %v1101 = vmul.f32 %v973, -10.0
        %v1102 = vmul.f32 %v974, -10.0
        %v1103 = vmul.f32 %v975, -10.0
        %v1104 = vmul.f32 %v976, -10.0
        %v1105 = vmul.f32 %v977, -10.0
        %v1106 = vmul.f32 %v978, -10.0
        %v1107 = vmul.f32 %v979, -10.0
        %v1108 = vmul.f32 %v980, -10.0
        %v1109 = vmul.f32 %v981, -10.0
        %v1110 = vmul.f32 %v982, -10.0
        %v1111 = vmul.f32 %v983, -10.0
        %v1112 = vmul.f32 %v984, -10.0
        %v1113 = vmul.f32 %v985, -10.0
        %v1114 = vmul.f32 %v986, -10.0
        %v1115 = vmul.f32 %v987, -10.0
        %v1116 = vmul.f32 %v988, -10.0
        %v1117 = vmul.f32 %v989, -10.0
        %v1118 = vmul.f32 %v990, -10.0
        %v1119 = vmul.f32 %v991, -10.0
        %v1120 = vmul.f32 %v992, -10.0
        %v1121 = vmul.f32 %v993, -10.0
        %v1122 = vmul.f32 %v994, -10.0
        %v1123 = vmul.f32 %v995, -10.0
        %v1124 = vmul.f32 %v996, -10.0
        %v1125 = vmul.f32 %v997, -10.0
        %v1126 = vmul.f32 %v998, -10.0
        %v1127 = vmul.f32 %v999, -10.0
        %v1128 = vmul.f32 %v1000, -10.0
        %v1129 = vmul.f32 %v1001, -10.0
        %v1130 = vmul.f32 %v1002, -10.0
        %v1131 = vmul.f32 %v1003, -10.0
        %v1132 = vmul.f32 %v1004, -10.0
        %v1133 = vmul.f32 %v1005, -10.0
        %v1134 = vmul.f32 %v1006, -10.0
        %v1135 = vmul.f32 %v1007, -10.0
        %v1136 = vmul.f32 %v1008, -10.0
        %v1137 = vmul.f32 %v1009, -10.0
        %v1138 = vmul.f32 %v1010, -10.0
        %v1139 = vmul.f32 %v1011, -10.0
        %v1140 = vmul.f32 %v1012, -10.0
        %v1141 = vmul.f32 %v1013, -10.0
        %v1142 = vmin.f32 %v1014, 60.0
        %v1143 = vmin.f32 %v1015, 60.0
        %v1144 = vmin.f32 %v1016, 60.0
        %v1145 = vmin.f32 %v1017, 60.0
        %v1146 = vmin.f32 %v1018, 60.0
        %v1147 = vmin.f32 %v1019, 60.0
        %v1148 = vmin.f32 %v1020, 60.0
        %v1149 = vmin.f32 %v1021, 60.0
        %v1150 = vmin.f32 %v1022, 60.0
        %v1151 = vmin.f32 %v1023, 60.0
        %v1152 = vmin.f32 %v1024, 60.0
        %v1153 = vmin.f32 %v1025, 60.0
        %v1154 = vmin.f32 %v1026, 60.0
        %v1155 = vmin.f32 %v1027, 60.0
        %v1156 = vmin.f32 %v1028, 60.0
        %v1157 = vmin.f32 %v1029, 60.0
        %v1158 = vmin.f32 %v1030, 60.0
        %v1159 = vmin.f32 %v1031, 60.0
        %v1160 = vmin.f32 %v1032, 60.0
        %v1161 = vmin.f32 %v1033, 60.0
        %v1162 = vmin.f32 %v1034, 60.0
        %v1163 = vmin.f32 %v1035, 60.0
        %v1164 = vmin.f32 %v1036, 60.0
        %v1165 = vmin.f32 %v1037, 60.0
        %v1166 = vmin.f32 %v1038, 60.0
        %v1167 = vmin.f32 %v1039, 60.0
        %v1168 = vmin.f32 %v1040, 60.0
        %v1169 = vmin.f32 %v1041, 60.0
        %v1170 = vmin.f32 %v1042, 60.0
        %v1171 = vmin.f32 %v1043, 60.0
        %v1172 = vmin.f32 %v1044, 60.0
        %v1173 = vmin.f32 %v1045, 60.0
        %v1174 = vmin.f32 %v1046, 60.0
        %v1175 = vmin.f32 %v1047, 60.0
        %v1176 = vmin.f32 %v1048, 60.0
        %v1177 = vmin.f32 %v1049, 60.0
        %v1178 = vmin.f32 %v1050, 60.0
        %v1179 = vmin.f32 %v1051, 60.0
        %v1180 = vmin.f32 %v1052, 60.0
        %v1181 = vmin.f32 %v1053, 60.0
        %v1182 = vmin.f32 %v1054, 60.0
        %v1183 = vmin.f32 %v1055, 60.0
        %v1184 = vmin.f32 %v1056, 60.0
        %v1185 = vmin.f32 %v1057, 60.0
        %v1186 = vmin.f32 %v1058, 60.0
        %v1187 = vmin.f32 %v1059, 60.0
        %v1188 = vmin.f32 %v1060, 60.0
        %v1189 = vmin.f32 %v1061, 60.0
        %v1190 = vmin.f32 %v1062, 60.0
        %v1191 = vmin.f32 %v1063, 60.0
        %v1192 = vmin.f32 %v1064, 60.0
        %v1193 = vmin.f32 %v1065, 60.0
        %v1194 = vmin.f32 %v1066, 60.0
        %v1195 = vmin.f32 %v1067, 60.0
        %v1196 = vmin.f32 %v1068, 60.0
        %v1197 = vmin.f32 %v1069, 60.0
        %v1198 = vmin.f32 %v1070, 60.0
        %v1199 = vmin.f32 %v1071, 60.0
        %v1200 = vmin.f32 %v1072, 60.0
        %v1201 = vmin.f32 %v1073, 60.0
        %v1202 = vmin.f32 %v1074, 60.0
        %v1203 = vmin.f32 %v1075, 60.0
        %v1204 = vmin.f32 %v1076, 60.0
        %v1205 = vmin.f32 %v1077, 60.0
        %v1206 = vmin.f32 %v1078, 60.0
        %v1207 = vmin.f32 %v1079, 60.0
        %v1208 = vmin.f32 %v1080, 60.0
        %v1209 = vmin.f32 %v1081, 60.0
        %v1210 = vmin.f32 %v1082, 60.0
        %v1211 = vmin.f32 %v1083, 60.0
        %v1212 = vmin.f32 %v1084, 60.0
        %v1213 = vmin.f32 %v1085, 60.0
        %v1214 = vmin.f32 %v1086, 60.0
        %v1215 = vmin.f32 %v1087, 60.0
        %v1216 = vmin.f32 %v1088, 60.0
        %v1217 = vmin.f32 %v1089, 60.0
        %v1218 = vmin.f32 %v1090, 60.0
        %v1219 = vmin.f32 %v1091, 60.0
        %v1220 = vmin.f32 %v1092, 60.0
        %v1221 = vmin.f32 %v1093, 60.0
        %v1222 = vmin.f32 %v1094, 60.0
        %v1223 = vmin.f32 %v1095, 60.0
        %v1224 = vmin.f32 %v1096, 60.0
        %v1225 = vmin.f32 %v1097, 60.0
        %v1226 = vmin.f32 %v1098, 60.0
        %v1227 = vmin.f32 %v1099, 60.0
        %v1228 = vmin.f32 %v1100, 60.0
        %v1229 = vmin.f32 %v1101, 60.0
        %v1230 = vmin.f32 %v1102, 60.0
        %v1231 = vmin.f32 %v1103, 60.0
        %v1232 = vmin.f32 %v1104, 60.0
        %v1233 = vmin.f32 %v1105, 60.0
        %v1234 = vmin.f32 %v1106, 60.0
        %v1235 = vmin.f32 %v1107, 60.0
        %v1236 = vmin.f32 %v1108, 60.0
        %v1237 = vmin.f32 %v1109, 60.0
        %v1238 = vmin.f32 %v1110, 60.0
        %v1239 = vmin.f32 %v1111, 60.0
        %v1240 = vmin.f32 %v1112, 60.0
        %v1241 = vmin.f32 %v1113, 60.0
        %v1242 = vmin.f32 %v1114, 60.0
        %v1243 = vmin.f32 %v1115, 60.0
        %v1244 = vmin.f32 %v1116, 60.0
        %v1245 = vmin.f32 %v1117, 60.0
        %v1246 = vmin.f32 %v1118, 60.0
        %v1247 = vmin.f32 %v1119, 60.0
        %v1248 = vmin.f32 %v1120, 60.0
        %v1249 = vmin.f32 %v1121, 60.0
        %v1250 = vmin.f32 %v1122, 60.0
        %v1251 = vmin.f32 %v1123, 60.0
        %v1252 = vmin.f32 %v1124, 60.0
        %v1253 = vmin.f32 %v1125, 60.0
        %v1254 = vmin.f32 %v1126, 60.0
        %v1255 = vmin.f32 %v1127, 60.0
        %v1256 = vmin.f32 %v1128, 60.0
        %v1257 = vmin.f32 %v1129, 60.0
        %v1258 = vmin.f32 %v1130, 60.0
        %v1259 = vmin.f32 %v1131, 60.0
        %v1260 = vmin.f32 %v1132, 60.0
        %v1261 = vmin.f32 %v1133, 60.0
        %v1262 = vmin.f32 %v1134, 60.0
        %v1263 = vmin.f32 %v1135, 60.0
        %v1264 = vmin.f32 %v1136, 60.0
        %v1265 = vmin.f32 %v1137, 60.0
        %v1266 = vmin.f32 %v1138, 60.0
        %v1267 = vmin.f32 %v1139, 60.0
        %v1268 = vmin.f32 %v1140, 60.0
        %v1269 = vmin.f32 %v1141, 60.0
        %v1270 = vmul.f32 %v1142, 1.442695
        %v1271 = vpow.pop %v1270
        %v1272 = vmul.f32 %v1143, 1.442695
        %v1273 = vpow.pop %v1272
        %v1274 = vmul.f32 %v1144, 1.442695
        %v1275 = vpow.pop %v1274
        %v1276 = vmul.f32 %v1145, 1.442695
        %v1277 = vpow.pop %v1276
        %v1278 = vmul.f32 %v1146, 1.442695
        %v1279 = vpow.pop %v1278
        %v1280 = vmul.f32 %v1147, 1.442695
        %v1281 = vpow.pop %v1280
        %v1282 = vmul.f32 %v1148, 1.442695
        %v1283 = vpow.pop %v1282
        %v1284 = vmul.f32 %v1149, 1.442695
        %v1285 = vpow.pop %v1284
        %v1286 = vmul.f32 %v1150, 1.442695
        %v1287 = vpow.pop %v1286
        %v1288 = vmul.f32 %v1151, 1.442695
        %v1289 = vpow.pop %v1288
        %v1290 = vmul.f32 %v1152, 1.442695
        %v1291 = vpow.pop %v1290
        %v1292 = vmul.f32 %v1153, 1.442695
        %v1293 = vpow.pop %v1292
        %v1294 = vmul.f32 %v1154, 1.442695
        %v1295 = vpow.pop %v1294
        %v1296 = vmul.f32 %v1155, 1.442695
        %v1297 = vpow.pop %v1296
        %v1298 = vmul.f32 %v1156, 1.442695
        %v1299 = vpow.pop %v1298
        %v1300 = vmul.f32 %v1157, 1.442695
        %v1301 = vpow.pop %v1300
        %v1302 = vmul.f32 %v1158, 1.442695
        %v1303 = vpow.pop %v1302
        %v1304 = vmul.f32 %v1159, 1.442695
        %v1305 = vpow.pop %v1304
        %v1306 = vmul.f32 %v1160, 1.442695
        %v1307 = vpow.pop %v1306
        %v1308 = vmul.f32 %v1161, 1.442695
        %v1309 = vpow.pop %v1308
        %v1310 = vmul.f32 %v1162, 1.442695
        %v1311 = vpow.pop %v1310
        %v1312 = vmul.f32 %v1163, 1.442695
        %v1313 = vpow.pop %v1312
        %v1314 = vmul.f32 %v1164, 1.442695
        %v1315 = vpow.pop %v1314
        %v1316 = vmul.f32 %v1165, 1.442695
        %v1317 = vpow.pop %v1316
        %v1318 = vmul.f32 %v1166, 1.442695
        %v1319 = vpow.pop %v1318
        %v1320 = vmul.f32 %v1167, 1.442695
        %v1321 = vpow.pop %v1320
        %v1322 = vmul.f32 %v1168, 1.442695
        %v1323 = vpow.pop %v1322
        %v1324 = vmul.f32 %v1169, 1.442695
        %v1325 = vpow.pop %v1324
        %v1326 = vmul.f32 %v1170, 1.442695
        %v1327 = vpow.pop %v1326
        %v1328 = vmul.f32 %v1171, 1.442695
        %v1329 = vpow.pop %v1328
        %v1330 = vmul.f32 %v1172, 1.442695
        %v1331 = vpow.pop %v1330
        %v1332 = vmul.f32 %v1173, 1.442695
        %v1333 = vpow.pop %v1332
        %v1334 = vmul.f32 %v1174, 1.442695
        %v1335 = vpow.pop %v1334
        %v1336 = vmul.f32 %v1175, 1.442695
        %v1337 = vpow.pop %v1336
        %v1338 = vmul.f32 %v1176, 1.442695
        %v1339 = vpow.pop %v1338
        %v1340 = vmul.f32 %v1177, 1.442695
        %v1341 = vpow.pop %v1340
        %v1342 = vmul.f32 %v1178, 1.442695
        %v1343 = vpow.pop %v1342
        %v1344 = vmul.f32 %v1179, 1.442695
        %v1345 = vpow.pop %v1344
        %v1346 = vmul.f32 %v1180, 1.442695
        %v1347 = vpow.pop %v1346
        %v1348 = vmul.f32 %v1181, 1.442695
        %v1349 = vpow.pop %v1348
        %v1350 = vmul.f32 %v1182, 1.442695
        %v1351 = vpow.pop %v1350
        %v1352 = vmul.f32 %v1183, 1.442695
        %v1353 = vpow.pop %v1352
        %v1354 = vmul.f32 %v1184, 1.442695
        %v1355 = vpow.pop %v1354
        %v1356 = vmul.f32 %v1185, 1.442695
        %v1357 = vpow.pop %v1356
        %v1358 = vmul.f32 %v1186, 1.442695
        %v1359 = vpow.pop %v1358
        %v1360 = vmul.f32 %v1187, 1.442695
        %v1361 = vpow.pop %v1360
        %v1362 = vmul.f32 %v1188, 1.442695
        %v1363 = vpow.pop %v1362
        %v1364 = vmul.f32 %v1189, 1.442695
        %v1365 = vpow.pop %v1364
        %v1366 = vmul.f32 %v1190, 1.442695
        %v1367 = vpow.pop %v1366
        %v1368 = vmul.f32 %v1191, 1.442695
        %v1369 = vpow.pop %v1368
        %v1370 = vmul.f32 %v1192, 1.442695
        %v1371 = vpow.pop %v1370
        %v1372 = vmul.f32 %v1193, 1.442695
        %v1373 = vpow.pop %v1372
        %v1374 = vmul.f32 %v1194, 1.442695
        %v1375 = vpow.pop %v1374
        %v1376 = vmul.f32 %v1195, 1.442695
        %v1377 = vpow.pop %v1376
        %v1378 = vmul.f32 %v1196, 1.442695
        %v1379 = vpow.pop %v1378
        %v1380 = vmul.f32 %v1197, 1.442695
        %v1381 = vpow.pop %v1380
        %v1382 = vmul.f32 %v1198, 1.442695
        %v1383 = vpow.pop %v1382
        %v1384 = vmul.f32 %v1199, 1.442695
        %v1385 = vpow.pop %v1384
        %v1386 = vmul.f32 %v1200, 1.442695
        %v1387 = vpow.pop %v1386
        %v1388 = vmul.f32 %v1201, 1.442695
        %v1389 = vpow.pop %v1388
        %v1390 = vmul.f32 %v1202, 1.442695
        %v1391 = vpow.pop %v1390
        %v1392 = vmul.f32 %v1203, 1.442695
        %v1393 = vpow.pop %v1392
        %v1394 = vmul.f32 %v1204, 1.442695
        %v1395 = vpow.pop %v1394
        %v1396 = vmul.f32 %v1205, 1.442695
        %v1397 = vpow.pop %v1396
        %v1398 = vmul.f32 %v1206, 1.442695
        %v1399 = vpow.pop %v1398
        %v1400 = vmul.f32 %v1207, 1.442695
        %v1401 = vpow.pop %v1400
        %v1402 = vmul.f32 %v1208, 1.442695
        %v1403 = vpow.pop %v1402
        %v1404 = vmul.f32 %v1209, 1.442695
        %v1405 = vpow.pop %v1404
        %v1406 = vmul.f32 %v1210, 1.442695
        %v1407 = vpow.pop %v1406
        %v1408 = vmul.f32 %v1211, 1.442695
        %v1409 = vpow.pop %v1408
        %v1410 = vmul.f32 %v1212, 1.442695
        %v1411 = vpow.pop %v1410
        %v1412 = vmul.f32 %v1213, 1.442695
        %v1413 = vpow.pop %v1412
        %v1414 = vmul.f32 %v1214, 1.442695
        %v1415 = vpow.pop %v1414
        %v1416 = vmul.f32 %v1215, 1.442695
        %v1417 = vpow.pop %v1416
        %v1418 = vmul.f32 %v1216, 1.442695
        %v1419 = vpow.pop %v1418
        %v1420 = vmul.f32 %v1217, 1.442695
        %v1421 = vpow.pop %v1420
        %v1422 = vmul.f32 %v1218, 1.442695
        %v1423 = vpow.pop %v1422
        %v1424 = vmul.f32 %v1219, 1.442695
        %v1425 = vpow.pop %v1424
        %v1426 = vmul.f32 %v1220, 1.442695
        %v1427 = vpow.pop %v1426
        %v1428 = vmul.f32 %v1221, 1.442695
        %v1429 = vpow.pop %v1428
        %v1430 = vmul.f32 %v1222, 1.442695
        %v1431 = vpow.pop %v1430
        %v1432 = vmul.f32 %v1223, 1.442695
        %v1433 = vpow.pop %v1432
        %v1434 = vmul.f32 %v1224, 1.442695
        %v1435 = vpow.pop %v1434
        %v1436 = vmul.f32 %v1225, 1.442695
        %v1437 = vpow.pop %v1436
        %v1438 = vmul.f32 %v1226, 1.442695
        %v1439 = vpow.pop %v1438
        %v1440 = vmul.f32 %v1227, 1.442695
        %v1441 = vpow.pop %v1440
        %v1442 = vmul.f32 %v1228, 1.442695
        %v1443 = vpow.pop %v1442
        %v1444 = vmul.f32 %v1229, 1.442695
        %v1445 = vpow.pop %v1444
        %v1446 = vmul.f32 %v1230, 1.442695
        %v1447 = vpow.pop %v1446
        %v1448 = vmul.f32 %v1231, 1.442695
        %v1449 = vpow.pop %v1448
        %v1450 = vmul.f32 %v1232, 1.442695
        %v1451 = vpow.pop %v1450
        %v1452 = vmul.f32 %v1233, 1.442695
        %v1453 = vpow.pop %v1452
        %v1454 = vmul.f32 %v1234, 1.442695
        %v1455 = vpow.pop %v1454
        %v1456 = vmul.f32 %v1235, 1.442695
        %v1457 = vpow.pop %v1456
        %v1458 = vmul.f32 %v1236, 1.442695
        %v1459 = vpow.pop %v1458
        %v1460 = vmul.f32 %v1237, 1.442695
        %v1461 = vpow.pop %v1460
        %v1462 = vmul.f32 %v1238, 1.442695
        %v1463 = vpow.pop %v1462
        %v1464 = vmul.f32 %v1239, 1.442695
        %v1465 = vpow.pop %v1464
        %v1466 = vmul.f32 %v1240, 1.442695
        %v1467 = vpow.pop %v1466
        %v1468 = vmul.f32 %v1241, 1.442695
        %v1469 = vpow.pop %v1468
        %v1470 = vmul.f32 %v1242, 1.442695
        %v1471 = vpow.pop %v1470
        %v1472 = vmul.f32 %v1243, 1.442695
        %v1473 = vpow.pop %v1472
        %v1474 = vmul.f32 %v1244, 1.442695
        %v1475 = vpow.pop %v1474
        %v1476 = vmul.f32 %v1245, 1.442695
        %v1477 = vpow.pop %v1476
        %v1478 = vmul.f32 %v1246, 1.442695
        %v1479 = vpow.pop %v1478
        %v1480 = vmul.f32 %v1247, 1.442695
        %v1481 = vpow.pop %v1480
        %v1482 = vmul.f32 %v1248, 1.442695
        %v1483 = vpow.pop %v1482
        %v1484 = vmul.f32 %v1249, 1.442695
        %v1485 = vpow.pop %v1484
        %v1486 = vmul.f32 %v1250, 1.442695
        %v1487 = vpow.pop %v1486
        %v1488 = vmul.f32 %v1251, 1.442695
        %v1489 = vpow.pop %v1488
        %v1490 = vmul.f32 %v1252, 1.442695
        %v1491 = vpow.pop %v1490
        %v1492 = vmul.f32 %v1253, 1.442695
        %v1493 = vpow.pop %v1492
        %v1494 = vmul.f32 %v1254, 1.442695
        %v1495 = vpow.pop %v1494
        %v1496 = vmul.f32 %v1255, 1.442695
        %v1497 = vpow.pop %v1496
        %v1498 = vmul.f32 %v1256, 1.442695
        %v1499 = vpow.pop %v1498
        %v1500 = vmul.f32 %v1257, 1.442695
        %v1501 = vpow.pop %v1500
        %v1502 = vmul.f32 %v1258, 1.442695
        %v1503 = vpow.pop %v1502
        %v1504 = vmul.f32 %v1259, 1.442695
        %v1505 = vpow.pop %v1504
        %v1506 = vmul.f32 %v1260, 1.442695
        %v1507 = vpow.pop %v1506
        %v1508 = vmul.f32 %v1261, 1.442695
        %v1509 = vpow.pop %v1508
        %v1510 = vmul.f32 %v1262, 1.442695
        %v1511 = vpow.pop %v1510
        %v1512 = vmul.f32 %v1263, 1.442695
        %v1513 = vpow.pop %v1512
        %v1514 = vmul.f32 %v1264, 1.442695
        %v1515 = vpow.pop %v1514
        %v1516 = vmul.f32 %v1265, 1.442695
        %v1517 = vpow.pop %v1516
        %v1518 = vmul.f32 %v1266, 1.442695
        %v1519 = vpow.pop %v1518
        %v1520 = vmul.f32 %v1267, 1.442695
        %v1521 = vpow.pop %v1520
        %v1522 = vmul.f32 %v1268, 1.442695
        %v1523 = vpow.pop %v1522
        %v1524 = vmul.f32 %v1269, 1.442695
        %v1525 = vpow.pop %v1524
        %v1526 = vadd.f32 %v1271, 1.0
        %v1527 = vadd.f32 %v1273, 1.0
        %v1528 = vadd.f32 %v1275, 1.0
        %v1529 = vadd.f32 %v1277, 1.0
        %v1530 = vadd.f32 %v1279, 1.0
        %v1531 = vadd.f32 %v1281, 1.0
        %v1532 = vadd.f32 %v1283, 1.0
        %v1533 = vadd.f32 %v1285, 1.0
        %v1534 = vadd.f32 %v1287, 1.0
        %v1535 = vadd.f32 %v1289, 1.0
        %v1536 = vadd.f32 %v1291, 1.0
        %v1537 = vadd.f32 %v1293, 1.0
        %v1538 = vadd.f32 %v1295, 1.0
        %v1539 = vadd.f32 %v1297, 1.0
        %v1540 = vadd.f32 %v1299, 1.0
        %v1541 = vadd.f32 %v1301, 1.0
        %v1542 = vadd.f32 %v1303, 1.0
        %v1543 = vadd.f32 %v1305, 1.0
        %v1544 = vadd.f32 %v1307, 1.0
        %v1545 = vadd.f32 %v1309, 1.0
        %v1546 = vadd.f32 %v1311, 1.0
        %v1547 = vadd.f32 %v1313, 1.0
        %v1548 = vadd.f32 %v1315, 1.0
        %v1549 = vadd.f32 %v1317, 1.0
        %v1550 = vadd.f32 %v1319, 1.0
        %v1551 = vadd.f32 %v1321, 1.0
        %v1552 = vadd.f32 %v1323, 1.0
        %v1553 = vadd.f32 %v1325, 1.0
        %v1554 = vadd.f32 %v1327, 1.0
        %v1555 = vadd.f32 %v1329, 1.0
        %v1556 = vadd.f32 %v1331, 1.0
        %v1557 = vadd.f32 %v1333, 1.0
        %v1558 = vadd.f32 %v1335, 1.0
        %v1559 = vadd.f32 %v1337, 1.0
        %v1560 = vadd.f32 %v1339, 1.0
        %v1561 = vadd.f32 %v1341, 1.0
        %v1562 = vadd.f32 %v1343, 1.0
        %v1563 = vadd.f32 %v1345, 1.0
        %v1564 = vadd.f32 %v1347, 1.0
        %v1565 = vadd.f32 %v1349, 1.0
        %v1566 = vadd.f32 %v1351, 1.0
        %v1567 = vadd.f32 %v1353, 1.0
        %v1568 = vadd.f32 %v1355, 1.0
        %v1569 = vadd.f32 %v1357, 1.0
        %v1570 = vadd.f32 %v1359, 1.0
        %v1571 = vadd.f32 %v1361, 1.0
        %v1572 = vadd.f32 %v1363, 1.0
        %v1573 = vadd.f32 %v1365, 1.0
        %v1574 = vadd.f32 %v1367, 1.0
        %v1575 = vadd.f32 %v1369, 1.0
        %v1576 = vadd.f32 %v1371, 1.0
        %v1577 = vadd.f32 %v1373, 1.0
        %v1578 = vadd.f32 %v1375, 1.0
        %v1579 = vadd.f32 %v1377, 1.0
        %v1580 = vadd.f32 %v1379, 1.0
        %v1581 = vadd.f32 %v1381, 1.0
        %v1582 = vadd.f32 %v1383, 1.0
        %v1583 = vadd.f32 %v1385, 1.0
        %v1584 = vadd.f32 %v1387, 1.0
        %v1585 = vadd.f32 %v1389, 1.0
        %v1586 = vadd.f32 %v1391, 1.0
        %v1587 = vadd.f32 %v1393, 1.0
        %v1588 = vadd.f32 %v1395, 1.0
        %v1589 = vadd.f32 %v1397, 1.0
        %v1590 = vadd.f32 %v1399, 1.0
        %v1591 = vadd.f32 %v1401, 1.0
        %v1592 = vadd.f32 %v1403, 1.0
        %v1593 = vadd.f32 %v1405, 1.0
        %v1594 = vadd.f32 %v1407, 1.0
        %v1595 = vadd.f32 %v1409, 1.0
        %v1596 = vadd.f32 %v1411, 1.0
        %v1597 = vadd.f32 %v1413, 1.0
        %v1598 = vadd.f32 %v1415, 1.0
        %v1599 = vadd.f32 %v1417, 1.0
        %v1600 = vadd.f32 %v1419, 1.0
        %v1601 = vadd.f32 %v1421, 1.0
        %v1602 = vadd.f32 %v1423, 1.0
        %v1603 = vadd.f32 %v1425, 1.0
        %v1604 = vadd.f32 %v1427, 1.0
        %v1605 = vadd.f32 %v1429, 1.0
        %v1606 = vadd.f32 %v1431, 1.0
        %v1607 = vadd.f32 %v1433, 1.0
        %v1608 = vadd.f32 %v1435, 1.0
        %v1609 = vadd.f32 %v1437, 1.0
        %v1610 = vadd.f32 %v1439, 1.0
        %v1611 = vadd.f32 %v1441, 1.0
        %v1612 = vadd.f32 %v1443, 1.0
        %v1613 = vadd.f32 %v1445, 1.0
        %v1614 = vadd.f32 %v1447, 1.0
        %v1615 = vadd.f32 %v1449, 1.0
        %v1616 = vadd.f32 %v1451, 1.0
        %v1617 = vadd.f32 %v1453, 1.0
        %v1618 = vadd.f32 %v1455, 1.0
        %v1619 = vadd.f32 %v1457, 1.0
        %v1620 = vadd.f32 %v1459, 1.0
        %v1621 = vadd.f32 %v1461, 1.0
        %v1622 = vadd.f32 %v1463, 1.0
        %v1623 = vadd.f32 %v1465, 1.0
        %v1624 = vadd.f32 %v1467, 1.0
        %v1625 = vadd.f32 %v1469, 1.0
        %v1626 = vadd.f32 %v1471, 1.0
        %v1627 = vadd.f32 %v1473, 1.0
        %v1628 = vadd.f32 %v1475, 1.0
        %v1629 = vadd.f32 %v1477, 1.0
        %v1630 = vadd.f32 %v1479, 1.0
        %v1631 = vadd.f32 %v1481, 1.0
        %v1632 = vadd.f32 %v1483, 1.0
        %v1633 = vadd.f32 %v1485, 1.0
        %v1634 = vadd.f32 %v1487, 1.0
        %v1635 = vadd.f32 %v1489, 1.0
        %v1636 = vadd.f32 %v1491, 1.0
        %v1637 = vadd.f32 %v1493, 1.0
        %v1638 = vadd.f32 %v1495, 1.0
        %v1639 = vadd.f32 %v1497, 1.0
        %v1640 = vadd.f32 %v1499, 1.0
        %v1641 = vadd.f32 %v1501, 1.0
        %v1642 = vadd.f32 %v1503, 1.0
        %v1643 = vadd.f32 %v1505, 1.0
        %v1644 = vadd.f32 %v1507, 1.0
        %v1645 = vadd.f32 %v1509, 1.0
        %v1646 = vadd.f32 %v1511, 1.0
        %v1647 = vadd.f32 %v1513, 1.0
        %v1648 = vadd.f32 %v1515, 1.0
        %v1649 = vadd.f32 %v1517, 1.0
        %v1650 = vadd.f32 %v1519, 1.0
        %v1651 = vadd.f32 %v1521, 1.0
        %v1652 = vadd.f32 %v1523, 1.0
        %v1653 = vadd.f32 %v1525, 1.0
        %v1654 = vrcp.pop %v1526
        %v1655 = vrcp.pop %v1527
        %v1656 = vrcp.pop %v1528
        %v1657 = vrcp.pop %v1529
        %v1658 = vrcp.pop %v1530
        %v1659 = vrcp.pop %v1531
        %v1660 = vrcp.pop %v1532
        %v1661 = vrcp.pop %v1533
        %v1662 = vrcp.pop %v1534
        %v1663 = vrcp.pop %v1535
        %v1664 = vrcp.pop %v1536
        %v1665 = vrcp.pop %v1537
        %v1666 = vrcp.pop %v1538
        %v1667 = vrcp.pop %v1539
        %v1668 = vrcp.pop %v1540
        %v1669 = vrcp.pop %v1541
        %v1670 = vrcp.pop %v1542
        %v1671 = vrcp.pop %v1543
        %v1672 = vrcp.pop %v1544
        %v1673 = vrcp.pop %v1545
        %v1674 = vrcp.pop %v1546
        %v1675 = vrcp.pop %v1547
        %v1676 = vrcp.pop %v1548
        %v1677 = vrcp.pop %v1549
        %v1678 = vrcp.pop %v1550
        %v1679 = vrcp.pop %v1551
        %v1680 = vrcp.pop %v1552
        %v1681 = vrcp.pop %v1553
        %v1682 = vrcp.pop %v1554
        %v1683 = vrcp.pop %v1555
        %v1684 = vrcp.pop %v1556
        %v1685 = vrcp.pop %v1557
        %v1686 = vrcp.pop %v1558
        %v1687 = vrcp.pop %v1559
        %v1688 = vrcp.pop %v1560
        %v1689 = vrcp.pop %v1561
        %v1690 = vrcp.pop %v1562
        %v1691 = vrcp.pop %v1563
        %v1692 = vrcp.pop %v1564
        %v1693 = vrcp.pop %v1565
        %v1694 = vrcp.pop %v1566
        %v1695 = vrcp.pop %v1567
        %v1696 = vrcp.pop %v1568
        %v1697 = vrcp.pop %v1569
        %v1698 = vrcp.pop %v1570
        %v1699 = vrcp.pop %v1571
        %v1700 = vrcp.pop %v1572
        %v1701 = vrcp.pop %v1573
        %v1702 = vrcp.pop %v1574
        %v1703 = vrcp.pop %v1575
        %v1704 = vrcp.pop %v1576
        %v1705 = vrcp.pop %v1577
        %v1706 = vrcp.pop %v1578
        %v1707 = vrcp.pop %v1579
        %v1708 = vrcp.pop %v1580
        %v1709 = vrcp.pop %v1581
        %v1710 = vrcp.pop %v1582
        %v1711 = vrcp.pop %v1583
        %v1712 = vrcp.pop %v1584
        %v1713 = vrcp.pop %v1585
        %v1714 = vrcp.pop %v1586
        %v1715 = vrcp.pop %v1587
        %v1716 = vrcp.pop %v1588
        %v1717 = vrcp.pop %v1589
        %v1718 = vrcp.pop %v1590
        %v1719 = vrcp.pop %v1591
        %v1720 = vrcp.pop %v1592
        %v1721 = vrcp.pop %v1593
        %v1722 = vrcp.pop %v1594
        %v1723 = vrcp.pop %v1595
        %v1724 = vrcp.pop %v1596
        %v1725 = vrcp.pop %v1597
        %v1726 = vrcp.pop %v1598
        %v1727 = vrcp.pop %v1599
        %v1728 = vrcp.pop %v1600
        %v1729 = vrcp.pop %v1601
        %v1730 = vrcp.pop %v1602
        %v1731 = vrcp.pop %v1603
        %v1732 = vrcp.pop %v1604
        %v1733 = vrcp.pop %v1605
        %v1734 = vrcp.pop %v1606
        %v1735 = vrcp.pop %v1607
        %v1736 = vrcp.pop %v1608
        %v1737 = vrcp.pop %v1609
        %v1738 = vrcp.pop %v1610
        %v1739 = vrcp.pop %v1611
        %v1740 = vrcp.pop %v1612
        %v1741 = vrcp.pop %v1613
        %v1742 = vrcp.pop %v1614
        %v1743 = vrcp.pop %v1615
        %v1744 = vrcp.pop %v1616
        %v1745 = vrcp.pop %v1617
        %v1746 = vrcp.pop %v1618
        %v1747 = vrcp.pop %v1619
        %v1748 = vrcp.pop %v1620
        %v1749 = vrcp.pop %v1621
        %v1750 = vrcp.pop %v1622
        %v1751 = vrcp.pop %v1623
        %v1752 = vrcp.pop %v1624
        %v1753 = vrcp.pop %v1625
        %v1754 = vrcp.pop %v1626
        %v1755 = vrcp.pop %v1627
        %v1756 = vrcp.pop %v1628
        %v1757 = vrcp.pop %v1629
        %v1758 = vrcp.pop %v1630
        %v1759 = vrcp.pop %v1631
        %v1760 = vrcp.pop %v1632
        %v1761 = vrcp.pop %v1633
        %v1762 = vrcp.pop %v1634
        %v1763 = vrcp.pop %v1635
        %v1764 = vrcp.pop %v1636
        %v1765 = vrcp.pop %v1637
        %v1766 = vrcp.pop %v1638
        %v1767 = vrcp.pop %v1639
        %v1768 = vrcp.pop %v1640
        %v1769 = vrcp.pop %v1641
        %v1770 = vrcp.pop %v1642
        %v1771 = vrcp.pop %v1643
        %v1772 = vrcp.pop %v1644
        %v1773 = vrcp.pop %v1645
        %v1774 = vrcp.pop %v1646
        %v1775 = vrcp.pop %v1647
        %v1776 = vrcp.pop %v1648
        %v1777 = vrcp.pop %v1649
        %v1778 = vrcp.pop %v1650
        %v1779 = vrcp.pop %v1651
        %v1780 = vrcp.pop %v1652
        %v1781 = vrcp.pop %v1653
        %v1782 = vld [vmem:[#allocation2] sm:$0xff]
        %v1783 = vld [vmem:[#allocation2 + $0x8] sm:$0xff]
        %v1784 = vld [vmem:[#allocation2 + $0x10] sm:$0xff]
        %v1785 = vld [vmem:[#allocation2 + $0x18] sm:$0xff]
        %v1786 = vld [vmem:[#allocation2 + $0x20] sm:$0xff]
        %v1787 = vld [vmem:[#allocation2 + $0x28] sm:$0xff]
        %v1788 = vld [vmem:[#allocation2 + $0x30] sm:$0xff]
        %v1789 = vld [vmem:[#allocation2 + $0x38] sm:$0xff]
        %v1790 = vld [vmem:[#allocation2 + $0x40] sm:$0xff]
        %v1791 = vld [vmem:[#allocation2 + $0x48] sm:$0xff]
        %v1792 = vld [vmem:[#allocation2 + $0x50] sm:$0xff]
        %v1793 = vld [vmem:[#allocation2 + $0x58] sm:$0xff]
        %v1794 = vld [vmem:[#allocation2 + $0x60] sm:$0xff]
        %v1795 = vld [vmem:[#allocation2 + $0x68] sm:$0xff]
        %v1796 = vld [vmem:[#allocation2 + $0x70] sm:$0xff]
        %v1797 = vld [vmem:[#allocation2 + $0x78] sm:$0xff]
        %v1798 = vld [vmem:[#allocation2 + $0x80] sm:$0xff]
        %v1799 = vld [vmem:[#allocation2 + $0x88] sm:$0xff]
        %v1800 = vld [vmem:[#allocation2 + $0x90] sm:$0xff]
        %v1801 = vld [vmem:[#allocation2 + $0x98] sm:$0xff]
        %v1802 = vld [vmem:[#allocation2 + $0xa0] sm:$0xff]
        %v1803 = vld [vmem:[#allocation2 + $0xa8] sm:$0xff]
        %v1804 = vld [vmem:[#allocation2 + $0xb0] sm:$0xff]
        %v1805 = vld [vmem:[#allocation2 + $0xb8] sm:$0xff]
        %v1806 = vld [vmem:[#allocation2 + $0xc0] sm:$0xff]
        %v1807 = vld [vmem:[#allocation2 + $0xc8] sm:$0xff]
        %v1808 = vld [vmem:[#allocation2 + $0xd0] sm:$0xff]
        %v1809 = vld [vmem:[#allocation2 + $0xd8] sm:$0xff]
        %v1810 = vld [vmem:[#allocation2 + $0xe0] sm:$0xff]
        %v1811 = vld [vmem:[#allocation2 + $0xe8] sm:$0xff]
        %v1812 = vld [vmem:[#allocation2 + $0xf0] sm:$0xff]
        %v1813 = vld [vmem:[#allocation2 + $0xf8] sm:$0xff]
        %v1814 = vld [vmem:[#allocation2 + $0x100] sm:$0xff]
        %v1815 = vld [vmem:[#allocation2 + $0x108] sm:$0xff]
        %v1816 = vld [vmem:[#allocation2 + $0x110] sm:$0xff]
        %v1817 = vld [vmem:[#allocation2 + $0x118] sm:$0xff]
        %v1818 = vld [vmem:[#allocation2 + $0x120] sm:$0xff]
        %v1819 = vld [vmem:[#allocation2 + $0x128] sm:$0xff]
        %v1820 = vld [vmem:[#allocation2 + $0x130] sm:$0xff]
        %v1821 = vld [vmem:[#allocation2 + $0x138] sm:$0xff]
        %v1822 = vld [vmem:[#allocation2 + $0x140] sm:$0xff]
        %v1823 = vld [vmem:[#allocation2 + $0x148] sm:$0xff]
        %v1824 = vld [vmem:[#allocation2 + $0x150] sm:$0xff]
        %v1825 = vld [vmem:[#allocation2 + $0x158] sm:$0xff]
        %v1826 = vld [vmem:[#allocation2 + $0x160] sm:$0xff]
        %v1827 = vld [vmem:[#allocation2 + $0x168] sm:$0xff]
        %v1828 = vld [vmem:[#allocation2 + $0x170] sm:$0xff]
        %v1829 = vld [vmem:[#allocation2 + $0x178] sm:$0xff]
        %v1830 = vld [vmem:[#allocation2 + $0x180] sm:$0xff]
        %v1831 = vld [vmem:[#allocation2 + $0x188] sm:$0xff]
        %v1832 = vld [vmem:[#allocation2 + $0x190] sm:$0xff]
        %v1833 = vld [vmem:[#allocation2 + $0x198] sm:$0xff]
        %v1834 = vld [vmem:[#allocation2 + $0x1a0] sm:$0xff]
        %v1835 = vld [vmem:[#allocation2 + $0x1a8] sm:$0xff]
        %v1836 = vld [vmem:[#allocation2 + $0x1b0] sm:$0xff]
        %v1837 = vld [vmem:[#allocation2 + $0x1b8] sm:$0xff]
        %v1838 = vld [vmem:[#allocation2 + $0x1c0] sm:$0xff]
        %v1839 = vld [vmem:[#allocation2 + $0x1c8] sm:$0xff]
        %v1840 = vld [vmem:[#allocation2 + $0x1d0] sm:$0xff]
        %v1841 = vld [vmem:[#allocation2 + $0x1d8] sm:$0xff]
        %v1842 = vld [vmem:[#allocation2 + $0x1e0] sm:$0xff]
        %v1843 = vld [vmem:[#allocation2 + $0x1e8] sm:$0xff]
        %v1844 = vld [vmem:[#allocation2 + $0x1f0] sm:$0xff]
        %v1845 = vld [vmem:[#allocation2 + $0x1f8] sm:$0xff]
        %v1846 = vpack.c.bf16 %v1658, %v1654
        %v1847 = vpack.c.bf16 %v1659, %v1655
        %v1848 = vpack.c.bf16 %v1660, %v1656
        %v1849 = vpack.c.bf16 %v1661, %v1657
        %v1850 = vpack.c.bf16 %v1666, %v1662
        %v1851 = vpack.c.bf16 %v1667, %v1663
        %v1852 = vpack.c.bf16 %v1668, %v1664
        %v1853 = vpack.c.bf16 %v1669, %v1665
        %v1854 = vpack.c.bf16 %v1674, %v1670
        %v1855 = vpack.c.bf16 %v1675, %v1671
        %v1856 = vpack.c.bf16 %v1676, %v1672
        %v1857 = vpack.c.bf16 %v1677, %v1673
        %v1858 = vpack.c.bf16 %v1682, %v1678
        %v1859 = vpack.c.bf16 %v1683, %v1679
        %v1860 = vpack.c.bf16 %v1684, %v1680
        %v1861 = vpack.c.bf16 %v1685, %v1681
        %v1862 = vpack.c.bf16 %v1690, %v1686
        %v1863 = vpack.c.bf16 %v1691, %v1687
        %v1864 = vpack.c.bf16 %v1692, %v1688
        %v1865 = vpack.c.bf16 %v1693, %v1689
        %v1866 = vpack.c.bf16 %v1698, %v1694
        %v1867 = vpack.c.bf16 %v1699, %v1695
        %v1868 = vpack.c.bf16 %v1700, %v1696
        %v1869 = vpack.c.bf16 %v1701, %v1697
        %v1870 = vpack.c.bf16 %v1706, %v1702
        %v1871 = vpack.c.bf16 %v1707, %v1703
        %v1872 = vpack.c.bf16 %v1708, %v1704
        %v1873 = vpack.c.bf16 %v1709, %v1705
        %v1874 = vpack.c.bf16 %v1714, %v1710
        %v1875 = vpack.c.bf16 %v1715, %v1711
        %v1876 = vpack.c.bf16 %v1716, %v1712
        %v1877 = vpack.c.bf16 %v1717, %v1713
        %v1878 = vpack.c.bf16 %v1722, %v1718
        %v1879 = vpack.c.bf16 %v1723, %v1719
        %v1880 = vpack.c.bf16 %v1724, %v1720
        %v1881 = vpack.c.bf16 %v1725, %v1721
        %v1882 = vpack.c.bf16 %v1730, %v1726
        %v1883 = vpack.c.bf16 %v1731, %v1727
        %v1884 = vpack.c.bf16 %v1732, %v1728
        %v1885 = vpack.c.bf16 %v1733, %v1729
        %v1886 = vpack.c.bf16 %v1738, %v1734
        %v1887 = vpack.c.bf16 %v1739, %v1735
        %v1888 = vpack.c.bf16 %v1740, %v1736
        %v1889 = vpack.c.bf16 %v1741, %v1737
        %v1890 = vpack.c.bf16 %v1746, %v1742
        %v1891 = vpack.c.bf16 %v1747, %v1743
        %v1892 = vpack.c.bf16 %v1748, %v1744
        %v1893 = vpack.c.bf16 %v1749, %v1745
        %v1894 = vpack.c.bf16 %v1754, %v1750
        %v1895 = vpack.c.bf16 %v1755, %v1751
        %v1896 = vpack.c.bf16 %v1756, %v1752
        %v1897 = vpack.c.bf16 %v1757, %v1753
        %v1898 = vpack.c.bf16 %v1762, %v1758
        %v1899 = vpack.c.bf16 %v1763, %v1759
        %v1900 = vpack.c.bf16 %v1764, %v1760
        %v1901 = vpack.c.bf16 %v1765, %v1761
        %v1902 = vpack.c.bf16 %v1770, %v1766
        %v1903 = vpack.c.bf16 %v1771, %v1767
        %v1904 = vpack.c.bf16 %v1772, %v1768
        %v1905 = vpack.c.bf16 %v1773, %v1769
        %v1906 = vpack.c.bf16 %v1778, %v1774
        %v1907 = vpack.c.bf16 %v1779, %v1775
        %v1908 = vpack.c.bf16 %v1780, %v1776
        %v1909 = vpack.c.bf16 %v1781, %v1777
        %v1910 = vld [vmem:[%s766] sm:$0xff]
        %v1911 = vld [vmem:[%s766 + $0x8] sm:$0xff]
        %v1912 = vld [vmem:[%s766 + $0x10] sm:$0xff]
        %v1913 = vld [vmem:[%s766 + $0x18] sm:$0xff]
        %v1914 = vld [vmem:[%s766 + $0x20] sm:$0xff]
        %v1915 = vld [vmem:[%s766 + $0x28] sm:$0xff]
        %v1916 = vld [vmem:[%s766 + $0x30] sm:$0xff]
        %v1917 = vld [vmem:[%s766 + $0x38] sm:$0xff]
        %v1918 = vld [vmem:[%s766 + $0x40] sm:$0xff]
        %v1919 = vld [vmem:[%s766 + $0x48] sm:$0xff]
        %v1920 = vld [vmem:[%s766 + $0x50] sm:$0xff]
        %v1921 = vld [vmem:[%s766 + $0x58] sm:$0xff]
        %v1922 = vld [vmem:[%s766 + $0x60] sm:$0xff]
        %v1923 = vld [vmem:[%s766 + $0x68] sm:$0xff]
        %v1924 = vld [vmem:[%s766 + $0x70] sm:$0xff]
        %v1925 = vld [vmem:[%s766 + $0x78] sm:$0xff]
        %v1926 = vld [vmem:[%s766 + $0x80] sm:$0xff]
        %v1927 = vld [vmem:[%s766 + $0x88] sm:$0xff]
        %v1928 = vld [vmem:[%s766 + $0x90] sm:$0xff]
        %v1929 = vld [vmem:[%s766 + $0x98] sm:$0xff]
        %v1930 = vld [vmem:[%s766 + $0xa0] sm:$0xff]
        %v1931 = vld [vmem:[%s766 + $0xa8] sm:$0xff]
        %v1932 = vld [vmem:[%s766 + $0xb0] sm:$0xff]
        %v1933 = vld [vmem:[%s766 + $0xb8] sm:$0xff]
        %v1934 = vld [vmem:[%s766 + $0xc0] sm:$0xff]
        %v1935 = vld [vmem:[%s766 + $0xc8] sm:$0xff]
        %v1936 = vld [vmem:[%s766 + $0xd0] sm:$0xff]
        %v1937 = vld [vmem:[%s766 + $0xd8] sm:$0xff]
        %v1938 = vld [vmem:[%s766 + $0xe0] sm:$0xff]
        %v1939 = vld [vmem:[%s766 + $0xe8] sm:$0xff]
        %v1940 = vld [vmem:[%s766 + $0xf0] sm:$0xff]
        %v1941 = vld [vmem:[%s766 + $0xf8] sm:$0xff]
        %v1942 = vld [vmem:[%s766 + $0x100] sm:$0xff]
        %v1943 = vld [vmem:[%s766 + $0x108] sm:$0xff]
        %v1944 = vld [vmem:[%s766 + $0x110] sm:$0xff]
        %v1945 = vld [vmem:[%s766 + $0x118] sm:$0xff]
        %v1946 = vld [vmem:[%s766 + $0x120] sm:$0xff]
        %v1947 = vld [vmem:[%s766 + $0x128] sm:$0xff]
        %v1948 = vld [vmem:[%s766 + $0x130] sm:$0xff]
        %v1949 = vld [vmem:[%s766 + $0x138] sm:$0xff]
        %v1950 = vld [vmem:[%s766 + $0x140] sm:$0xff]
        %v1951 = vld [vmem:[%s766 + $0x148] sm:$0xff]
        %v1952 = vld [vmem:[%s766 + $0x150] sm:$0xff]
        %v1953 = vld [vmem:[%s766 + $0x158] sm:$0xff]
        %v1954 = vld [vmem:[%s766 + $0x160] sm:$0xff]
        %v1955 = vld [vmem:[%s766 + $0x168] sm:$0xff]
        %v1956 = vld [vmem:[%s766 + $0x170] sm:$0xff]
        %v1957 = vld [vmem:[%s766 + $0x178] sm:$0xff]
        %v1958 = vld [vmem:[%s766 + $0x180] sm:$0xff]
        %v1959 = vld [vmem:[%s766 + $0x188] sm:$0xff]
        %v1960 = vld [vmem:[%s766 + $0x190] sm:$0xff]
        %v1961 = vld [vmem:[%s766 + $0x198] sm:$0xff]
        %v1962 = vld [vmem:[%s766 + $0x1a0] sm:$0xff]
        %v1963 = vld [vmem:[%s766 + $0x1a8] sm:$0xff]
        %v1964 = vld [vmem:[%s766 + $0x1b0] sm:$0xff]
        %v1965 = vld [vmem:[%s766 + $0x1b8] sm:$0xff]
        %v1966 = vld [vmem:[%s766 + $0x1c0] sm:$0xff]
        %v1967 = vld [vmem:[%s766 + $0x1c8] sm:$0xff]
        %v1968 = vld [vmem:[%s766 + $0x1d0] sm:$0xff]
        %v1969 = vld [vmem:[%s766 + $0x1d8] sm:$0xff]
        %v1970 = vld [vmem:[%s766 + $0x1e0] sm:$0xff]
        %v1971 = vld [vmem:[%s766 + $0x1e8] sm:$0xff]
        %v1972 = vld [vmem:[%s766 + $0x1f0] sm:$0xff]
        %v1973 = vld [vmem:[%s766 + $0x1f8] sm:$0xff]
        %v2038 = vunpack.c.l.b16 %v1910
        %v2039 = vunpack.c.h.b16 %v1910
        %v2040 = vunpack.c.l.b16 %v1911
        %v2041 = vunpack.c.h.b16 %v1911
        %v2042 = vunpack.c.l.b16 %v1912
        %v2043 = vunpack.c.h.b16 %v1912
        %v2044 = vunpack.c.l.b16 %v1913
        %v2045 = vunpack.c.h.b16 %v1913
        %v2046 = vunpack.c.l.b16 %v1914
        %v2047 = vunpack.c.h.b16 %v1914
        %v2048 = vunpack.c.l.b16 %v1915
        %v2049 = vunpack.c.h.b16 %v1915
        %v2050 = vunpack.c.l.b16 %v1916
        %v2051 = vunpack.c.h.b16 %v1916
        %v2052 = vunpack.c.l.b16 %v1917
        %v2053 = vunpack.c.h.b16 %v1917
        %v2054 = vunpack.c.l.b16 %v1918
        %v2055 = vunpack.c.h.b16 %v1918
        %v2056 = vunpack.c.l.b16 %v1919
        %v2057 = vunpack.c.h.b16 %v1919
        %v2058 = vunpack.c.l.b16 %v1920
        %v2059 = vunpack.c.h.b16 %v1920
        %v2060 = vunpack.c.l.b16 %v1921
        %v2061 = vunpack.c.h.b16 %v1921
        %v2062 = vunpack.c.l.b16 %v1922
        %v2063 = vunpack.c.h.b16 %v1922
        %v2064 = vunpack.c.l.b16 %v1923
        %v2065 = vunpack.c.h.b16 %v1923
        %v2066 = vunpack.c.l.b16 %v1924
        %v2067 = vunpack.c.h.b16 %v1924
        %v2068 = vunpack.c.l.b16 %v1925
        %v2069 = vunpack.c.h.b16 %v1925
        %v2070 = vunpack.c.l.b16 %v1926
        %v2071 = vunpack.c.h.b16 %v1926
        %v2072 = vunpack.c.l.b16 %v1927
        %v2073 = vunpack.c.h.b16 %v1927
        %v2074 = vunpack.c.l.b16 %v1928
        %v2075 = vunpack.c.h.b16 %v1928
        %v2076 = vunpack.c.l.b16 %v1929
        %v2077 = vunpack.c.h.b16 %v1929
        %v2078 = vunpack.c.l.b16 %v1930
        %v2079 = vunpack.c.h.b16 %v1930
        %v2080 = vunpack.c.l.b16 %v1931
        %v2081 = vunpack.c.h.b16 %v1931
        %v2082 = vunpack.c.l.b16 %v1932
        %v2083 = vunpack.c.h.b16 %v1932
        %v2084 = vunpack.c.l.b16 %v1933
        %v2085 = vunpack.c.h.b16 %v1933
        %v2086 = vunpack.c.l.b16 %v1934
        %v2087 = vunpack.c.h.b16 %v1934
        %v2088 = vunpack.c.l.b16 %v1935
        %v2089 = vunpack.c.h.b16 %v1935
        %v2090 = vunpack.c.l.b16 %v1936
        %v2091 = vunpack.c.h.b16 %v1936
        %v2092 = vunpack.c.l.b16 %v1937
        %v2093 = vunpack.c.h.b16 %v1937
        %v2094 = vunpack.c.l.b16 %v1938
        %v2095 = vunpack.c.h.b16 %v1938
        %v2096 = vunpack.c.l.b16 %v1939
        %v2097 = vunpack.c.h.b16 %v1939
        %v2098 = vunpack.c.l.b16 %v1940
        %v2099 = vunpack.c.h.b16 %v1940
        %v2100 = vunpack.c.l.b16 %v1941
        %v2101 = vunpack.c.h.b16 %v1941
        %v2102 = vunpack.c.l.b16 %v1942
        %v2103 = vunpack.c.h.b16 %v1942
        %v2104 = vunpack.c.l.b16 %v1943
        %v2105 = vunpack.c.h.b16 %v1943
        %v2106 = vunpack.c.l.b16 %v1944
        %v2107 = vunpack.c.h.b16 %v1944
        %v2108 = vunpack.c.l.b16 %v1945
        %v2109 = vunpack.c.h.b16 %v1945
        %v2110 = vunpack.c.l.b16 %v1946
        %v2111 = vunpack.c.h.b16 %v1946
        %v2112 = vunpack.c.l.b16 %v1947
        %v2113 = vunpack.c.h.b16 %v1947
        %v2114 = vunpack.c.l.b16 %v1948
        %v2115 = vunpack.c.h.b16 %v1948
        %v2116 = vunpack.c.l.b16 %v1949
        %v2117 = vunpack.c.h.b16 %v1949
        %v2118 = vunpack.c.l.b16 %v1950
        %v2119 = vunpack.c.h.b16 %v1950
        %v2120 = vunpack.c.l.b16 %v1951
        %v2121 = vunpack.c.h.b16 %v1951
        %v2122 = vunpack.c.l.b16 %v1952
        %v2123 = vunpack.c.h.b16 %v1952
        %v2124 = vunpack.c.l.b16 %v1953
        %v2125 = vunpack.c.h.b16 %v1953
        %v2126 = vunpack.c.l.b16 %v1954
        %v2127 = vunpack.c.h.b16 %v1954
        %v2128 = vunpack.c.l.b16 %v1955
        %v2129 = vunpack.c.h.b16 %v1955
        %v2130 = vunpack.c.l.b16 %v1956
        %v2131 = vunpack.c.h.b16 %v1956
        %v2132 = vunpack.c.l.b16 %v1957
        %v2133 = vunpack.c.h.b16 %v1957
        %v2134 = vunpack.c.l.b16 %v1958
        %v2135 = vunpack.c.h.b16 %v1958
        %v2136 = vunpack.c.l.b16 %v1959
        %v2137 = vunpack.c.h.b16 %v1959
        %v2138 = vunpack.c.l.b16 %v1960
        %v2139 = vunpack.c.h.b16 %v1960
        %v2140 = vunpack.c.l.b16 %v1961
        %v2141 = vunpack.c.h.b16 %v1961
        %v2142 = vunpack.c.l.b16 %v1962
        %v2143 = vunpack.c.h.b16 %v1962
        %v2144 = vunpack.c.l.b16 %v1963
        %v2145 = vunpack.c.h.b16 %v1963
        %v2146 = vunpack.c.l.b16 %v1964
        %v2147 = vunpack.c.h.b16 %v1964
        %v2148 = vunpack.c.l.b16 %v1965
        %v2149 = vunpack.c.h.b16 %v1965
        %v2150 = vunpack.c.l.b16 %v1966
        %v2151 = vunpack.c.h.b16 %v1966
        %v2152 = vunpack.c.l.b16 %v1967
        %v2153 = vunpack.c.h.b16 %v1967
        %v2154 = vunpack.c.l.b16 %v1968
        %v2155 = vunpack.c.h.b16 %v1968
        %v2156 = vunpack.c.l.b16 %v1969
        %v2157 = vunpack.c.h.b16 %v1969
        %v2158 = vunpack.c.l.b16 %v1970
        %v2159 = vunpack.c.h.b16 %v1970
        %v2160 = vunpack.c.l.b16 %v1971
        %v2161 = vunpack.c.h.b16 %v1971
        %v2162 = vunpack.c.l.b16 %v1972
        %v2163 = vunpack.c.h.b16 %v1972
        %v2164 = vunpack.c.l.b16 %v1973
        %v2165 = vunpack.c.h.b16 %v1973
        %v2166 = vpack.c.b16 %v2040, %v2038
        %v2167 = vpack.c.b16 %v2041, %v2039
        %v2168 = vpack.c.b16 %v2044, %v2042
        %v2169 = vpack.c.b16 %v2045, %v2043
        %v2170 = vpack.c.b16 %v2048, %v2046
        %v2171 = vpack.c.b16 %v2049, %v2047
        %v2172 = vpack.c.b16 %v2052, %v2050
        %v2173 = vpack.c.b16 %v2053, %v2051
        %v2174 = vpack.c.b16 %v2056, %v2054
        %v2175 = vpack.c.b16 %v2057, %v2055
        %v2176 = vpack.c.b16 %v2060, %v2058
        %v2177 = vpack.c.b16 %v2061, %v2059
        %v2178 = vpack.c.b16 %v2064, %v2062
        %v2179 = vpack.c.b16 %v2065, %v2063
        %v2180 = vpack.c.b16 %v2068, %v2066
        %v2181 = vpack.c.b16 %v2069, %v2067
        %v2182 = vpack.c.b16 %v2072, %v2070
        %v2183 = vpack.c.b16 %v2073, %v2071
        %v2184 = vpack.c.b16 %v2076, %v2074
        %v2185 = vpack.c.b16 %v2077, %v2075
        %v2186 = vpack.c.b16 %v2080, %v2078
        %v2187 = vpack.c.b16 %v2081, %v2079
        %v2188 = vpack.c.b16 %v2084, %v2082
        %v2189 = vpack.c.b16 %v2085, %v2083
        %v2190 = vpack.c.b16 %v2088, %v2086
        %v2191 = vpack.c.b16 %v2089, %v2087
        %v2192 = vpack.c.b16 %v2092, %v2090
        %v2193 = vpack.c.b16 %v2093, %v2091
        %v2194 = vpack.c.b16 %v2096, %v2094
        %v2195 = vpack.c.b16 %v2097, %v2095
        %v2196 = vpack.c.b16 %v2100, %v2098
        %v2197 = vpack.c.b16 %v2101, %v2099
        %v2198 = vpack.c.b16 %v2104, %v2102
        %v2199 = vpack.c.b16 %v2105, %v2103
        %v2200 = vpack.c.b16 %v2108, %v2106
        %v2201 = vpack.c.b16 %v2109, %v2107
        %v2202 = vpack.c.b16 %v2112, %v2110
        %v2203 = vpack.c.b16 %v2113, %v2111
        %v2204 = vpack.c.b16 %v2116, %v2114
        %v2205 = vpack.c.b16 %v2117, %v2115
        %v2206 = vpack.c.b16 %v2120, %v2118
        %v2207 = vpack.c.b16 %v2121, %v2119
        %v2208 = vpack.c.b16 %v2124, %v2122
        %v2209 = vpack.c.b16 %v2125, %v2123
        %v2210 = vpack.c.b16 %v2128, %v2126
        %v2211 = vpack.c.b16 %v2129, %v2127
        %v2212 = vpack.c.b16 %v2132, %v2130
        %v2213 = vpack.c.b16 %v2133, %v2131
        %v2214 = vpack.c.b16 %v2136, %v2134
        %v2215 = vpack.c.b16 %v2137, %v2135
        %v2216 = vpack.c.b16 %v2140, %v2138
        %v2217 = vpack.c.b16 %v2141, %v2139
        %v2218 = vpack.c.b16 %v2144, %v2142
        %v2219 = vpack.c.b16 %v2145, %v2143
        %v2220 = vpack.c.b16 %v2148, %v2146
        %v2221 = vpack.c.b16 %v2149, %v2147
        %v2222 = vpack.c.b16 %v2152, %v2150
        %v2223 = vpack.c.b16 %v2153, %v2151
        %v2224 = vpack.c.b16 %v2156, %v2154
        %v2225 = vpack.c.b16 %v2157, %v2155
        %v2226 = vpack.c.b16 %v2160, %v2158
        %v2227 = vpack.c.b16 %v2161, %v2159
        %v2228 = vpack.c.b16 %v2164, %v2162
        %v2229 = vpack.c.b16 %v2165, %v2163
        %2294 = vmatprep.subr.bf16.mxu0 %v2167
        %2295 = vmatpush1.bf16.msra.mxu0 %v2166
        %2296 = vmatprep.subr.bf16.mxu0 %v2169
        %2297 = vmatpush1.bf16.msra.mxu0 %v2168
        %2298 = vmatprep.subr.bf16.mxu0 %v2171
        %2299 = vmatpush1.bf16.msra.mxu0 %v2170
        %2300 = vmatprep.subr.bf16.mxu0 %v2173
        %2301 = vmatpush1.bf16.msra.mxu0 %v2172
        %2302 = vmatprep.subr.bf16.mxu0 %v2175
        %2303 = vmatpush1.bf16.msra.mxu0 %v2174
        %2304 = vmatprep.subr.bf16.mxu0 %v2177
        %2305 = vmatpush1.bf16.msra.mxu0 %v2176
        %2306 = vmatprep.subr.bf16.mxu0 %v2179
        %2307 = vmatpush1.bf16.msra.mxu0 %v2178
        %2308 = vmatprep.subr.bf16.mxu0 %v2181
        %2309 = vmatpush1.bf16.msra.mxu0 %v2180
        %2310 = vmatprep.subr.bf16.mxu0 %v2183
        %2311 = vmatpush1.bf16.msra.mxu0 %v2182
        %2312 = vmatprep.subr.bf16.mxu0 %v2185
        %2313 = vmatpush1.bf16.msra.mxu0 %v2184
        %2314 = vmatprep.subr.bf16.mxu0 %v2187
        %2315 = vmatpush1.bf16.msra.mxu0 %v2186
        %2316 = vmatprep.subr.bf16.mxu0 %v2189
        %2317 = vmatpush1.bf16.msra.mxu0 %v2188
        %2318 = vmatprep.subr.bf16.mxu0 %v2191
        %2319 = vmatpush1.bf16.msra.mxu0 %v2190
        %2320 = vmatprep.subr.bf16.mxu0 %v2193
        %2321 = vmatpush1.bf16.msra.mxu0 %v2192
        %2322 = vmatprep.subr.bf16.mxu0 %v2195
        %2323 = vmatpush1.bf16.msra.mxu0 %v2194
        %2324 = vmatprep.subr.bf16.mxu0 %v2197
        %2325 = vmatpush1.bf16.msra.mxu0 %v2196
        %2326 = vmatprep.mubr.bf16.mxu0 %v1847
        %2327 = vmatmul.mubr.bf16.gmra.mrb[0].mxu0 %v1846
        %v2328 = vpop.f32.mrb[0].mxu0
        %v2329 = vadd.f32 0.0, %v2328
        %v2330 = vpop.f32.mrb[0].mxu0
        %v2331 = vadd.f32 0.0, %v2330
        %v2332 = vpop.f32.mrb[0].mxu0
        %v2333 = vadd.f32 0.0, %v2332
        %v2334 = vpop.f32.mrb[0].mxu0
        %v2335 = vadd.f32 0.0, %v2334
        %2336 = vmatprep.mubr.bf16.mxu0 %v1851
        %2337 = vmatmul.mubr.bf16.gmra.mrb[0].mxu0 %v1850
        %v2338 = vpop.f32.mrb[0].mxu0
        %v2339 = vadd.f32 0.0, %v2338
        %v2340 = vpop.f32.mrb[0].mxu0
        %v2341 = vadd.f32 0.0, %v2340
        %v2342 = vpop.f32.mrb[0].mxu0
        %v2343 = vadd.f32 0.0, %v2342
        %v2344 = vpop.f32.mrb[0].mxu0
        %v2345 = vadd.f32 0.0, %v2344
        %2346 = vmatprep.mubr.bf16.mxu0 %v1855
        %2347 = vmatmul.mubr.bf16.gmra.mrb[0].mxu0 %v1854
        %v2348 = vpop.f32.mrb[0].mxu0
        %v2349 = vadd.f32 0.0, %v2348
        %v2350 = vpop.f32.mrb[0].mxu0
        %v2351 = vadd.f32 0.0, %v2350
        %v2352 = vpop.f32.mrb[0].mxu0
        %v2353 = vadd.f32 0.0, %v2352
        %v2354 = vpop.f32.mrb[0].mxu0
        %v2355 = vadd.f32 0.0, %v2354
        %2356 = vmatprep.mubr.bf16.mxu0 %v1859
        %2357 = vmatmul.mubr.bf16.gmra.mrb[0].mxu0 %v1858
        %v2358 = vpop.f32.mrb[0].mxu0
        %v2359 = vadd.f32 0.0, %v2358
        %v2360 = vpop.f32.mrb[0].mxu0
        %v2361 = vadd.f32 0.0, %v2360
        %v2362 = vpop.f32.mrb[0].mxu0
        %v2363 = vadd.f32 0.0, %v2362
        %v2364 = vpop.f32.mrb[0].mxu0
        %v2365 = vadd.f32 0.0, %v2364
        %2366 = vmatprep.mubr.bf16.mxu0 %v1863
        %2367 = vmatmul.mubr.bf16.gmra.mrb[0].mxu0 %v1862
        %v2368 = vpop.f32.mrb[0].mxu0
        %v2369 = vadd.f32 0.0, %v2368
        %v2370 = vpop.f32.mrb[0].mxu0
        %v2371 = vadd.f32 0.0, %v2370
        %v2372 = vpop.f32.mrb[0].mxu0
        %v2373 = vadd.f32 0.0, %v2372
        %v2374 = vpop.f32.mrb[0].mxu0
        %v2375 = vadd.f32 0.0, %v2374
        %2376 = vmatprep.mubr.bf16.mxu0 %v1867
        %2377 = vmatmul.mubr.bf16.gmra.mrb[0].mxu0 %v1866
        %v2378 = vpop.f32.mrb[0].mxu0
        %v2379 = vadd.f32 0.0, %v2378
        %v2380 = vpop.f32.mrb[0].mxu0
        %v2381 = vadd.f32 0.0, %v2380
        %v2382 = vpop.f32.mrb[0].mxu0
        %v2383 = vadd.f32 0.0, %v2382
        %v2384 = vpop.f32.mrb[0].mxu0
        %v2385 = vadd.f32 0.0, %v2384
        %2386 = vmatprep.mubr.bf16.mxu0 %v1871
        %2387 = vmatmul.mubr.bf16.gmra.mrb[0].mxu0 %v1870
        %v2388 = vpop.f32.mrb[0].mxu0
        %v2389 = vadd.f32 0.0, %v2388
        %v2390 = vpop.f32.mrb[0].mxu0
        %v2391 = vadd.f32 0.0, %v2390
        %v2392 = vpop.f32.mrb[0].mxu0
        %v2393 = vadd.f32 0.0, %v2392
        %v2394 = vpop.f32.mrb[0].mxu0
        %v2395 = vadd.f32 0.0, %v2394
        %2396 = vmatprep.mubr.bf16.mxu0 %v1875
        %2397 = vmatmul.mubr.bf16.gmra.mrb[0].mxu0 %v1874
        %v2398 = vpop.f32.mrb[0].mxu0
        %v2399 = vadd.f32 0.0, %v2398
        %v2400 = vpop.f32.mrb[0].mxu0
        %v2401 = vadd.f32 0.0, %v2400
        %v2402 = vpop.f32.mrb[0].mxu0
        %v2403 = vadd.f32 0.0, %v2402
        %v2404 = vpop.f32.mrb[0].mxu0
        %v2405 = vadd.f32 0.0, %v2404
        %2406 = vmatprep.mubr.bf16.mxu0 %v1879
        %2407 = vmatmul.mubr.bf16.gmra.mrb[0].mxu0 %v1878
        %v2408 = vpop.f32.mrb[0].mxu0
        %v2409 = vadd.f32 0.0, %v2408
        %v2410 = vpop.f32.mrb[0].mxu0
        %v2411 = vadd.f32 0.0, %v2410
        %v2412 = vpop.f32.mrb[0].mxu0
        %v2413 = vadd.f32 0.0, %v2412
        %v2414 = vpop.f32.mrb[0].mxu0
        %v2415 = vadd.f32 0.0, %v2414
        %2416 = vmatprep.mubr.bf16.mxu0 %v1883
        %2417 = vmatmul.mubr.bf16.gmra.mrb[0].mxu0 %v1882
        %v2418 = vpop.f32.mrb[0].mxu0
        %v2419 = vadd.f32 0.0, %v2418
        %v2420 = vpop.f32.mrb[0].mxu0
        %v2421 = vadd.f32 0.0, %v2420
        %v2422 = vpop.f32.mrb[0].mxu0
        %v2423 = vadd.f32 0.0, %v2422
        %v2424 = vpop.f32.mrb[0].mxu0
        %v2425 = vadd.f32 0.0, %v2424
        %2426 = vmatprep.mubr.bf16.mxu0 %v1887
        %2427 = vmatmul.mubr.bf16.gmra.mrb[0].mxu0 %v1886
        %v2428 = vpop.f32.mrb[0].mxu0
        %v2429 = vadd.f32 0.0, %v2428
        %v2430 = vpop.f32.mrb[0].mxu0
        %v2431 = vadd.f32 0.0, %v2430
        %v2432 = vpop.f32.mrb[0].mxu0
        %v2433 = vadd.f32 0.0, %v2432
        %v2434 = vpop.f32.mrb[0].mxu0
        %v2435 = vadd.f32 0.0, %v2434
        %2436 = vmatprep.mubr.bf16.mxu0 %v1891
        %2437 = vmatmul.mubr.bf16.gmra.mrb[0].mxu0 %v1890
        %v2438 = vpop.f32.mrb[0].mxu0
        %v2439 = vadd.f32 0.0, %v2438
        %v2440 = vpop.f32.mrb[0].mxu0
        %v2441 = vadd.f32 0.0, %v2440
        %v2442 = vpop.f32.mrb[0].mxu0
        %v2443 = vadd.f32 0.0, %v2442
        %v2444 = vpop.f32.mrb[0].mxu0
        %v2445 = vadd.f32 0.0, %v2444
        %2446 = vmatprep.mubr.bf16.mxu0 %v1895
        %2447 = vmatmul.mubr.bf16.gmra.mrb[0].mxu0 %v1894
        %v2448 = vpop.f32.mrb[0].mxu0
        %v2449 = vadd.f32 0.0, %v2448
        %v2450 = vpop.f32.mrb[0].mxu0
        %v2451 = vadd.f32 0.0, %v2450
        %v2452 = vpop.f32.mrb[0].mxu0
        %v2453 = vadd.f32 0.0, %v2452
        %v2454 = vpop.f32.mrb[0].mxu0
        %v2455 = vadd.f32 0.0, %v2454
        %2456 = vmatprep.mubr.bf16.mxu0 %v1899
        %2457 = vmatmul.mubr.bf16.gmra.mrb[0].mxu0 %v1898
        %v2458 = vpop.f32.mrb[0].mxu0
        %v2459 = vadd.f32 0.0, %v2458
        %v2460 = vpop.f32.mrb[0].mxu0
        %v2461 = vadd.f32 0.0, %v2460
        %v2462 = vpop.f32.mrb[0].mxu0
        %v2463 = vadd.f32 0.0, %v2462
        %v2464 = vpop.f32.mrb[0].mxu0
        %v2465 = vadd.f32 0.0, %v2464
        %2466 = vmatprep.mubr.bf16.mxu0 %v1903
        %2467 = vmatmul.mubr.bf16.gmra.mrb[0].mxu0 %v1902
        %v2468 = vpop.f32.mrb[0].mxu0
        %v2469 = vadd.f32 0.0, %v2468
        %v2470 = vpop.f32.mrb[0].mxu0
        %v2471 = vadd.f32 0.0, %v2470
        %v2472 = vpop.f32.mrb[0].mxu0
        %v2473 = vadd.f32 0.0, %v2472
        %v2474 = vpop.f32.mrb[0].mxu0
        %v2475 = vadd.f32 0.0, %v2474
        %2476 = vmatprep.mubr.bf16.mxu0 %v1907
        %2477 = vmatmul.mubr.bf16.gmra.mrb[0].mxu0 %v1906
        %v2478 = vpop.f32.mrb[0].mxu0
        %v2479 = vadd.f32 0.0, %v2478
        %v2480 = vpop.f32.mrb[0].mxu0
        %v2481 = vadd.f32 0.0, %v2480
        %v2482 = vpop.f32.mrb[0].mxu0
        %v2483 = vadd.f32 0.0, %v2482
        %v2484 = vpop.f32.mrb[0].mxu0
        %v2485 = vadd.f32 0.0, %v2484
        %2486 = vdwg.mxu0
        %2487 = vmatprep.subr.bf16.mxu0 %v2199
        %2488 = vmatpush1.bf16.msra.mxu0 %v2198
        %2489 = vmatprep.subr.bf16.mxu0 %v2201
        %2490 = vmatpush1.bf16.msra.mxu0 %v2200
        %2491 = vmatprep.subr.bf16.mxu0 %v2203
        %2492 = vmatpush1.bf16.msra.mxu0 %v2202
        %2493 = vmatprep.subr.bf16.mxu0 %v2205
        %2494 = vmatpush1.bf16.msra.mxu0 %v2204
        %2495 = vmatprep.subr.bf16.mxu0 %v2207
        %2496 = vmatpush1.bf16.msra.mxu0 %v2206
        %2497 = vmatprep.subr.bf16.mxu0 %v2209
        %2498 = vmatpush1.bf16.msra.mxu0 %v2208
        %2499 = vmatprep.subr.bf16.mxu0 %v2211
        %2500 = vmatpush1.bf16.msra.mxu0 %v2210
        %2501 = vmatprep.subr.bf16.mxu0 %v2213
        %2502 = vmatpush1.bf16.msra.mxu0 %v2212
        %2503 = vmatprep.subr.bf16.mxu0 %v2215
        %2504 = vmatpush1.bf16.msra.mxu0 %v2214
        %2505 = vmatprep.subr.bf16.mxu0 %v2217
        %2506 = vmatpush1.bf16.msra.mxu0 %v2216
        %2507 = vmatprep.subr.bf16.mxu0 %v2219
        %2508 = vmatpush1.bf16.msra.mxu0 %v2218
        %2509 = vmatprep.subr.bf16.mxu0 %v2221
        %2510 = vmatpush1.bf16.msra.mxu0 %v2220
        %2511 = vmatprep.subr.bf16.mxu0 %v2223
        %2512 = vmatpush1.bf16.msra.mxu0 %v2222
        %2513 = vmatprep.subr.bf16.mxu0 %v2225
        %2514 = vmatpush1.bf16.msra.mxu0 %v2224
        %2515 = vmatprep.subr.bf16.mxu0 %v2227
        %2516 = vmatpush1.bf16.msra.mxu0 %v2226
        %2517 = vmatprep.subr.bf16.mxu0 %v2229
        %2518 = vmatpush1.bf16.msra.mxu0 %v2228
        %2519 = vmatprep.mubr.bf16.mxu0 %v1849
        %2520 = vmatmul.mubr.bf16.gmra.mrb[0].mxu0 %v1848
        %v2521 = vpop.f32.mrb[0].mxu0
        %v2522 = vadd.f32 %v2329, %v2521
        %v2523 = vpop.f32.mrb[0].mxu0
        %v2524 = vadd.f32 %v2331, %v2523
        %v2525 = vpop.f32.mrb[0].mxu0
        %v2526 = vadd.f32 %v2333, %v2525
        %v2527 = vpop.f32.mrb[0].mxu0
        %v2528 = vadd.f32 %v2335, %v2527
        %2529 = vmatprep.mubr.bf16.mxu0 %v1853
        %2530 = vmatmul.mubr.bf16.gmra.mrb[0].mxu0 %v1852
        %v2531 = vpop.f32.mrb[0].mxu0
        %v2532 = vadd.f32 %v2339, %v2531
        %v2533 = vpop.f32.mrb[0].mxu0
        %v2534 = vadd.f32 %v2341, %v2533
        %v2535 = vpop.f32.mrb[0].mxu0
        %v2536 = vadd.f32 %v2343, %v2535
        %v2537 = vpop.f32.mrb[0].mxu0
        %v2538 = vadd.f32 %v2345, %v2537
        %2539 = vmatprep.mubr.bf16.mxu0 %v1857
        %2540 = vmatmul.mubr.bf16.gmra.mrb[0].mxu0 %v1856
        %v2541 = vpop.f32.mrb[0].mxu0
        %v2542 = vadd.f32 %v2349, %v2541
        %v2543 = vpop.f32.mrb[0].mxu0
        %v2544 = vadd.f32 %v2351, %v2543
        %v2545 = vpop.f32.mrb[0].mxu0
        %v2546 = vadd.f32 %v2353, %v2545
        %v2547 = vpop.f32.mrb[0].mxu0
        %v2548 = vadd.f32 %v2355, %v2547
        %2549 = vmatprep.mubr.bf16.mxu0 %v1861
        %2550 = vmatmul.mubr.bf16.gmra.mrb[0].mxu0 %v1860
        %v2551 = vpop.f32.mrb[0].mxu0
        %v2552 = vadd.f32 %v2359, %v2551
        %v2553 = vpop.f32.mrb[0].mxu0
        %v2554 = vadd.f32 %v2361, %v2553
        %v2555 = vpop.f32.mrb[0].mxu0
        %v2556 = vadd.f32 %v2363, %v2555
        %v2557 = vpop.f32.mrb[0].mxu0
        %v2558 = vadd.f32 %v2365, %v2557
        %2559 = vmatprep.mubr.bf16.mxu0 %v1865
        %2560 = vmatmul.mubr.bf16.gmra.mrb[0].mxu0 %v1864
        %v2561 = vpop.f32.mrb[0].mxu0
        %v2562 = vadd.f32 %v2369, %v2561
        %v2563 = vpop.f32.mrb[0].mxu0
        %v2564 = vadd.f32 %v2371, %v2563
        %v2565 = vpop.f32.mrb[0].mxu0
        %v2566 = vadd.f32 %v2373, %v2565
        %v2567 = vpop.f32.mrb[0].mxu0
        %v2568 = vadd.f32 %v2375, %v2567
        %2569 = vmatprep.mubr.bf16.mxu0 %v1869
        %2570 = vmatmul.mubr.bf16.gmra.mrb[0].mxu0 %v1868
        %v2571 = vpop.f32.mrb[0].mxu0
        %v2572 = vadd.f32 %v2379, %v2571
        %v2573 = vpop.f32.mrb[0].mxu0
        %v2574 = vadd.f32 %v2381, %v2573
        %v2575 = vpop.f32.mrb[0].mxu0
        %v2576 = vadd.f32 %v2383, %v2575
        %v2577 = vpop.f32.mrb[0].mxu0
        %v2578 = vadd.f32 %v2385, %v2577
        %2579 = vmatprep.mubr.bf16.mxu0 %v1873
        %2580 = vmatmul.mubr.bf16.gmra.mrb[0].mxu0 %v1872
        %v2581 = vpop.f32.mrb[0].mxu0
        %v2582 = vadd.f32 %v2389, %v2581
        %v2583 = vpop.f32.mrb[0].mxu0
        %v2584 = vadd.f32 %v2391, %v2583
        %v2585 = vpop.f32.mrb[0].mxu0
        %v2586 = vadd.f32 %v2393, %v2585
        %v2587 = vpop.f32.mrb[0].mxu0
        %v2588 = vadd.f32 %v2395, %v2587
        %2589 = vmatprep.mubr.bf16.mxu0 %v1877
        %2590 = vmatmul.mubr.bf16.gmra.mrb[0].mxu0 %v1876
        %v2591 = vpop.f32.mrb[0].mxu0
        %v2592 = vadd.f32 %v2399, %v2591
        %v2593 = vpop.f32.mrb[0].mxu0
        %v2594 = vadd.f32 %v2401, %v2593
        %v2595 = vpop.f32.mrb[0].mxu0
        %v2596 = vadd.f32 %v2403, %v2595
        %v2597 = vpop.f32.mrb[0].mxu0
        %v2598 = vadd.f32 %v2405, %v2597
        %2599 = vmatprep.mubr.bf16.mxu0 %v1881
        %2600 = vmatmul.mubr.bf16.gmra.mrb[0].mxu0 %v1880
        %v2601 = vpop.f32.mrb[0].mxu0
        %v2602 = vadd.f32 %v2409, %v2601
        %v2603 = vpop.f32.mrb[0].mxu0
        %v2604 = vadd.f32 %v2411, %v2603
        %v2605 = vpop.f32.mrb[0].mxu0
        %v2606 = vadd.f32 %v2413, %v2605
        %v2607 = vpop.f32.mrb[0].mxu0
        %v2608 = vadd.f32 %v2415, %v2607
        %2609 = vmatprep.mubr.bf16.mxu0 %v1885
        %2610 = vmatmul.mubr.bf16.gmra.mrb[0].mxu0 %v1884
        %v2611 = vpop.f32.mrb[0].mxu0
        %v2612 = vadd.f32 %v2419, %v2611
        %v2613 = vpop.f32.mrb[0].mxu0
        %v2614 = vadd.f32 %v2421, %v2613
        %v2615 = vpop.f32.mrb[0].mxu0
        %v2616 = vadd.f32 %v2423, %v2615
        %v2617 = vpop.f32.mrb[0].mxu0
        %v2618 = vadd.f32 %v2425, %v2617
        %2619 = vmatprep.mubr.bf16.mxu0 %v1889
        %2620 = vmatmul.mubr.bf16.gmra.mrb[0].mxu0 %v1888
        %v2621 = vpop.f32.mrb[0].mxu0
        %v2622 = vadd.f32 %v2429, %v2621
        %v2623 = vpop.f32.mrb[0].mxu0
        %v2624 = vadd.f32 %v2431, %v2623
        %v2625 = vpop.f32.mrb[0].mxu0
        %v2626 = vadd.f32 %v2433, %v2625
        %v2627 = vpop.f32.mrb[0].mxu0
        %v2628 = vadd.f32 %v2435, %v2627
        %2629 = vmatprep.mubr.bf16.mxu0 %v1893
        %2630 = vmatmul.mubr.bf16.gmra.mrb[0].mxu0 %v1892
        %v2631 = vpop.f32.mrb[0].mxu0
        %v2632 = vadd.f32 %v2439, %v2631
        %v2633 = vpop.f32.mrb[0].mxu0
        %v2634 = vadd.f32 %v2441, %v2633
        %v2635 = vpop.f32.mrb[0].mxu0
        %v2636 = vadd.f32 %v2443, %v2635
        %v2637 = vpop.f32.mrb[0].mxu0
        %v2638 = vadd.f32 %v2445, %v2637
        %2639 = vmatprep.mubr.bf16.mxu0 %v1897
        %2640 = vmatmul.mubr.bf16.gmra.mrb[0].mxu0 %v1896
        %v2641 = vpop.f32.mrb[0].mxu0
        %v2642 = vadd.f32 %v2449, %v2641
        %v2643 = vpop.f32.mrb[0].mxu0
        %v2644 = vadd.f32 %v2451, %v2643
        %v2645 = vpop.f32.mrb[0].mxu0
        %v2646 = vadd.f32 %v2453, %v2645
        %v2647 = vpop.f32.mrb[0].mxu0
        %v2648 = vadd.f32 %v2455, %v2647
        %2649 = vmatprep.mubr.bf16.mxu0 %v1901
        %2650 = vmatmul.mubr.bf16.gmra.mrb[0].mxu0 %v1900
        %v2651 = vpop.f32.mrb[0].mxu0
        %v2652 = vadd.f32 %v2459, %v2651
        %v2653 = vpop.f32.mrb[0].mxu0
        %v2654 = vadd.f32 %v2461, %v2653
        %v2655 = vpop.f32.mrb[0].mxu0
        %v2656 = vadd.f32 %v2463, %v2655
        %v2657 = vpop.f32.mrb[0].mxu0
        %v2658 = vadd.f32 %v2465, %v2657
        %2659 = vmatprep.mubr.bf16.mxu0 %v1905
        %2660 = vmatmul.mubr.bf16.gmra.mrb[0].mxu0 %v1904
        %v2661 = vpop.f32.mrb[0].mxu0
        %v2662 = vadd.f32 %v2469, %v2661
        %v2663 = vpop.f32.mrb[0].mxu0
        %v2664 = vadd.f32 %v2471, %v2663
        %v2665 = vpop.f32.mrb[0].mxu0
        %v2666 = vadd.f32 %v2473, %v2665
        %v2667 = vpop.f32.mrb[0].mxu0
        %v2668 = vadd.f32 %v2475, %v2667
        %2669 = vmatprep.mubr.bf16.mxu0 %v1909
        %2670 = vmatmul.mubr.bf16.gmra.mrb[0].mxu0 %v1908
        %v2671 = vpop.f32.mrb[0].mxu0
        %v2672 = vadd.f32 %v2479, %v2671
        %v2673 = vpop.f32.mrb[0].mxu0
        %v2674 = vadd.f32 %v2481, %v2673
        %v2675 = vpop.f32.mrb[0].mxu0
        %v2676 = vadd.f32 %v2483, %v2675
        %v2677 = vpop.f32.mrb[0].mxu0
        %v2678 = vadd.f32 %v2485, %v2677
        %2679 = vdwg.mxu0
        %v2680 = vadd.f32 %v1782, %v2522
        %v2681 = vadd.f32 %v1783, %v2524
        %v2682 = vadd.f32 %v1784, %v2526
        %v2683 = vadd.f32 %v1785, %v2528
        %v2684 = vadd.f32 %v1786, %v2532
        %v2685 = vadd.f32 %v1787, %v2534
        %v2686 = vadd.f32 %v1788, %v2536
        %v2687 = vadd.f32 %v1789, %v2538
        %v2688 = vadd.f32 %v1790, %v2542
        %v2689 = vadd.f32 %v1791, %v2544
        %v2690 = vadd.f32 %v1792, %v2546
        %v2691 = vadd.f32 %v1793, %v2548
        %v2692 = vadd.f32 %v1794, %v2552
        %v2693 = vadd.f32 %v1795, %v2554
        %v2694 = vadd.f32 %v1796, %v2556
        %v2695 = vadd.f32 %v1797, %v2558
        %v2696 = vadd.f32 %v1798, %v2562
        %v2697 = vadd.f32 %v1799, %v2564
        %v2698 = vadd.f32 %v1800, %v2566
        %v2699 = vadd.f32 %v1801, %v2568
        %v2700 = vadd.f32 %v1802, %v2572
        %v2701 = vadd.f32 %v1803, %v2574
        %v2702 = vadd.f32 %v1804, %v2576
        %v2703 = vadd.f32 %v1805, %v2578
        %v2704 = vadd.f32 %v1806, %v2582
        %v2705 = vadd.f32 %v1807, %v2584
        %v2706 = vadd.f32 %v1808, %v2586
        %v2707 = vadd.f32 %v1809, %v2588
        %v2708 = vadd.f32 %v1810, %v2592
        %v2709 = vadd.f32 %v1811, %v2594
        %v2710 = vadd.f32 %v1812, %v2596
        %v2711 = vadd.f32 %v1813, %v2598
        %v2712 = vadd.f32 %v1814, %v2602
        %v2713 = vadd.f32 %v1815, %v2604
        %v2714 = vadd.f32 %v1816, %v2606
        %v2715 = vadd.f32 %v1817, %v2608
        %v2716 = vadd.f32 %v1818, %v2612
        %v2717 = vadd.f32 %v1819, %v2614
        %v2718 = vadd.f32 %v1820, %v2616
        %v2719 = vadd.f32 %v1821, %v2618
        %v2720 = vadd.f32 %v1822, %v2622
        %v2721 = vadd.f32 %v1823, %v2624
        %v2722 = vadd.f32 %v1824, %v2626
        %v2723 = vadd.f32 %v1825, %v2628
        %v2724 = vadd.f32 %v1826, %v2632
        %v2725 = vadd.f32 %v1827, %v2634
        %v2726 = vadd.f32 %v1828, %v2636
        %v2727 = vadd.f32 %v1829, %v2638
        %v2728 = vadd.f32 %v1830, %v2642
        %v2729 = vadd.f32 %v1831, %v2644
        %v2730 = vadd.f32 %v1832, %v2646
        %v2731 = vadd.f32 %v1833, %v2648
        %v2732 = vadd.f32 %v1834, %v2652
        %v2733 = vadd.f32 %v1835, %v2654
        %v2734 = vadd.f32 %v1836, %v2656
        %v2735 = vadd.f32 %v1837, %v2658
        %v2736 = vadd.f32 %v1838, %v2662
        %v2737 = vadd.f32 %v1839, %v2664
        %v2738 = vadd.f32 %v1840, %v2666
        %v2739 = vadd.f32 %v1841, %v2668
        %v2740 = vadd.f32 %v1842, %v2672
        %v2741 = vadd.f32 %v1843, %v2674
        %v2742 = vadd.f32 %v1844, %v2676
        %v2743 = vadd.f32 %v1845, %v2678
        %2744 = vst [vmem:[#allocation2] sm:$0xff] %v2680
        %2745 = vst [vmem:[#allocation2 + $0x8] sm:$0xff] %v2681
        %2746 = vst [vmem:[#allocation2 + $0x10] sm:$0xff] %v2682
        %2747 = vst [vmem:[#allocation2 + $0x18] sm:$0xff] %v2683
        %2748 = vst [vmem:[#allocation2 + $0x20] sm:$0xff] %v2684
        %2749 = vst [vmem:[#allocation2 + $0x28] sm:$0xff] %v2685
        %2750 = vst [vmem:[#allocation2 + $0x30] sm:$0xff] %v2686
        %2751 = vst [vmem:[#allocation2 + $0x38] sm:$0xff] %v2687
        %2752 = vst [vmem:[#allocation2 + $0x40] sm:$0xff] %v2688
        %2753 = vst [vmem:[#allocation2 + $0x48] sm:$0xff] %v2689
        %2754 = vst [vmem:[#allocation2 + $0x50] sm:$0xff] %v2690
        %2755 = vst [vmem:[#allocation2 + $0x58] sm:$0xff] %v2691
        %2756 = vst [vmem:[#allocation2 + $0x60] sm:$0xff] %v2692
        %2757 = vst [vmem:[#allocation2 + $0x68] sm:$0xff] %v2693
        %2758 = vst [vmem:[#allocation2 + $0x70] sm:$0xff] %v2694
        %2759 = vst [vmem:[#allocation2 + $0x78] sm:$0xff] %v2695
        %2760 = vst [vmem:[#allocation2 + $0x80] sm:$0xff] %v2696
        %2761 = vst [vmem:[#allocation2 + $0x88] sm:$0xff] %v2697
        %2762 = vst [vmem:[#allocation2 + $0x90] sm:$0xff] %v2698
        %2763 = vst [vmem:[#allocation2 + $0x98] sm:$0xff] %v2699
        %2764 = vst [vmem:[#allocation2 + $0xa0] sm:$0xff] %v2700
        %2765 = vst [vmem:[#allocation2 + $0xa8] sm:$0xff] %v2701
        %2766 = vst [vmem:[#allocation2 + $0xb0] sm:$0xff] %v2702
        %2767 = vst [vmem:[#allocation2 + $0xb8] sm:$0xff] %v2703
        %2768 = vst [vmem:[#allocation2 + $0xc0] sm:$0xff] %v2704
        %2769 = vst [vmem:[#allocation2 + $0xc8] sm:$0xff] %v2705
        %2770 = vst [vmem:[#allocation2 + $0xd0] sm:$0xff] %v2706
        %2771 = vst [vmem:[#allocation2 + $0xd8] sm:$0xff] %v2707
        %2772 = vst [vmem:[#allocation2 + $0xe0] sm:$0xff] %v2708
        %2773 = vst [vmem:[#allocation2 + $0xe8] sm:$0xff] %v2709
        %2774 = vst [vmem:[#allocation2 + $0xf0] sm:$0xff] %v2710
        %2775 = vst [vmem:[#allocation2 + $0xf8] sm:$0xff] %v2711
        %2776 = vst [vmem:[#allocation2 + $0x100] sm:$0xff] %v2712
        %2777 = vst [vmem:[#allocation2 + $0x108] sm:$0xff] %v2713
        %2778 = vst [vmem:[#allocation2 + $0x110] sm:$0xff] %v2714
        %2779 = vst [vmem:[#allocation2 + $0x118] sm:$0xff] %v2715
        %2780 = vst [vmem:[#allocation2 + $0x120] sm:$0xff] %v2716
        %2781 = vst [vmem:[#allocation2 + $0x128] sm:$0xff] %v2717
        %2782 = vst [vmem:[#allocation2 + $0x130] sm:$0xff] %v2718
        %2783 = vst [vmem:[#allocation2 + $0x138] sm:$0xff] %v2719
        %2784 = vst [vmem:[#allocation2 + $0x140] sm:$0xff] %v2720
        %2785 = vst [vmem:[#allocation2 + $0x148] sm:$0xff] %v2721
        %2786 = vst [vmem:[#allocation2 + $0x150] sm:$0xff] %v2722
        %2787 = vst [vmem:[#allocation2 + $0x158] sm:$0xff] %v2723
        %2788 = vst [vmem:[#allocation2 + $0x160] sm:$0xff] %v2724
        %2789 = vst [vmem:[#allocation2 + $0x168] sm:$0xff] %v2725
        %2790 = vst [vmem:[#allocation2 + $0x170] sm:$0xff] %v2726
        %2791 = vst [vmem:[#allocation2 + $0x178] sm:$0xff] %v2727
        %2792 = vst [vmem:[#allocation2 + $0x180] sm:$0xff] %v2728
        %2793 = vst [vmem:[#allocation2 + $0x188] sm:$0xff] %v2729
        %2794 = vst [vmem:[#allocation2 + $0x190] sm:$0xff] %v2730
        %2795 = vst [vmem:[#allocation2 + $0x198] sm:$0xff] %v2731
        %2796 = vst [vmem:[#allocation2 + $0x1a0] sm:$0xff] %v2732
        %2797 = vst [vmem:[#allocation2 + $0x1a8] sm:$0xff] %v2733
        %2798 = vst [vmem:[#allocation2 + $0x1b0] sm:$0xff] %v2734
        %2799 = vst [vmem:[#allocation2 + $0x1b8] sm:$0xff] %v2735
        %2800 = vst [vmem:[#allocation2 + $0x1c0] sm:$0xff] %v2736
        %2801 = vst [vmem:[#allocation2 + $0x1c8] sm:$0xff] %v2737
        %2802 = vst [vmem:[#allocation2 + $0x1d0] sm:$0xff] %v2738
        %2803 = vst [vmem:[#allocation2 + $0x1d8] sm:$0xff] %v2739
        %2804 = vst [vmem:[#allocation2 + $0x1e0] sm:$0xff] %v2740
        %2805 = vst [vmem:[#allocation2 + $0x1e8] sm:$0xff] %v2741
        %2806 = vst [vmem:[#allocation2 + $0x1f0] sm:$0xff] %v2742
        %2807 = vst [vmem:[#allocation2 + $0x1f8] sm:$0xff] %v2743
        %p2808 = scmp.eq.s32.totalorder %s24, 1
        // Predicated region
        $region98: #{network_forward.1} parent=84 // pred_check
          %p2809 = pneg %p2808
        $region99: #{network_forward.1} parent=84 // pred_check_branch
          %2811 = sbr.rel (%p2809) target = $region101
        $region100: #{network_forward.1} parent=84 // pred_region
          %v2812 = vld [vmem:[#allocation2] sm:$0xff]
          %v2813 = vld [vmem:[#allocation2 + $0x8] sm:$0xff]
          %v2814 = vld [vmem:[#allocation2 + $0x10] sm:$0xff]
          %v2815 = vld [vmem:[#allocation2 + $0x18] sm:$0xff]
          %v2816 = vld [vmem:[#allocation2 + $0x20] sm:$0xff]
          %v2817 = vld [vmem:[#allocation2 + $0x28] sm:$0xff]
          %v2818 = vld [vmem:[#allocation2 + $0x30] sm:$0xff]
          %v2819 = vld [vmem:[#allocation2 + $0x38] sm:$0xff]
          %v2820 = vld [vmem:[#allocation2 + $0x40] sm:$0xff]
          %v2821 = vld [vmem:[#allocation2 + $0x48] sm:$0xff]
          %v2822 = vld [vmem:[#allocation2 + $0x50] sm:$0xff]
          %v2823 = vld [vmem:[#allocation2 + $0x58] sm:$0xff]
          %v2824 = vld [vmem:[#allocation2 + $0x60] sm:$0xff]
          %v2825 = vld [vmem:[#allocation2 + $0x68] sm:$0xff]
          %v2826 = vld [vmem:[#allocation2 + $0x70] sm:$0xff]
          %v2827 = vld [vmem:[#allocation2 + $0x78] sm:$0xff]
          %v2828 = vld [vmem:[#allocation2 + $0x80] sm:$0xff]
          %v2829 = vld [vmem:[#allocation2 + $0x88] sm:$0xff]
          %v2830 = vld [vmem:[#allocation2 + $0x90] sm:$0xff]
          %v2831 = vld [vmem:[#allocation2 + $0x98] sm:$0xff]
          %v2832 = vld [vmem:[#allocation2 + $0xa0] sm:$0xff]
          %v2833 = vld [vmem:[#allocation2 + $0xa8] sm:$0xff]
          %v2834 = vld [vmem:[#allocation2 + $0xb0] sm:$0xff]
          %v2835 = vld [vmem:[#allocation2 + $0xb8] sm:$0xff]
          %v2836 = vld [vmem:[#allocation2 + $0xc0] sm:$0xff]
          %v2837 = vld [vmem:[#allocation2 + $0xc8] sm:$0xff]
          %v2838 = vld [vmem:[#allocation2 + $0xd0] sm:$0xff]
          %v2839 = vld [vmem:[#allocation2 + $0xd8] sm:$0xff]
          %v2840 = vld [vmem:[#allocation2 + $0xe0] sm:$0xff]
          %v2841 = vld [vmem:[#allocation2 + $0xe8] sm:$0xff]
          %v2842 = vld [vmem:[#allocation2 + $0xf0] sm:$0xff]
          %v2843 = vld [vmem:[#allocation2 + $0xf8] sm:$0xff]
          %v2844 = vld [vmem:[#allocation2 + $0x100] sm:$0xff]
          %v2845 = vld [vmem:[#allocation2 + $0x108] sm:$0xff]
          %v2846 = vld [vmem:[#allocation2 + $0x110] sm:$0xff]
          %v2847 = vld [vmem:[#allocation2 + $0x118] sm:$0xff]
          %v2848 = vld [vmem:[#allocation2 + $0x120] sm:$0xff]
          %v2849 = vld [vmem:[#allocation2 + $0x128] sm:$0xff]
          %v2850 = vld [vmem:[#allocation2 + $0x130] sm:$0xff]
          %v2851 = vld [vmem:[#allocation2 + $0x138] sm:$0xff]
          %v2852 = vld [vmem:[#allocation2 + $0x140] sm:$0xff]
          %v2853 = vld [vmem:[#allocation2 + $0x148] sm:$0xff]
          %v2854 = vld [vmem:[#allocation2 + $0x150] sm:$0xff]
          %v2855 = vld [vmem:[#allocation2 + $0x158] sm:$0xff]
          %v2856 = vld [vmem:[#allocation2 + $0x160] sm:$0xff]
          %v2857 = vld [vmem:[#allocation2 + $0x168] sm:$0xff]
          %v2858 = vld [vmem:[#allocation2 + $0x170] sm:$0xff]
          %v2859 = vld [vmem:[#allocation2 + $0x178] sm:$0xff]
          %v2860 = vld [vmem:[#allocation2 + $0x180] sm:$0xff]
          %v2861 = vld [vmem:[#allocation2 + $0x188] sm:$0xff]
          %v2862 = vld [vmem:[#allocation2 + $0x190] sm:$0xff]
          %v2863 = vld [vmem:[#allocation2 + $0x198] sm:$0xff]
          %v2864 = vld [vmem:[#allocation2 + $0x1a0] sm:$0xff]
          %v2865 = vld [vmem:[#allocation2 + $0x1a8] sm:$0xff]
          %v2866 = vld [vmem:[#allocation2 + $0x1b0] sm:$0xff]
          %v2867 = vld [vmem:[#allocation2 + $0x1b8] sm:$0xff]
          %v2868 = vld [vmem:[#allocation2 + $0x1c0] sm:$0xff]
          %v2869 = vld [vmem:[#allocation2 + $0x1c8] sm:$0xff]
          %v2870 = vld [vmem:[#allocation2 + $0x1d0] sm:$0xff]
          %v2871 = vld [vmem:[#allocation2 + $0x1d8] sm:$0xff]
          %v2872 = vld [vmem:[#allocation2 + $0x1e0] sm:$0xff]
          %v2873 = vld [vmem:[#allocation2 + $0x1e8] sm:$0xff]
          %v2874 = vld [vmem:[#allocation2 + $0x1f0] sm:$0xff]
          %v2875 = vld [vmem:[#allocation2 + $0x1f8] sm:$0xff]
          %2876 = vst [vmem:[%s794] sm:$0xff] %v2812
          %2877 = vst [vmem:[%s794 + $0x8] sm:$0xff] %v2813
          %2878 = vst [vmem:[%s794 + $0x10] sm:$0xff] %v2814
          %2879 = vst [vmem:[%s794 + $0x18] sm:$0xff] %v2815
          %2880 = vst [vmem:[%s794 + $0x20] sm:$0xff] %v2816
          %2881 = vst [vmem:[%s794 + $0x28] sm:$0xff] %v2817
          %2882 = vst [vmem:[%s794 + $0x30] sm:$0xff] %v2818
          %2883 = vst [vmem:[%s794 + $0x38] sm:$0xff] %v2819
          %2884 = vst [vmem:[%s794 + $0x40] sm:$0xff] %v2820
          %2885 = vst [vmem:[%s794 + $0x48] sm:$0xff] %v2821
          %2886 = vst [vmem:[%s794 + $0x50] sm:$0xff] %v2822
          %2887 = vst [vmem:[%s794 + $0x58] sm:$0xff] %v2823
          %2888 = vst [vmem:[%s794 + $0x60] sm:$0xff] %v2824
          %2889 = vst [vmem:[%s794 + $0x68] sm:$0xff] %v2825
          %2890 = vst [vmem:[%s794 + $0x70] sm:$0xff] %v2826
          %2891 = vst [vmem:[%s794 + $0x78] sm:$0xff] %v2827
          %2892 = vst [vmem:[%s794 + $0x80] sm:$0xff] %v2828
          %2893 = vst [vmem:[%s794 + $0x88] sm:$0xff] %v2829
          %2894 = vst [vmem:[%s794 + $0x90] sm:$0xff] %v2830
          %2895 = vst [vmem:[%s794 + $0x98] sm:$0xff] %v2831
          %2896 = vst [vmem:[%s794 + $0xa0] sm:$0xff] %v2832
          %2897 = vst [vmem:[%s794 + $0xa8] sm:$0xff] %v2833
          %2898 = vst [vmem:[%s794 + $0xb0] sm:$0xff] %v2834
          %2899 = vst [vmem:[%s794 + $0xb8] sm:$0xff] %v2835
          %2900 = vst [vmem:[%s794 + $0xc0] sm:$0xff] %v2836
          %2901 = vst [vmem:[%s794 + $0xc8] sm:$0xff] %v2837
          %2902 = vst [vmem:[%s794 + $0xd0] sm:$0xff] %v2838
          %2903 = vst [vmem:[%s794 + $0xd8] sm:$0xff] %v2839
          %2904 = vst [vmem:[%s794 + $0xe0] sm:$0xff] %v2840
          %2905 = vst [vmem:[%s794 + $0xe8] sm:$0xff] %v2841
          %2906 = vst [vmem:[%s794 + $0xf0] sm:$0xff] %v2842
          %2907 = vst [vmem:[%s794 + $0xf8] sm:$0xff] %v2843
          %2908 = vst [vmem:[%s794 + $0x100] sm:$0xff] %v2844
          %2909 = vst [vmem:[%s794 + $0x108] sm:$0xff] %v2845
          %2910 = vst [vmem:[%s794 + $0x110] sm:$0xff] %v2846
          %2911 = vst [vmem:[%s794 + $0x118] sm:$0xff] %v2847
          %2912 = vst [vmem:[%s794 + $0x120] sm:$0xff] %v2848
          %2913 = vst [vmem:[%s794 + $0x128] sm:$0xff] %v2849
          %2914 = vst [vmem:[%s794 + $0x130] sm:$0xff] %v2850
          %2915 = vst [vmem:[%s794 + $0x138] sm:$0xff] %v2851
          %2916 = vst [vmem:[%s794 + $0x140] sm:$0xff] %v2852
          %2917 = vst [vmem:[%s794 + $0x148] sm:$0xff] %v2853
          %2918 = vst [vmem:[%s794 + $0x150] sm:$0xff] %v2854
          %2919 = vst [vmem:[%s794 + $0x158] sm:$0xff] %v2855
          %2920 = vst [vmem:[%s794 + $0x160] sm:$0xff] %v2856
          %2921 = vst [vmem:[%s794 + $0x168] sm:$0xff] %v2857
          %2922 = vst [vmem:[%s794 + $0x170] sm:$0xff] %v2858
          %2923 = vst [vmem:[%s794 + $0x178] sm:$0xff] %v2859
          %2924 = vst [vmem:[%s794 + $0x180] sm:$0xff] %v2860
          %2925 = vst [vmem:[%s794 + $0x188] sm:$0xff] %v2861
          %2926 = vst [vmem:[%s794 + $0x190] sm:$0xff] %v2862
          %2927 = vst [vmem:[%s794 + $0x198] sm:$0xff] %v2863
          %2928 = vst [vmem:[%s794 + $0x1a0] sm:$0xff] %v2864
          %2929 = vst [vmem:[%s794 + $0x1a8] sm:$0xff] %v2865
          %2930 = vst [vmem:[%s794 + $0x1b0] sm:$0xff] %v2866
          %2931 = vst [vmem:[%s794 + $0x1b8] sm:$0xff] %v2867
          %2932 = vst [vmem:[%s794 + $0x1c0] sm:$0xff] %v2868
          %2933 = vst [vmem:[%s794 + $0x1c8] sm:$0xff] %v2869
          %2934 = vst [vmem:[%s794 + $0x1d0] sm:$0xff] %v2870
          %2935 = vst [vmem:[%s794 + $0x1d8] sm:$0xff] %v2871
          %2936 = vst [vmem:[%s794 + $0x1e0] sm:$0xff] %v2872
          %2937 = vst [vmem:[%s794 + $0x1e8] sm:$0xff] %v2873
          %2938 = vst [vmem:[%s794 + $0x1f0] sm:$0xff] %v2874
          %2939 = vst [vmem:[%s794 + $0x1f8] sm:$0xff] %v2875
        $region101: #{network_forward.1} parent=84 // pred_fallthru
          _
        %s2940 = sand.u32 %s128, 1
        %s2941 = scalar_lea.sflag [#allocation6], %s2940
        %s2942 = sand.u32 %s128, 1
        %s2943 = smul.addr %s2942, 512
        %s2944 = scalar_lea.vmem [#allocation5], %s2943
        // Predicated region
        $region102: #{network_forward.1} parent=84 // pred_check
          %p2945 = pneg %p138
        $region103: #{network_forward.1} parent=84 // pred_check_branch
          %2947 = sbr.rel (%p2945) target = $region105
        $region104: #{network_forward.1} parent=84 // pred_region
          %s2948 = smul.u32 32, %s22
          %s2949 = smul.u32 2, %s23
          %s2951 = ssub.s32 8192, 8192
          %2952 = vsyncadd %s2941, %s2951
          %s2953 = smul.addr %s2948, 4
          %s2954 = sadd.s32 %s2949, %s2953
          %s2955 = smul.addr %s2954, 128
          %s2956 = scalar_lea.hbm %s3, %s2955
          %s2957 = sshll.u32 %s2944, 4
          %s2958 = int_to_ptr.vmem [resolvable:$true] %s2957
          %2963 = dma.vmem_to_hbm [thread:$0]  %s2958, 8192, %s2956, %s2941, 256, 512, 16
        $region105: #{network_forward.1} parent=84 // pred_fallthru
          _
      $region85: #{network_forward.1} parent=5 // pred_fallthru
        _
      %p2964 = scmp.le.s32.totalorder 2, %s12
      // Predicated region
      $region106: #{network_forward.1} parent=5 // pred_check
        %p2965 = pneg %p2964
      $region107: #{network_forward.1} parent=5 // pred_check_branch
        %2967 = sbr.rel (%p2965) target = $region109
      $region108: #{network_forward.1} parent=5 // pred_region
        %s2968 = ssub.s32 %s12, 2
        // Predicated region
        $region110: #{network_forward.1} parent=108 // pred_check
          %p2969 = pneg %p144
        $region111: #{network_forward.1} parent=108 // pred_check_branch
          %2971 = sbr.rel (%p2969) target = $region113
        $region112: #{network_forward.1} parent=108 // pred_region
          %s2972 = sand.u32 %s129, 1
          %s2973 = scalar_lea.sflag [#allocation6], %s2972
          %s2974 = sand.u32 %s129, 1
          %s2975 = smul.addr %s2974, 512
          %s2976 = scalar_lea.vmem [#allocation5], %s2975
          %2977 = dma.done %s2973, 8192
        $region113: #{network_forward.1} parent=108 // pred_fallthru
          _
      $region109: #{network_forward.1} parent=5 // pred_fallthru
        _
    $region6: #{network_forward.1} parent=1 // loop_footer
      %s16 = sadd.s32 1, %s12
    $region7: #{network_forward.1} parent=1 // loop_footer_branch
      %11 = sbr.rel target = $region3
    $region8: #{network_forward.1} parent=1 // loop_exit
      _
    %2978 = vsyncpa [#allocation6], 1
    %s2979 = scalar_lea.sflag [#allocation6], 1
    %2980 = vsyncpa %s2979, 1

</llo_original>
